<compile_context>
chip_gen: v5e
topology: v5e:2x2
jax: 0.10.0
libtpu: 0.0.40
codegen_flags: <defaults>
</compile_context>

<pallas_src>
import functools

import jax
import jax.numpy as jnp
from jax.experimental import pallas as pl
from jax.experimental.pallas import tpu as pltpu

KH = KW = 5
PAD = 2
EPS = 1e-3  # matches BatchNorm2d(eps=0.001) in the module


def dwconv_bn_kernel(x_ref, w_ref, gamma_ref, beta_ref, out_ref, xp_ref,
                     *, N, H, W):
    # x_ref:     (N, H, W, Ct)        unpadded input tile (channels on lanes)
    # w_ref:     (KH*KW, Ct)          one scalar per channel per tap
    # gamma_ref: (1, Ct), beta_ref: (1, Ct)
    # out_ref:   (N, H, W, Ct)
    # xp_ref:    (N, H+4, W+4, Ct)    VMEM scratch, zero-padded copy of x

    # In-kernel zero pad: fill the halo, copy the input into the interior.
    # (Scratch is re-zeroed every step so correctness does not depend on how
    #  the "parallel" grid axis is split across TensorCores.)
    xp_ref[...] = jnp.zeros_like(xp_ref)
    xp_ref[:, PAD:PAD + H, PAD:PAD + W, :] = x_ref[...]

    # Depthwise 5x5 conv: 25 statically shifted Ref slices, per-lane FMA.
    acc = jnp.zeros(out_ref.shape, jnp.float32)
    for kh in range(KH):
        for kw in range(KW):
            acc = acc + xp_ref[:, kh:kh + H, kw:kw + W, :] * w_ref[kh * KW + kw, :]

    # One-pass BatchNorm (training mode) over (N, H, W) per channel,
    # affine folded into a single per-channel scale/shift.
    inv_cnt = 1.0 / float(N * H * W)
    s = jnp.sum(acc, axis=(0, 1, 2), keepdims=True)
    ss = jnp.sum(acc * acc, axis=(0, 1, 2), keepdims=True)
    mean = s * inv_cnt
    var = ss * inv_cnt - mean * mean              # biased variance (BN-train)
    scale = gamma_ref[...] * jax.lax.rsqrt(var + EPS)
    shift = beta_ref[...] - mean * scale
    out_ref[...] = acc * scale + shift
    # TODO(synk): running_mean / running_var updates (track_running_stats,
    # momentum=0.01) are not emitted; the training-mode forward output does
    # not depend on them.


def _pick_c_tile(C):
    """Channel tile: multiple of 128 dividing C; 384 keeps the f32 accumulator
    (~21 vregs) in-register and gives an even number of grid steps for 2304."""
    if C % 128 != 0:
        return C  # toy / irregular channel counts -> single block
    for t in (384, 256, 128):
        if C % t == 0:
            return t
    return 128


def dwconv_bn(x_nchw, weight, gamma, beta, *, c_tile=None):
    """x_nchw: (N, C, H, W); weight: (C, 1, KH, KW); gamma/beta: (C,)."""
    N, C, H, W = x_nchw.shape
    # NCHW -> NHWC so C maps onto the lane axis.
    # TODO(synk): if the surrounding model kept activations/weights in NHWC /
    # tap-major layouts, these wrapper transposes disappear entirely.
    x = jnp.transpose(x_nchw, (0, 2, 3, 1)).astype(jnp.float32)
    # (C, 1, KH, KW) -> (KH*KW, C): each tap broadcasts along the lane (C) axis.
    w = jnp.transpose(weight[:, 0, :, :], (1, 2, 0)).reshape(KH * KW, C)
    w = w.astype(jnp.float32)
    g = gamma.reshape(1, C).astype(jnp.float32)
    b = beta.reshape(1, C).astype(jnp.float32)

    ct = c_tile or _pick_c_tile(C)
    assert C % ct == 0, (C, ct)
    grid = (C // ct,)

    kernel = functools.partial(dwconv_bn_kernel, N=N, H=H, W=W)

    # Per-tile VMEM (f32): double-buffered in/out blocks + padded scratch +
    # weights; set an explicit, conservative limit with headroom.
    tile_bytes = 4 * ct * (4 * N * H * W
                           + N * (H + 2 * PAD) * (W + 2 * PAD)
                           + 2 * KH * KW + 4)
    vmem_limit = int(min(48 * 2**20, max(4 * tile_bytes, 8 * 2**20)))

    out_nhwc = pl.pallas_call(
        kernel,
        out_shape=jax.ShapeDtypeStruct((N, H, W, C), jnp.float32),
        grid_spec=pltpu.PrefetchScalarGridSpec(
            num_scalar_prefetch=0,
            grid=grid,
            in_specs=[
                pl.BlockSpec((N, H, W, ct), lambda c: (0, 0, 0, c)),
                pl.BlockSpec((KH * KW, ct), lambda c: (0, c)),
                pl.BlockSpec((1, ct), lambda c: (0, c)),
                pl.BlockSpec((1, ct), lambda c: (0, c)),
            ],
            out_specs=pl.BlockSpec((N, H, W, ct), lambda c: (0, 0, 0, c)),
            scratch_shapes=[
                pltpu.VMEM((N, H + 2 * PAD, W + 2 * PAD, ct), jnp.float32),
            ],
        ),
        compiler_params=pltpu.CompilerParams(
            dimension_semantics=("parallel",),
            vmem_limit_bytes=vmem_limit,
        ),
    )(x, w, g, b)
    return jnp.transpose(out_nhwc, (0, 3, 1, 2))  # back to NCHW


def _reference(x_nchw, weight, gamma, beta):
    """Pure-JAX reference: grouped conv + training-mode batchnorm."""
    C = x_nchw.shape[1]
    y = jax.lax.conv_general_dilated(
        x_nchw.astype(jnp.float32), weight.astype(jnp.float32),
        window_strides=(1, 1), padding=((PAD, PAD), (PAD, PAD)),
        dimension_numbers=("NCHW", "OIHW", "NCHW"),
        feature_group_count=C,
        precision=jax.lax.Precision.HIGHEST)
    mean = jnp.mean(y, axis=(0, 2, 3), keepdims=True)
    var = jnp.mean(jnp.square(y - mean), axis=(0, 2, 3), keepdims=True)
    g = gamma.reshape(1, C, 1, 1)
    b = beta.reshape(1, C, 1, 1)
    return (y - mean) * jax.lax.rsqrt(var + EPS) * g + b


if __name__ == "__main__":
    # Exact module shape: input (1, 2304, 7, 7), depthwise 5x5, BN(2304).
    N, C, H, W = 1, 2304, 7, 7

    key = jax.random.PRNGKey(0)
    kx, kw, kg, kb = jax.random.split(key, 4)
    x = jax.random.normal(kx, (N, C, H, W), dtype=jnp.float32)
    # Conv2d weight shape: (C_out=C, C_in/groups=1, KH, KW)
    weight = jax.random.normal(kw, (C, 1, KH, KW), dtype=jnp.float32) * 0.1
    gamma = 1.0 + 0.1 * jax.random.normal(kg, (C,), dtype=jnp.float32)
    beta = 0.1 * jax.random.normal(kb, (C,), dtype=jnp.float32)

    out = jax.block_until_ready(jax.jit(dwconv_bn)(x, weight, gamma, beta))
    ref = jax.block_until_ready(_reference(x, weight, gamma, beta))

    assert out.shape == (N, C, H, W)
    err = float(jnp.max(jnp.abs(out - ref)))
    assert err < 1e-3, f"mismatch vs reference: max abs err = {err}"

    print("KERNEL_OK")
</pallas_src>

<mosaic_0001>
module attributes {stable_mosaic.version = 11 : i64} {
  func.func @dwconv_bn_kernel(%arg0: i32, %arg1: memref<1x7x7x384xf32, #tpu.memory_space<vmem>>, %arg2: memref<25x384xf32, #tpu.memory_space<vmem>>, %arg3: memref<1x384xf32, #tpu.memory_space<vmem>>, %arg4: memref<1x384xf32, #tpu.memory_space<vmem>>, %arg5: memref<1x7x7x384xf32, #tpu.memory_space<vmem>>, %arg6: memref<1x11x11x384xf32, #tpu.memory_space<vmem>>) attributes {dimension_semantics = [#tpu.dimension_semantics<parallel>], iteration_bounds = array<i64: 6>, scalar_prefetch = 0 : i64, scratch_operands = 1 : i64, tpu.core_type = #tpu.core_type<tc>, window_params = [{transform_indices = @transform_0, window_bounds = array<i64: 1, 7, 7, 384>}, {transform_indices = @transform_1, window_bounds = array<i64: 25, 384>}, {transform_indices = @transform_2, window_bounds = array<i64: 1, 384>}, {transform_indices = @transform_3, window_bounds = array<i64: 1, 384>}, {transform_indices = @transform_4, window_bounds = array<i64: 1, 7, 7, 384>}]} {
    %cst = arith.constant 0.000000e+00 : f32
    %0 = vector.broadcast %cst : f32 to vector<1x11x11x384xf32>
    %c0 = arith.constant 0 : index
    %c0_0 = arith.constant 0 : index
    %c0_1 = arith.constant 0 : index
    %c0_2 = arith.constant 0 : index
    %1 = vector.load %arg6[%c0, %c0_0, %c0_1, %c0_2] : memref<1x11x11x384xf32, #tpu.memory_space<vmem>>, vector<1x11x11x384xf32>
    tpu.vector_store %arg6[%c0, %c0_0, %c0_1, %c0_2], %0 {strides = array<i32>} : memref<1x11x11x384xf32, #tpu.memory_space<vmem>>, vector<1x11x11x384xf32>,
    %c0_3 = arith.constant 0 : index
    %c0_4 = arith.constant 0 : index
    %c0_5 = arith.constant 0 : index
    %c0_6 = arith.constant 0 : index
    %2 = vector.load %arg1[%c0_3, %c0_4, %c0_5, %c0_6] : memref<1x7x7x384xf32, #tpu.memory_space<vmem>>, vector<1x7x7x384xf32>
    %c0_7 = arith.constant 0 : index
    %c2 = arith.constant 2 : index
    %c2_8 = arith.constant 2 : index
    %c0_9 = arith.constant 0 : index
    %3 = vector.load %arg6[%c0_7, %c2, %c2_8, %c0_9] : memref<1x11x11x384xf32, #tpu.memory_space<vmem>>, vector<1x7x7x384xf32>
    tpu.vector_store %arg6[%c0_7, %c2, %c2_8, %c0_9], %2 {strides = array<i32>} : memref<1x11x11x384xf32, #tpu.memory_space<vmem>>, vector<1x7x7x384xf32>,
    %cst_10 = arith.constant 0.000000e+00 : f32
    %4 = vector.broadcast %cst_10 : f32 to vector<1x7x7x384xf32>
    %c0_11 = arith.constant 0 : index
    %c0_12 = arith.constant 0 : index
    %c0_13 = arith.constant 0 : index
    %c0_14 = arith.constant 0 : index
    %5 = vector.load %arg6[%c0_11, %c0_12, %c0_13, %c0_14] : memref<1x11x11x384xf32, #tpu.memory_space<vmem>>, vector<1x7x7x384xf32>
    %c0_15 = arith.constant 0 : index
    %c0_16 = arith.constant 0 : index
    %6 = vector.load %arg2[%c0_15, %c0_16] : memref<25x384xf32, #tpu.memory_space<vmem>>, vector<1x384xf32>
    %7 = vector.shape_cast %6 : vector<1x384xf32> to vector<384xf32>
    %8 = vector.shape_cast %7 : vector<384xf32> to vector<1x1x1x384xf32>
    %9 = vector.broadcast %8 : vector<1x1x1x384xf32> to vector<1x7x7x384xf32>
    %10 = arith.mulf %5, %9 : vector<1x7x7x384xf32>
    %11 = arith.addf %4, %10 : vector<1x7x7x384xf32>
    %c0_17 = arith.constant 0 : index
    %c0_18 = arith.constant 0 : index
    %c1 = arith.constant 1 : index
    %c0_19 = arith.constant 0 : index
    %12 = vector.load %arg6[%c0_17, %c0_18, %c1, %c0_19] : memref<1x11x11x384xf32, #tpu.memory_space<vmem>>, vector<1x7x7x384xf32>
    %c1_20 = arith.constant 1 : index
    %c0_21 = arith.constant 0 : index
    %13 = vector.load %arg2[%c1_20, %c0_21] : memref<25x384xf32, #tpu.memory_space<vmem>>, vector<1x384xf32>
    %14 = vector.shape_cast %13 : vector<1x384xf32> to vector<384xf32>
    %15 = vector.shape_cast %14 : vector<384xf32> to vector<1x1x1x384xf32>
    %16 = vector.broadcast %15 : vector<1x1x1x384xf32> to vector<1x7x7x384xf32>
    %17 = arith.mulf %12, %16 : vector<1x7x7x384xf32>
    %18 = arith.addf %11, %17 : vector<1x7x7x384xf32>
    %c0_22 = arith.constant 0 : index
    %c0_23 = arith.constant 0 : index
    %c2_24 = arith.constant 2 : index
    %c0_25 = arith.constant 0 : index
    %19 = vector.load %arg6[%c0_22, %c0_23, %c2_24, %c0_25] : memref<1x11x11x384xf32, #tpu.memory_space<vmem>>, vector<1x7x7x384xf32>
    %c2_26 = arith.constant 2 : index
    %c0_27 = arith.constant 0 : index
    %20 = vector.load %arg2[%c2_26, %c0_27] : memref<25x384xf32, #tpu.memory_space<vmem>>, vector<1x384xf32>
    %21 = vector.shape_cast %20 : vector<1x384xf32> to vector<384xf32>
    %22 = vector.shape_cast %21 : vector<384xf32> to vector<1x1x1x384xf32>
    %23 = vector.broadcast %22 : vector<1x1x1x384xf32> to vector<1x7x7x384xf32>
    %24 = arith.mulf %19, %23 : vector<1x7x7x384xf32>
    %25 = arith.addf %18, %24 : vector<1x7x7x384xf32>
    %c0_28 = arith.constant 0 : index
    %c0_29 = arith.constant 0 : index
    %c3 = arith.constant 3 : index
    %c0_30 = arith.constant 0 : index
    %26 = vector.load %arg6[%c0_28, %c0_29, %c3, %c0_30] : memref<1x11x11x384xf32, #tpu.memory_space<vmem>>, vector<1x7x7x384xf32>
    %c3_31 = arith.constant 3 : index
    %c0_32 = arith.constant 0 : index
    %27 = vector.load %arg2[%c3_31, %c0_32] : memref<25x384xf32, #tpu.memory_space<vmem>>, vector<1x384xf32>
    %28 = vector.shape_cast %27 : vector<1x384xf32> to vector<384xf32>
    %29 = vector.shape_cast %28 : vector<384xf32> to vector<1x1x1x384xf32>
    %30 = vector.broadcast %29 : vector<1x1x1x384xf32> to vector<1x7x7x384xf32>
    %31 = arith.mulf %26, %30 : vector<1x7x7x384xf32>
    %32 = arith.addf %25, %31 : vector<1x7x7x384xf32>
    %c0_33 = arith.constant 0 : index
    %c0_34 = arith.constant 0 : index
    %c4 = arith.constant 4 : index
    %c0_35 = arith.constant 0 : index
    %33 = vector.load %arg6[%c0_33, %c0_34, %c4, %c0_35] : memref<1x11x11x384xf32, #tpu.memory_space<vmem>>, vector<1x7x7x384xf32>
    %c4_36 = arith.constant 4 : index
    %c0_37 = arith.constant 0 : index
    %34 = vector.load %arg2[%c4_36, %c0_37] : memref<25x384xf32, #tpu.memory_space<vmem>>, vector<1x384xf32>
    %35 = vector.shape_cast %34 : vector<1x384xf32> to vector<384xf32>
    %36 = vector.shape_cast %35 : vector<384xf32> to vector<1x1x1x384xf32>
    %37 = vector.broadcast %36 : vector<1x1x1x384xf32> to vector<1x7x7x384xf32>
    %38 = arith.mulf %33, %37 : vector<1x7x7x384xf32>
    %39 = arith.addf %32, %38 : vector<1x7x7x384xf32>
    %c0_38 = arith.constant 0 : index
    %c1_39 = arith.constant 1 : index
    %c0_40 = arith.constant 0 : index
    %c0_41 = arith.constant 0 : index
    %40 = vector.load %arg6[%c0_38, %c1_39, %c0_40, %c0_41] : memref<1x11x11x384xf32, #tpu.memory_space<vmem>>, vector<1x7x7x384xf32>
    %c5 = arith.constant 5 : index
    %c0_42 = arith.constant 0 : index
    %41 = vector.load %arg2[%c5, %c0_42] : memref<25x384xf32, #tpu.memory_space<vmem>>, vector<1x384xf32>
    %42 = vector.shape_cast %41 : vector<1x384xf32> to vector<384xf32>
    %43 = vector.shape_cast %42 : vector<384xf32> to vector<1x1x1x384xf32>
    %44 = vector.broadcast %43 : vector<1x1x1x384xf32> to vector<1x7x7x384xf32>
    %45 = arith.mulf %40, %44 : vector<1x7x7x384xf32>
    %46 = arith.addf %39, %45 : vector<1x7x7x384xf32>
    %c0_43 = arith.constant 0 : index
    %c1_44 = arith.constant 1 : index
    %c1_45 = arith.constant 1 : index
    %c0_46 = arith.constant 0 : index
    %47 = vector.load %arg6[%c0_43, %c1_44, %c1_45, %c0_46] : memref<1x11x11x384xf32, #tpu.memory_space<vmem>>, vector<1x7x7x384xf32>
    %c6 = arith.constant 6 : index
    %c0_47 = arith.constant 0 : index
    %48 = vector.load %arg2[%c6, %c0_47] : memref<25x384xf32, #tpu.memory_space<vmem>>, vector<1x384xf32>
    %49 = vector.shape_cast %48 : vector<1x384xf32> to vector<384xf32>
    %50 = vector.shape_cast %49 : vector<384xf32> to vector<1x1x1x384xf32>
    %51 = vector.broadcast %50 : vector<1x1x1x384xf32> to vector<1x7x7x384xf32>
    %52 = arith.mulf %47, %51 : vector<1x7x7x384xf32>
    %53 = arith.addf %46, %52 : vector<1x7x7x384xf32>
    %c0_48 = arith.constant 0 : index
    %c1_49 = arith.constant 1 : index
    %c2_50 = arith.constant 2 : index
    %c0_51 = arith.constant 0 : index
    %54 = vector.load %arg6[%c0_48, %c1_49, %c2_50, %c0_51] : memref<1x11x11x384xf32, #tpu.memory_space<vmem>>, vector<1x7x7x384xf32>
    %c7 = arith.constant 7 : index
    %c0_52 = arith.constant 0 : index
    %55 = vector.load %arg2[%c7, %c0_52] : memref<25x384xf32, #tpu.memory_space<vmem>>, vector<1x384xf32>
    %56 = vector.shape_cast %55 : vector<1x384xf32> to vector<384xf32>
    %57 = vector.shape_cast %56 : vector<384xf32> to vector<1x1x1x384xf32>
    %58 = vector.broadcast %57 : vector<1x1x1x384xf32> to vector<1x7x7x384xf32>
    %59 = arith.mulf %54, %58 : vector<1x7x7x384xf32>
    %60 = arith.addf %53, %59 : vector<1x7x7x384xf32>
    %c0_53 = arith.constant 0 : index
    %c1_54 = arith.constant 1 : index
    %c3_55 = arith.constant 3 : index
    %c0_56 = arith.constant 0 : index
    %61 = vector.load %arg6[%c0_53, %c1_54, %c3_55, %c0_56] : memref<1x11x11x384xf32, #tpu.memory_space<vmem>>, vector<1x7x7x384xf32>
    %c8 = arith.constant 8 : index
    %c0_57 = arith.constant 0 : index
    %62 = vector.load %arg2[%c8, %c0_57] : memref<25x384xf32, #tpu.memory_space<vmem>>, vector<1x384xf32>
    %63 = vector.shape_cast %62 : vector<1x384xf32> to vector<384xf32>
    %64 = vector.shape_cast %63 : vector<384xf32> to vector<1x1x1x384xf32>
    %65 = vector.broadcast %64 : vector<1x1x1x384xf32> to vector<1x7x7x384xf32>
    %66 = arith.mulf %61, %65 : vector<1x7x7x384xf32>
    %67 = arith.addf %60, %66 : vector<1x7x7x384xf32>
    %c0_58 = arith.constant 0 : index
    %c1_59 = arith.constant 1 : index
    %c4_60 = arith.constant 4 : index
    %c0_61 = arith.constant 0 : index
    %68 = vector.load %arg6[%c0_58, %c1_59, %c4_60, %c0_61] : memref<1x11x11x384xf32, #tpu.memory_space<vmem>>, vector<1x7x7x384xf32>
    %c9 = arith.constant 9 : index
    %c0_62 = arith.constant 0 : index
    %69 = vector.load %arg2[%c9, %c0_62] : memref<25x384xf32, #tpu.memory_space<vmem>>, vector<1x384xf32>
    %70 = vector.shape_cast %69 : vector<1x384xf32> to vector<384xf32>
    %71 = vector.shape_cast %70 : vector<384xf32> to vector<1x1x1x384xf32>
    %72 = vector.broadcast %71 : vector<1x1x1x384xf32> to vector<1x7x7x384xf32>
    %73 = arith.mulf %68, %72 : vector<1x7x7x384xf32>
    %74 = arith.addf %67, %73 : vector<1x7x7x384xf32>
    %c0_63 = arith.constant 0 : index
    %c2_64 = arith.constant 2 : index
    %c0_65 = arith.constant 0 : index
    %c0_66 = arith.constant 0 : index
    %75 = vector.load %arg6[%c0_63, %c2_64, %c0_65, %c0_66] : memref<1x11x11x384xf32, #tpu.memory_space<vmem>>, vector<1x7x7x384xf32>
    %c10 = arith.constant 10 : index
    %c0_67 = arith.constant 0 : index
    %76 = vector.load %arg2[%c10, %c0_67] : memref<25x384xf32, #tpu.memory_space<vmem>>, vector<1x384xf32>
    %77 = vector.shape_cast %76 : vector<1x384xf32> to vector<384xf32>
    %78 = vector.shape_cast %77 : vector<384xf32> to vector<1x1x1x384xf32>
    %79 = vector.broadcast %78 : vector<1x1x1x384xf32> to vector<1x7x7x384xf32>
    %80 = arith.mulf %75, %79 : vector<1x7x7x384xf32>
    %81 = arith.addf %74, %80 : vector<1x7x7x384xf32>
    %c0_68 = arith.constant 0 : index
    %c2_69 = arith.constant 2 : index
    %c1_70 = arith.constant 1 : index
    %c0_71 = arith.constant 0 : index
    %82 = vector.load %arg6[%c0_68, %c2_69, %c1_70, %c0_71] : memref<1x11x11x384xf32, #tpu.memory_space<vmem>>, vector<1x7x7x384xf32>
    %c11 = arith.constant 11 : index
    %c0_72 = arith.constant 0 : index
    %83 = vector.load %arg2[%c11, %c0_72] : memref<25x384xf32, #tpu.memory_space<vmem>>, vector<1x384xf32>
    %84 = vector.shape_cast %83 : vector<1x384xf32> to vector<384xf32>
    %85 = vector.shape_cast %84 : vector<384xf32> to vector<1x1x1x384xf32>
    %86 = vector.broadcast %85 : vector<1x1x1x384xf32> to vector<1x7x7x384xf32>
    %87 = arith.mulf %82, %86 : vector<1x7x7x384xf32>
    %88 = arith.addf %81, %87 : vector<1x7x7x384xf32>
    %c0_73 = arith.constant 0 : index
    %c2_74 = arith.constant 2 : index
    %c2_75 = arith.constant 2 : index
    %c0_76 = arith.constant 0 : index
    %89 = vector.load %arg6[%c0_73, %c2_74, %c2_75, %c0_76] : memref<1x11x11x384xf32, #tpu.memory_space<vmem>>, vector<1x7x7x384xf32>
    %c12 = arith.constant 12 : index
    %c0_77 = arith.constant 0 : index
    %90 = vector.load %arg2[%c12, %c0_77] : memref<25x384xf32, #tpu.memory_space<vmem>>, vector<1x384xf32>
    %91 = vector.shape_cast %90 : vector<1x384xf32> to vector<384xf32>
    %92 = vector.shape_cast %91 : vector<384xf32> to vector<1x1x1x384xf32>
    %93 = vector.broadcast %92 : vector<1x1x1x384xf32> to vector<1x7x7x384xf32>
    %94 = arith.mulf %89, %93 : vector<1x7x7x384xf32>
    %95 = arith.addf %88, %94 : vector<1x7x7x384xf32>
    %c0_78 = arith.constant 0 : index
    %c2_79 = arith.constant 2 : index
    %c3_80 = arith.constant 3 : index
    %c0_81 = arith.constant 0 : index
    %96 = vector.load %arg6[%c0_78, %c2_79, %c3_80, %c0_81] : memref<1x11x11x384xf32, #tpu.memory_space<vmem>>, vector<1x7x7x384xf32>
    %c13 = arith.constant 13 : index
    %c0_82 = arith.constant 0 : index
    %97 = vector.load %arg2[%c13, %c0_82] : memref<25x384xf32, #tpu.memory_space<vmem>>, vector<1x384xf32>
    %98 = vector.shape_cast %97 : vector<1x384xf32> to vector<384xf32>
    %99 = vector.shape_cast %98 : vector<384xf32> to vector<1x1x1x384xf32>
    %100 = vector.broadcast %99 : vector<1x1x1x384xf32> to vector<1x7x7x384xf32>
    %101 = arith.mulf %96, %100 : vector<1x7x7x384xf32>
    %102 = arith.addf %95, %101 : vector<1x7x7x384xf32>
    %c0_83 = arith.constant 0 : index
    %c2_84 = arith.constant 2 : index
    %c4_85 = arith.constant 4 : index
    %c0_86 = arith.constant 0 : index
    %103 = vector.load %arg6[%c0_83, %c2_84, %c4_85, %c0_86] : memref<1x11x11x384xf32, #tpu.memory_space<vmem>>, vector<1x7x7x384xf32>
    %c14 = arith.constant 14 : index
    %c0_87 = arith.constant 0 : index
    %104 = vector.load %arg2[%c14, %c0_87] : memref<25x384xf32, #tpu.memory_space<vmem>>, vector<1x384xf32>
    %105 = vector.shape_cast %104 : vector<1x384xf32> to vector<384xf32>
    %106 = vector.shape_cast %105 : vector<384xf32> to vector<1x1x1x384xf32>
    %107 = vector.broadcast %106 : vector<1x1x1x384xf32> to vector<1x7x7x384xf32>
    %108 = arith.mulf %103, %107 : vector<1x7x7x384xf32>
    %109 = arith.addf %102, %108 : vector<1x7x7x384xf32>
    %c0_88 = arith.constant 0 : index
    %c3_89 = arith.constant 3 : index
    %c0_90 = arith.constant 0 : index
    %c0_91 = arith.constant 0 : index
    %110 = vector.load %arg6[%c0_88, %c3_89, %c0_90, %c0_91] : memref<1x11x11x384xf32, #tpu.memory_space<vmem>>, vector<1x7x7x384xf32>
    %c15 = arith.constant 15 : index
    %c0_92 = arith.constant 0 : index
    %111 = vector.load %arg2[%c15, %c0_92] : memref<25x384xf32, #tpu.memory_space<vmem>>, vector<1x384xf32>
    %112 = vector.shape_cast %111 : vector<1x384xf32> to vector<384xf32>
    %113 = vector.shape_cast %112 : vector<384xf32> to vector<1x1x1x384xf32>
    %114 = vector.broadcast %113 : vector<1x1x1x384xf32> to vector<1x7x7x384xf32>
    %115 = arith.mulf %110, %114 : vector<1x7x7x384xf32>
    %116 = arith.addf %109, %115 : vector<1x7x7x384xf32>
    %c0_93 = arith.constant 0 : index
    %c3_94 = arith.constant 3 : index
    %c1_95 = arith.constant 1 : index
    %c0_96 = arith.constant 0 : index
    %117 = vector.load %arg6[%c0_93, %c3_94, %c1_95, %c0_96] : memref<1x11x11x384xf32, #tpu.memory_space<vmem>>, vector<1x7x7x384xf32>
    %c16 = arith.constant 16 : index
    %c0_97 = arith.constant 0 : index
    %118 = vector.load %arg2[%c16, %c0_97] : memref<25x384xf32, #tpu.memory_space<vmem>>, vector<1x384xf32>
    %119 = vector.shape_cast %118 : vector<1x384xf32> to vector<384xf32>
    %120 = vector.shape_cast %119 : vector<384xf32> to vector<1x1x1x384xf32>
    %121 = vector.broadcast %120 : vector<1x1x1x384xf32> to vector<1x7x7x384xf32>
    %122 = arith.mulf %117, %121 : vector<1x7x7x384xf32>
    %123 = arith.addf %116, %122 : vector<1x7x7x384xf32>
    %c0_98 = arith.constant 0 : index
    %c3_99 = arith.constant 3 : index
    %c2_100 = arith.constant 2 : index
    %c0_101 = arith.constant 0 : index
    %124 = vector.load %arg6[%c0_98, %c3_99, %c2_100, %c0_101] : memref<1x11x11x384xf32, #tpu.memory_space<vmem>>, vector<1x7x7x384xf32>
    %c17 = arith.constant 17 : index
    %c0_102 = arith.constant 0 : index
    %125 = vector.load %arg2[%c17, %c0_102] : memref<25x384xf32, #tpu.memory_space<vmem>>, vector<1x384xf32>
    %126 = vector.shape_cast %125 : vector<1x384xf32> to vector<384xf32>
    %127 = vector.shape_cast %126 : vector<384xf32> to vector<1x1x1x384xf32>
    %128 = vector.broadcast %127 : vector<1x1x1x384xf32> to vector<1x7x7x384xf32>
    %129 = arith.mulf %124, %128 : vector<1x7x7x384xf32>
    %130 = arith.addf %123, %129 : vector<1x7x7x384xf32>
    %c0_103 = arith.constant 0 : index
    %c3_104 = arith.constant 3 : index
    %c3_105 = arith.constant 3 : index
    %c0_106 = arith.constant 0 : index
    %131 = vector.load %arg6[%c0_103, %c3_104, %c3_105, %c0_106] : memref<1x11x11x384xf32, #tpu.memory_space<vmem>>, vector<1x7x7x384xf32>
    %c18 = arith.constant 18 : index
    %c0_107 = arith.constant 0 : index
    %132 = vector.load %arg2[%c18, %c0_107] : memref<25x384xf32, #tpu.memory_space<vmem>>, vector<1x384xf32>
    %133 = vector.shape_cast %132 : vector<1x384xf32> to vector<384xf32>
    %134 = vector.shape_cast %133 : vector<384xf32> to vector<1x1x1x384xf32>
    %135 = vector.broadcast %134 : vector<1x1x1x384xf32> to vector<1x7x7x384xf32>
    %136 = arith.mulf %131, %135 : vector<1x7x7x384xf32>
    %137 = arith.addf %130, %136 : vector<1x7x7x384xf32>
    %c0_108 = arith.constant 0 : index
    %c3_109 = arith.constant 3 : index
    %c4_110 = arith.constant 4 : index
    %c0_111 = arith.constant 0 : index
    %138 = vector.load %arg6[%c0_108, %c3_109, %c4_110, %c0_111] : memref<1x11x11x384xf32, #tpu.memory_space<vmem>>, vector<1x7x7x384xf32>
    %c19 = arith.constant 19 : index
    %c0_112 = arith.constant 0 : index
    %139 = vector.load %arg2[%c19, %c0_112] : memref<25x384xf32, #tpu.memory_space<vmem>>, vector<1x384xf32>
    %140 = vector.shape_cast %139 : vector<1x384xf32> to vector<384xf32>
    %141 = vector.shape_cast %140 : vector<384xf32> to vector<1x1x1x384xf32>
    %142 = vector.broadcast %141 : vector<1x1x1x384xf32> to vector<1x7x7x384xf32>
    %143 = arith.mulf %138, %142 : vector<1x7x7x384xf32>
    %144 = arith.addf %137, %143 : vector<1x7x7x384xf32>
    %c0_113 = arith.constant 0 : index
    %c4_114 = arith.constant 4 : index
    %c0_115 = arith.constant 0 : index
    %c0_116 = arith.constant 0 : index
    %145 = vector.load %arg6[%c0_113, %c4_114, %c0_115, %c0_116] : memref<1x11x11x384xf32, #tpu.memory_space<vmem>>, vector<1x7x7x384xf32>
    %c20 = arith.constant 20 : index
    %c0_117 = arith.constant 0 : index
    %146 = vector.load %arg2[%c20, %c0_117] : memref<25x384xf32, #tpu.memory_space<vmem>>, vector<1x384xf32>
    %147 = vector.shape_cast %146 : vector<1x384xf32> to vector<384xf32>
    %148 = vector.shape_cast %147 : vector<384xf32> to vector<1x1x1x384xf32>
    %149 = vector.broadcast %148 : vector<1x1x1x384xf32> to vector<1x7x7x384xf32>
    %150 = arith.mulf %145, %149 : vector<1x7x7x384xf32>
    %151 = arith.addf %144, %150 : vector<1x7x7x384xf32>
    %c0_118 = arith.constant 0 : index
    %c4_119 = arith.constant 4 : index
    %c1_120 = arith.constant 1 : index
    %c0_121 = arith.constant 0 : index
    %152 = vector.load %arg6[%c0_118, %c4_119, %c1_120, %c0_121] : memref<1x11x11x384xf32, #tpu.memory_space<vmem>>, vector<1x7x7x384xf32>
    %c21 = arith.constant 21 : index
    %c0_122 = arith.constant 0 : index
    %153 = vector.load %arg2[%c21, %c0_122] : memref<25x384xf32, #tpu.memory_space<vmem>>, vector<1x384xf32>
    %154 = vector.shape_cast %153 : vector<1x384xf32> to vector<384xf32>
    %155 = vector.shape_cast %154 : vector<384xf32> to vector<1x1x1x384xf32>
    %156 = vector.broadcast %155 : vector<1x1x1x384xf32> to vector<1x7x7x384xf32>
    %157 = arith.mulf %152, %156 : vector<1x7x7x384xf32>
    %158 = arith.addf %151, %157 : vector<1x7x7x384xf32>
    %c0_123 = arith.constant 0 : index
    %c4_124 = arith.constant 4 : index
    %c2_125 = arith.constant 2 : index
    %c0_126 = arith.constant 0 : index
    %159 = vector.load %arg6[%c0_123, %c4_124, %c2_125, %c0_126] : memref<1x11x11x384xf32, #tpu.memory_space<vmem>>, vector<1x7x7x384xf32>
    %c22 = arith.constant 22 : index
    %c0_127 = arith.constant 0 : index
    %160 = vector.load %arg2[%c22, %c0_127] : memref<25x384xf32, #tpu.memory_space<vmem>>, vector<1x384xf32>
    %161 = vector.shape_cast %160 : vector<1x384xf32> to vector<384xf32>
    %162 = vector.shape_cast %161 : vector<384xf32> to vector<1x1x1x384xf32>
    %163 = vector.broadcast %162 : vector<1x1x1x384xf32> to vector<1x7x7x384xf32>
    %164 = arith.mulf %159, %163 : vector<1x7x7x384xf32>
    %165 = arith.addf %158, %164 : vector<1x7x7x384xf32>
    %c0_128 = arith.constant 0 : index
    %c4_129 = arith.constant 4 : index
    %c3_130 = arith.constant 3 : index
    %c0_131 = arith.constant 0 : index
    %166 = vector.load %arg6[%c0_128, %c4_129, %c3_130, %c0_131] : memref<1x11x11x384xf32, #tpu.memory_space<vmem>>, vector<1x7x7x384xf32>
    %c23 = arith.constant 23 : index
    %c0_132 = arith.constant 0 : index
    %167 = vector.load %arg2[%c23, %c0_132] : memref<25x384xf32, #tpu.memory_space<vmem>>, vector<1x384xf32>
    %168 = vector.shape_cast %167 : vector<1x384xf32> to vector<384xf32>
    %169 = vector.shape_cast %168 : vector<384xf32> to vector<1x1x1x384xf32>
    %170 = vector.broadcast %169 : vector<1x1x1x384xf32> to vector<1x7x7x384xf32>
    %171 = arith.mulf %166, %170 : vector<1x7x7x384xf32>
    %172 = arith.addf %165, %171 : vector<1x7x7x384xf32>
    %c0_133 = arith.constant 0 : index
    %c4_134 = arith.constant 4 : index
    %c4_135 = arith.constant 4 : index
    %c0_136 = arith.constant 0 : index
    %173 = vector.load %arg6[%c0_133, %c4_134, %c4_135, %c0_136] : memref<1x11x11x384xf32, #tpu.memory_space<vmem>>, vector<1x7x7x384xf32>
    %c24 = arith.constant 24 : index
    %c0_137 = arith.constant 0 : index
    %174 = vector.load %arg2[%c24, %c0_137] : memref<25x384xf32, #tpu.memory_space<vmem>>, vector<1x384xf32>
    %175 = vector.shape_cast %174 : vector<1x384xf32> to vector<384xf32>
    %176 = vector.shape_cast %175 : vector<384xf32> to vector<1x1x1x384xf32>
    %177 = vector.broadcast %176 : vector<1x1x1x384xf32> to vector<1x7x7x384xf32>
    %178 = arith.mulf %173, %177 : vector<1x7x7x384xf32>
    %179 = arith.addf %172, %178 : vector<1x7x7x384xf32>
    %cst_138 = arith.constant dense<0.000000e+00> : vector<384xf32>
    %180 = vector.multi_reduction <add>, %179, %cst_138 [0, 1, 2] : vector<1x7x7x384xf32> to vector<384xf32>
    %181 = vector.shape_cast %180 : vector<384xf32> to vector<1x1x1x384xf32>
    %182 = arith.mulf %179, %179 : vector<1x7x7x384xf32>
    %cst_139 = arith.constant dense<0.000000e+00> : vector<384xf32>
    %183 = vector.multi_reduction <add>, %182, %cst_139 [0, 1, 2] : vector<1x7x7x384xf32> to vector<384xf32>
    %184 = vector.shape_cast %183 : vector<384xf32> to vector<1x1x1x384xf32>
    %cst_140 = arith.constant 0.0204081628 : f32
    %185 = vector.broadcast %cst_140 : f32 to vector<1x1x1x384xf32>
    %186 = arith.mulf %181, %185 : vector<1x1x1x384xf32>
    %cst_141 = arith.constant 0.0204081628 : f32
    %187 = vector.broadcast %cst_141 : f32 to vector<1x1x1x384xf32>
    %188 = arith.mulf %184, %187 : vector<1x1x1x384xf32>
    %189 = arith.mulf %186, %186 : vector<1x1x1x384xf32>
    %190 = arith.subf %188, %189 : vector<1x1x1x384xf32>
    %c0_142 = arith.constant 0 : index
    %c0_143 = arith.constant 0 : index
    %191 = vector.load %arg3[%c0_142, %c0_143] : memref<1x384xf32, #tpu.memory_space<vmem>>, vector<1x384xf32>
    %cst_144 = arith.constant 1.000000e-03 : f32
    %192 = vector.broadcast %cst_144 : f32 to vector<1x1x1x384xf32>
    %193 = arith.addf %190, %192 : vector<1x1x1x384xf32>
    %194 = math.rsqrt %193 : vector<1x1x1x384xf32>
    %195 = vector.shape_cast %191 : vector<1x384xf32> to vector<1x1x1x384xf32>
    %196 = arith.mulf %195, %194 : vector<1x1x1x384xf32>
    %c0_145 = arith.constant 0 : index
    %c0_146 = arith.constant 0 : index
    %197 = vector.load %arg4[%c0_145, %c0_146] : memref<1x384xf32, #tpu.memory_space<vmem>>, vector<1x384xf32>
    %198 = arith.mulf %186, %196 : vector<1x1x1x384xf32>
    %199 = vector.shape_cast %197 : vector<1x384xf32> to vector<1x1x1x384xf32>
    %200 = arith.subf %199, %198 : vector<1x1x1x384xf32>
    %201 = vector.broadcast %196 : vector<1x1x1x384xf32> to vector<1x7x7x384xf32>
    %202 = arith.mulf %179, %201 : vector<1x7x7x384xf32>
    %203 = vector.broadcast %200 : vector<1x1x1x384xf32> to vector<1x7x7x384xf32>
    %204 = arith.addf %202, %203 : vector<1x7x7x384xf32>
    %c0_147 = arith.constant 0 : index
    %c0_148 = arith.constant 0 : index
    %c0_149 = arith.constant 0 : index
    %c0_150 = arith.constant 0 : index
    %205 = vector.load %arg5[%c0_147, %c0_148, %c0_149, %c0_150] : memref<1x7x7x384xf32, #tpu.memory_space<vmem>>, vector<1x7x7x384xf32>
    tpu.vector_store %arg5[%c0_147, %c0_148, %c0_149, %c0_150], %204 {strides = array<i32>} : memref<1x7x7x384xf32, #tpu.memory_space<vmem>>, vector<1x7x7x384xf32>,
    return
  }
  func.func @transform_0(%arg0: i32) -> (i32, i32, i32, i32) {
    %c0_i32 = arith.constant 0 : i32
    %c0_i32_0 = arith.constant 0 : i32
    %c0_i32_1 = arith.constant 0 : i32
    %c0_i32_2 = arith.constant 0 : i32
    return %c0_i32, %c0_i32_0, %c0_i32_1, %arg0 : i32, i32, i32, i32
  }
  func.func @transform_1(%arg0: i32) -> (i32, i32) {
    %c0_i32 = arith.constant 0 : i32
    %c0_i32_0 = arith.constant 0 : i32
    return %c0_i32, %arg0 : i32, i32
  }
  func.func @transform_2(%arg0: i32) -> (i32, i32) {
    %c0_i32 = arith.constant 0 : i32
    %c0_i32_0 = arith.constant 0 : i32
    return %c0_i32, %arg0 : i32, i32
  }
  func.func @transform_3(%arg0: i32) -> (i32, i32) {
    %c0_i32 = arith.constant 0 : i32
    %c0_i32_0 = arith.constant 0 : i32
    return %c0_i32, %arg0 : i32, i32
  }
  func.func @transform_4(%arg0: i32) -> (i32, i32, i32, i32) {
    %c0_i32 = arith.constant 0 : i32
    %c0_i32_0 = arith.constant 0 : i32
    %c0_i32_1 = arith.constant 0 : i32
    %c0_i32_2 = arith.constant 0 : i32
    return %c0_i32, %c0_i32_0, %c0_i32_1, %arg0 : i32, i32, i32, i32
  }
}

</mosaic_0001>

<llo_original>
// kernel: dwconv_bn.1
$region0: #{dwconv_bn.1}
  #allocation0 [shape = 'u32[]', space=smem, size = 0x4, offset = 0x4, fixed_abs, tag = 'smem constant byte address 0x4 - core index']
  #allocation1 [shape = 'u32[72,128]{1,0:T(1,128)}', space=vmem, size = 0x9000, scoped, tag = 'internal scratch']
  #allocation2 [shape = 'f32[1,11,11,384]{3,2,1,0:T(8,128)}', space=vmem, size = 0x42000, scoped, tag = 'scratch operand']
  %s0 = inlined_call_operand.vmem [shape: f32[1,7,7,2304], index: 0, kind: input, shape index: {}]
  %s1 = inlined_call_operand.vmem [shape: f32[25,2304], index: 1, kind: input, shape index: {}]
  %s2 = inlined_call_operand.vmem [shape: f32[1,2304], index: 2, kind: input, shape index: {}]
  %s3 = inlined_call_operand.vmem [shape: f32[1,2304], index: 3, kind: input, shape index: {}]
  %s4 = inlined_call_operand.vmem [shape: f32[1,7,7,2304], index: 4, kind: output, shape index: {}]
  %s5 = sld [smem:[#allocation0]]
  $region114: #{dwconv_bn.1} parent=0
    _
  %s7 = ssub.s32 1, %s5
  %s8 = scalar_select 0, %s7, %s5
  $region1: #{dwconv_bn.1} parent=0
    #allocation3 [shape = 'u8[172032]{0}', space=vmem, size = 0x2a000, scoped, tag = 'input window, operand 0']
    #allocation4 [shape = 'u8[98304]{0}', space=vmem, size = 0x18000, scoped, tag = 'input window, operand 1']
    #allocation5 [shape = 'u8[172032]{0}', space=vmem, size = 0x2a000, scoped, tag = 'output window, operand 0']
    loop: start=0, step=1, limit=8
    $region2: #{dwconv_bn.1} parent=1 // loop_pre_header
      _
    $region3: #{dwconv_bn.1} parent=1 // loop_header
      %s10 = sphi 0, %s14
      %p11 = scmp.ge.s32.totalorder %s10, 8
      %s20 = sphi 0, %s22
      %s23 = sphi 0, %s20
      %s24 = sphi 0, %s23
      %s40 = sphi 0, %s24
      %s46 = sphi 0, %s48
      %s49 = sphi 0, %s46
      %s50 = sphi 0, %s49
      %s66 = sphi 0, %s50
      %s72 = sphi 0, %s74
      %s75 = sphi 0, %s72
      %s76 = sphi 0, %s75
      %s92 = sphi 0, %s76
      %s98 = sphi 0, %s100
      %s101 = sphi 0, %s98
      %s102 = sphi 0, %s101
      %s118 = sphi 0, %s102
      %s124 = sphi 0, %s126
      %s127 = sphi 0, %s124
      %s128 = sphi 0, %s127
      %s144 = sphi 0, %s128
    $region4: #{dwconv_bn.1} parent=1 // loop_header_branch
      %13 = sbr.rel (%p11) target = $region8
    $region5: #{dwconv_bn.1} parent=1 // loop_body
      %s15 = ssub.s32 %s10, 1
      %s16 = ssub.s32 %s10, 2
      %s17 = sadd.s32 %s10, 1
      %s18 = ssub.s32 %s10, %s17
      %p19 = scmp.eq.s32.totalorder %s18, 0
      %s21 = sadd.s32 %s20, 1
      %s22 = scalar_select %p19, %s20, %s21
      %p25 = pneg %p19
      %p26 = scmp.eq.s32.totalorder %s10, 5
      %p27 = por %p25, %p26
      %p28 = scmp.ne.s32.totalorder %s20, %s23
      %p29 = scmp.eq.s32.totalorder %s10, 0
      %p30 = por %p28, %p29
      %p31 = scmp.ne.s32.totalorder %s20, %s23
      %p32 = scmp.eq.s32.totalorder %s15, 5
      %p33 = por %p31, %p32
      %p34 = scmp.ne.s32.totalorder %s23, %s24
      %p35 = scmp.eq.s32.totalorder %s15, 0
      %p36 = por %p34, %p35
      %p37 = scmp.ne.s32.totalorder %s23, %s24
      %p38 = scmp.eq.s32.totalorder %s16, 5
      %p39 = por %p37, %p38
      %p41 = scmp.ne.s32.totalorder %s24, %s40
      %p42 = scmp.eq.s32.totalorder %s16, 0
      %p43 = por %p41, %p42
      %s44 = ssub.s32 %s10, %s17
      %p45 = scmp.eq.s32.totalorder %s44, 0
      %s47 = sadd.s32 %s46, 1
      %s48 = scalar_select %p45, %s46, %s47
      %p51 = pneg %p45
      %p52 = scmp.eq.s32.totalorder %s10, 5
      %p53 = por %p51, %p52
      %p54 = scmp.ne.s32.totalorder %s46, %s49
      %p55 = scmp.eq.s32.totalorder %s10, 0
      %p56 = por %p54, %p55
      %p57 = scmp.ne.s32.totalorder %s46, %s49
      %p58 = scmp.eq.s32.totalorder %s15, 5
      %p59 = por %p57, %p58
      %p60 = scmp.ne.s32.totalorder %s49, %s50
      %p61 = scmp.eq.s32.totalorder %s15, 0
      %p62 = por %p60, %p61
      %p63 = scmp.ne.s32.totalorder %s49, %s50
      %p64 = scmp.eq.s32.totalorder %s16, 5
      %p65 = por %p63, %p64
      %p67 = scmp.ne.s32.totalorder %s50, %s66
      %p68 = scmp.eq.s32.totalorder %s16, 0
      %p69 = por %p67, %p68
      %s70 = ssub.s32 %s10, %s17
      %p71 = scmp.eq.s32.totalorder %s70, 0
      %s73 = sadd.s32 %s72, 1
      %s74 = scalar_select %p71, %s72, %s73
      %p77 = pneg %p71
      %p78 = scmp.eq.s32.totalorder %s10, 5
      %p79 = por %p77, %p78
      %p80 = scmp.ne.s32.totalorder %s72, %s75
      %p81 = scmp.eq.s32.totalorder %s10, 0
      %p82 = por %p80, %p81
      %p83 = scmp.ne.s32.totalorder %s72, %s75
      %p84 = scmp.eq.s32.totalorder %s15, 5
      %p85 = por %p83, %p84
      %p86 = scmp.ne.s32.totalorder %s75, %s76
      %p87 = scmp.eq.s32.totalorder %s15, 0
      %p88 = por %p86, %p87
      %p89 = scmp.ne.s32.totalorder %s75, %s76
      %p90 = scmp.eq.s32.totalorder %s16, 5
      %p91 = por %p89, %p90
      %p93 = scmp.ne.s32.totalorder %s76, %s92
      %p94 = scmp.eq.s32.totalorder %s16, 0
      %p95 = por %p93, %p94
      %s96 = ssub.s32 %s10, %s17
      %p97 = scmp.eq.s32.totalorder %s96, 0
      %s99 = sadd.s32 %s98, 1
      %s100 = scalar_select %p97, %s98, %s99
      %p103 = pneg %p97
      %p104 = scmp.eq.s32.totalorder %s10, 5
      %p105 = por %p103, %p104
      %p106 = scmp.ne.s32.totalorder %s98, %s101
      %p107 = scmp.eq.s32.totalorder %s10, 0
      %p108 = por %p106, %p107
      %p109 = scmp.ne.s32.totalorder %s98, %s101
      %p110 = scmp.eq.s32.totalorder %s15, 5
      %p111 = por %p109, %p110
      %p112 = scmp.ne.s32.totalorder %s101, %s102
      %p113 = scmp.eq.s32.totalorder %s15, 0
      %p114 = por %p112, %p113
      %p115 = scmp.ne.s32.totalorder %s101, %s102
      %p116 = scmp.eq.s32.totalorder %s16, 5
      %p117 = por %p115, %p116
      %p119 = scmp.ne.s32.totalorder %s102, %s118
      %p120 = scmp.eq.s32.totalorder %s16, 0
      %p121 = por %p119, %p120
      %s122 = ssub.s32 %s10, %s17
      %p123 = scmp.eq.s32.totalorder %s122, 0
      %s125 = sadd.s32 %s124, 1
      %s126 = scalar_select %p123, %s124, %s125
      %p129 = pneg %p123
      %p130 = scmp.eq.s32.totalorder %s10, 5
      %p131 = por %p129, %p130
      %p132 = scmp.ne.s32.totalorder %s124, %s127
      %p133 = scmp.eq.s32.totalorder %s10, 0
      %p134 = por %p132, %p133
      %p135 = scmp.ne.s32.totalorder %s124, %s127
      %p136 = scmp.eq.s32.totalorder %s15, 5
      %p137 = por %p135, %p136
      %p138 = scmp.ne.s32.totalorder %s127, %s128
      %p139 = scmp.eq.s32.totalorder %s15, 0
      %p140 = por %p138, %p139
      %p141 = scmp.ne.s32.totalorder %s127, %s128
      %p142 = scmp.eq.s32.totalorder %s16, 5
      %p143 = por %p141, %p142
      %p145 = scmp.ne.s32.totalorder %s128, %s144
      %p146 = scmp.eq.s32.totalorder %s16, 0
      %p147 = por %p145, %p146
      %p148 = scmp.le.s32.totalorder 1, %s10
      %p149 = scmp.lt.s32.totalorder %s10, 7
      %p150 = pnand %p148, %p149
      %p151 = pneg %p150
      // Predicated region
      $region9: #{dwconv_bn.1} parent=5 // pred_check
        _
      $region10: #{dwconv_bn.1} parent=5 // pred_check_branch
        %153 = sbr.rel (%p150) target = $region12
      $region11: #{dwconv_bn.1} parent=5 // pred_region
        %s154 = ssub.s32 %s10, 1
      $region12: #{dwconv_bn.1} parent=5 // pred_fallthru
        _
      %p155 = scmp.lt.s32.totalorder %s10, 6
      // Predicated region
      $region13: #{dwconv_bn.1} parent=5 // pred_check
        %p156 = pneg %p155
      $region14: #{dwconv_bn.1} parent=5 // pred_check_branch
        %158 = sbr.rel (%p156) target = $region16
      $region15: #{dwconv_bn.1} parent=5 // pred_region
        // Predicated region
        $region17: #{dwconv_bn.1} parent=15 // pred_check
          %p159 = pneg %p30
        $region18: #{dwconv_bn.1} parent=15 // pred_check_branch
          %161 = sbr.rel (%p159) target = $region20
        $region19: #{dwconv_bn.1} parent=15 // pred_region
          %s162 = sand.u32 %s20, 1
          %s163 = sand.u32 %s20, 1
          %s164 = smul.addr %s163, 168
          %s165 = scalar_lea.vmem [#allocation3], %s164
          %s166 = smul.u32 3, %s10
          %s167 = smul.addr %s166, 8
          %s168 = scalar_lea.vmem %s0, %s167
          // Predicated region
          $region21: #{dwconv_bn.1} parent=19 // pred_check
            _
          $region22: #{dwconv_bn.1} parent=19 // pred_check_branch
            %170 = sbr.rel (0) target = $region24
          $region23: #{dwconv_bn.1} parent=19 // pred_region
            // Predicated region
            $region25: #{dwconv_bn.1} parent=23 // pred_check
              _
            $region26: #{dwconv_bn.1} parent=23 // pred_check_branch
              %172 = sbr.rel (0) target = $region28
            $region27: #{dwconv_bn.1} parent=23 // pred_region
              loop: start=0, step=1, limit=1
              $region29: #{dwconv_bn.1} parent=27 // loop_pre_header
                _
              $region30: #{dwconv_bn.1} parent=27 // loop_header
                %s174 = sphi 0, %s178
                %p175 = scmp.ge.s32.totalorder %s174, 1
                %s179 = sphi %s168, %s168
                %s180 = sphi %s165, %s165
              $region31: #{dwconv_bn.1} parent=27 // loop_header_branch
                %177 = sbr.rel (%p175) target = $region35
              $region32: #{dwconv_bn.1} parent=27 // loop_body
                %v181 = vld [vmem:[%s179] sm:$0xff]
                %182 = vst [vmem:[%s180] sm:$0xff] %v181
                %v183 = vld [vmem:[%s179 + $0x8] sm:$0xff]
                %184 = vst [vmem:[%s180 + $0x8] sm:$0xff] %v183
                %v185 = vld [vmem:[%s179 + $0x10] sm:$0xff]
                %186 = vst [vmem:[%s180 + $0x10] sm:$0xff] %v185
                %v187 = vld [vmem:[%s179 + $0x90] sm:$0xff]
                %188 = vst [vmem:[%s180 + $0x18] sm:$0xff] %v187
                %v189 = vld [vmem:[%s179 + $0x98] sm:$0xff]
                %190 = vst [vmem:[%s180 + $0x20] sm:$0xff] %v189
                %v191 = vld [vmem:[%s179 + $0xa0] sm:$0xff]
                %192 = vst [vmem:[%s180 + $0x28] sm:$0xff] %v191
                %v193 = vld [vmem:[%s179 + $0x120] sm:$0xff]
                %194 = vst [vmem:[%s180 + $0x30] sm:$0xff] %v193
                %v195 = vld [vmem:[%s179 + $0x128] sm:$0xff]
                %196 = vst [vmem:[%s180 + $0x38] sm:$0xff] %v195
                %v197 = vld [vmem:[%s179 + $0x130] sm:$0xff]
                %198 = vst [vmem:[%s180 + $0x40] sm:$0xff] %v197
                %v199 = vld [vmem:[%s179 + $0x1b0] sm:$0xff]
                %200 = vst [vmem:[%s180 + $0x48] sm:$0xff] %v199
                %v201 = vld [vmem:[%s179 + $0x1b8] sm:$0xff]
                %202 = vst [vmem:[%s180 + $0x50] sm:$0xff] %v201
                %v203 = vld [vmem:[%s179 + $0x1c0] sm:$0xff]
                %204 = vst [vmem:[%s180 + $0x58] sm:$0xff] %v203
                %v205 = vld [vmem:[%s179 + $0x240] sm:$0xff]
                %206 = vst [vmem:[%s180 + $0x60] sm:$0xff] %v205
                %v207 = vld [vmem:[%s179 + $0x248] sm:$0xff]
                %208 = vst [vmem:[%s180 + $0x68] sm:$0xff] %v207
                %v209 = vld [vmem:[%s179 + $0x250] sm:$0xff]
                %210 = vst [vmem:[%s180 + $0x70] sm:$0xff] %v209
                %v211 = vld [vmem:[%s179 + $0x2d0] sm:$0xff]
                %212 = vst [vmem:[%s180 + $0x78] sm:$0xff] %v211
                %v213 = vld [vmem:[%s179 + $0x2d8] sm:$0xff]
                %214 = vst [vmem:[%s180 + $0x80] sm:$0xff] %v213
                %v215 = vld [vmem:[%s179 + $0x2e0] sm:$0xff]
                %216 = vst [vmem:[%s180 + $0x88] sm:$0xff] %v215
                %v217 = vld [vmem:[%s179 + $0x360] sm:$0xff]
                %218 = vst [vmem:[%s180 + $0x90] sm:$0xff] %v217
                %v219 = vld [vmem:[%s179 + $0x368] sm:$0xff]
                %220 = vst [vmem:[%s180 + $0x98] sm:$0xff] %v219
                %v221 = vld [vmem:[%s179 + $0x370] sm:$0xff]
                %222 = vst [vmem:[%s180 + $0xa0] sm:$0xff] %v221
              $region33: #{dwconv_bn.1} parent=27 // loop_footer
                %s178 = sadd.s32 1, %s174
              $region34: #{dwconv_bn.1} parent=27 // loop_footer_branch
                %173 = sbr.rel target = $region30
              $region35: #{dwconv_bn.1} parent=27 // loop_exit
                _
            $region28: #{dwconv_bn.1} parent=23 // pred_fallthru
              _
            // Predicated region
            $region36: #{dwconv_bn.1} parent=23 // pred_check
              _
            $region37: #{dwconv_bn.1} parent=23 // pred_check_branch
              %224 = sbr.rel target = $region39
            $region38: #{dwconv_bn.1} parent=23 // pred_region
              _
            $region39: #{dwconv_bn.1} parent=23 // pred_fallthru
              _
          $region24: #{dwconv_bn.1} parent=19 // pred_fallthru
            _
          %225 = vnop
        $region20: #{dwconv_bn.1} parent=15 // pred_fallthru
          _
        // Predicated region
        $region40: #{dwconv_bn.1} parent=15 // pred_check
          %p226 = pneg %p56
        $region41: #{dwconv_bn.1} parent=15 // pred_check_branch
          %228 = sbr.rel (%p226) target = $region43
        $region42: #{dwconv_bn.1} parent=15 // pred_region
          %s229 = sand.u32 %s46, 1
          %s230 = sand.u32 %s46, 1
          %s231 = smul.addr %s230, 96
          %s232 = scalar_lea.vmem [#allocation4], %s231
          %s233 = smul.u32 3, %s10
          %s234 = smul.addr %s233, 8
          %s235 = scalar_lea.vmem %s1, %s234
          // Predicated region
          $region44: #{dwconv_bn.1} parent=42 // pred_check
            _
          $region45: #{dwconv_bn.1} parent=42 // pred_check_branch
            %237 = sbr.rel (0) target = $region47
          $region46: #{dwconv_bn.1} parent=42 // pred_region
            // Predicated region
            $region48: #{dwconv_bn.1} parent=46 // pred_check
              _
            $region49: #{dwconv_bn.1} parent=46 // pred_check_branch
              %239 = sbr.rel (0) target = $region51
            $region50: #{dwconv_bn.1} parent=46 // pred_region
              loop: start=0, step=1, limit=1
              $region52: #{dwconv_bn.1} parent=50 // loop_pre_header
                _
              $region53: #{dwconv_bn.1} parent=50 // loop_header
                %s241 = sphi 0, %s245
                %p242 = scmp.ge.s32.totalorder %s241, 1
                %s246 = sphi %s235, %s235
                %s247 = sphi %s232, %s232
              $region54: #{dwconv_bn.1} parent=50 // loop_header_branch
                %244 = sbr.rel (%p242) target = $region58
              $region55: #{dwconv_bn.1} parent=50 // loop_body
                %v248 = vld [vmem:[%s246] sm:$0xff]
                %249 = vst [vmem:[%s247] sm:$0xff] %v248
                %v250 = vld [vmem:[%s246 + $0x8] sm:$0xff]
                %251 = vst [vmem:[%s247 + $0x8] sm:$0xff] %v250
                %v252 = vld [vmem:[%s246 + $0x10] sm:$0xff]
                %253 = vst [vmem:[%s247 + $0x10] sm:$0xff] %v252
                %v254 = vld [vmem:[%s246 + $0x90] sm:$0xff]
                %255 = vst [vmem:[%s247 + $0x18] sm:$0xff] %v254
                %v256 = vld [vmem:[%s246 + $0x98] sm:$0xff]
                %257 = vst [vmem:[%s247 + $0x20] sm:$0xff] %v256
                %v258 = vld [vmem:[%s246 + $0xa0] sm:$0xff]
                %259 = vst [vmem:[%s247 + $0x28] sm:$0xff] %v258
                %v260 = vld [vmem:[%s246 + $0x120] sm:$0xff]
                %261 = vst [vmem:[%s247 + $0x30] sm:$0xff] %v260
                %v262 = vld [vmem:[%s246 + $0x128] sm:$0xff]
                %263 = vst [vmem:[%s247 + $0x38] sm:$0xff] %v262
                %v264 = vld [vmem:[%s246 + $0x130] sm:$0xff]
                %265 = vst [vmem:[%s247 + $0x40] sm:$0xff] %v264
                %v266 = vld [vmem:[%s246 + $0x1b0] sm:$0xff]
                %267 = vst [vmem:[%s247 + $0x48] sm:$0xff] %v266
                %v268 = vld [vmem:[%s246 + $0x1b8] sm:$0xff]
                %269 = vst [vmem:[%s247 + $0x50] sm:$0xff] %v268
                %v270 = vld [vmem:[%s246 + $0x1c0] sm:$0xff]
                %271 = vst [vmem:[%s247 + $0x58] sm:$0xff] %v270
              $region56: #{dwconv_bn.1} parent=50 // loop_footer
                %s245 = sadd.s32 1, %s241
              $region57: #{dwconv_bn.1} parent=50 // loop_footer_branch
                %240 = sbr.rel target = $region53
              $region58: #{dwconv_bn.1} parent=50 // loop_exit
                _
            $region51: #{dwconv_bn.1} parent=46 // pred_fallthru
              _
            // Predicated region
            $region59: #{dwconv_bn.1} parent=46 // pred_check
              _
            $region60: #{dwconv_bn.1} parent=46 // pred_check_branch
              %273 = sbr.rel target = $region62
            $region61: #{dwconv_bn.1} parent=46 // pred_region
              _
            $region62: #{dwconv_bn.1} parent=46 // pred_fallthru
              _
          $region47: #{dwconv_bn.1} parent=42 // pred_fallthru
            _
          %274 = vnop
        $region43: #{dwconv_bn.1} parent=15 // pred_fallthru
          _
        // Predicated region
        $region63: #{dwconv_bn.1} parent=15 // pred_check
          %p275 = pneg %p82
        $region64: #{dwconv_bn.1} parent=15 // pred_check_branch
          %277 = sbr.rel (%p275) target = $region66
        $region65: #{dwconv_bn.1} parent=15 // pred_region
          %s278 = smul.u32 3, %s10
          %p279 = scmp.lt.s32.totalorder %s278, 17
          %s280 = scalar_select %p279, %s278, 17
          %s281 = scalar_lea.vmem %s2, %s280
          %s282 = smul.u32 3, %s10
        $region66: #{dwconv_bn.1} parent=15 // pred_fallthru
          _
        // Predicated region
        $region67: #{dwconv_bn.1} parent=15 // pred_check
          %p283 = pneg %p108
        $region68: #{dwconv_bn.1} parent=15 // pred_check_branch
          %285 = sbr.rel (%p283) target = $region70
        $region69: #{dwconv_bn.1} parent=15 // pred_region
          %s286 = smul.u32 3, %s10
          %p287 = scmp.lt.s32.totalorder %s286, 17
          %s288 = scalar_select %p287, %s286, 17
          %s289 = scalar_lea.vmem %s3, %s288
          %s290 = smul.u32 3, %s10
        $region70: #{dwconv_bn.1} parent=15 // pred_fallthru
          _
      $region16: #{dwconv_bn.1} parent=5 // pred_fallthru
        _
      %p291 = scmp.le.s32.totalorder 1, %s10
      %p292 = scmp.lt.s32.totalorder %s10, 7
      %p293 = pnand %p291, %p292
      %p294 = pneg %p293
      // Predicated region
      $region71: #{dwconv_bn.1} parent=5 // pred_check
        _
      $region72: #{dwconv_bn.1} parent=5 // pred_check_branch
        %296 = sbr.rel (%p293) target = $region74
      $region73: #{dwconv_bn.1} parent=5 // pred_region
        %s297 = ssub.s32 %s10, 1
        %s298 = sand.u32 %s23, 1
        %s299 = sand.u32 %s23, 1
        %s300 = smul.addr %s299, 168
        %s301 = scalar_lea.vmem [#allocation3], %s300
        // Predicated region
        $region75: #{dwconv_bn.1} parent=73 // pred_check
          %p302 = pneg %p36
        $region76: #{dwconv_bn.1} parent=73 // pred_check_branch
          %304 = sbr.rel (%p302) target = $region78
        $region77: #{dwconv_bn.1} parent=73 // pred_region
          _
        $region78: #{dwconv_bn.1} parent=73 // pred_fallthru
          _
        %s305 = sand.u32 %s49, 1
        %s306 = sand.u32 %s49, 1
        %s307 = smul.addr %s306, 96
        %s308 = scalar_lea.vmem [#allocation4], %s307
        // Predicated region
        $region79: #{dwconv_bn.1} parent=73 // pred_check
          %p309 = pneg %p62
        $region80: #{dwconv_bn.1} parent=73 // pred_check_branch
          %311 = sbr.rel (%p309) target = $region82
        $region81: #{dwconv_bn.1} parent=73 // pred_region
          _
        $region82: #{dwconv_bn.1} parent=73 // pred_fallthru
          _
        %s312 = sand.u32 %s23, 1
        %s313 = sand.u32 %s23, 1
        %s314 = smul.addr %s313, 168
        %s315 = scalar_lea.vmem [#allocation3], %s314
        %p316 = pneg %p36
        %p317 = pneg %p33
        %s318 = sand.u32 %s49, 1
        %s319 = sand.u32 %s49, 1
        %s320 = smul.addr %s319, 96
        %s321 = scalar_lea.vmem [#allocation4], %s320
        %p322 = pneg %p62
        %p323 = pneg %p59
        %s324 = smul.u32 3, %s15
        %p325 = scmp.lt.s32.totalorder %s324, 17
        %s326 = scalar_select %p325, %s324, 17
        %s327 = scalar_lea.vmem %s2, %s326
        %p328 = pneg %p88
        %p329 = pneg %p85
        %s330 = smul.u32 3, %s15
        %p331 = scmp.lt.s32.totalorder %s330, 17
        %s332 = scalar_select %p331, %s330, 17
        %s333 = scalar_lea.vmem %s3, %s332
        %p334 = pneg %p114
        %p335 = pneg %p111
        %p336 = pneg %p140
        %p337 = pneg %p137
        %s338 = sand.u32 %s127, 1
        %s339 = sand.u32 %s127, 1
        %s340 = smul.addr %s339, 168
        %s341 = scalar_lea.vmem [#allocation5], %s340
        %s342 = smul.u32 3, %s15
        %s343 = smul.u32 3, %s15
        %s344 = smul.u32 3, %s15
        %p345 = scmp.lt.s32.totalorder %s344, 17
        %s346 = scalar_select %p345, %s344, 17
        %s347 = scalar_lea.vmem %s2, %s346
        %s348 = smul.u32 3, %s15
        %s349 = smul.u32 3, %s15
        %p350 = scmp.lt.s32.totalorder %s349, 17
        %s351 = scalar_select %p350, %s349, 17
        %s352 = scalar_lea.vmem %s3, %s351
        %s353 = smul.u32 3, %s15
        %s354 = smul.u32 3, %s15
        %355 = vst [vmem:[#allocation2] sm:$0xff] 0.0
        %356 = vst [vmem:[#allocation2 + $0x8] sm:$0xff] 0.0
        %357 = vst [vmem:[#allocation2 + $0x10] sm:$0xff] 0.0
        %358 = vst [vmem:[#allocation2 + $0x18] sm:$0x7] 0.0
        %359 = vst [vmem:[#allocation2 + $0x20] sm:$0x7] 0.0
        %360 = vst [vmem:[#allocation2 + $0x28] sm:$0x7] 0.0
        %361 = vst [vmem:[#allocation2 + $0x30] sm:$0xff] 0.0
        %362 = vst [vmem:[#allocation2 + $0x38] sm:$0xff] 0.0
        %363 = vst [vmem:[#allocation2 + $0x40] sm:$0xff] 0.0
        %364 = vst [vmem:[#allocation2 + $0x48] sm:$0x7] 0.0
        %365 = vst [vmem:[#allocation2 + $0x50] sm:$0x7] 0.0
        %366 = vst [vmem:[#allocation2 + $0x58] sm:$0x7] 0.0
        %367 = vst [vmem:[#allocation2 + $0x60] sm:$0xff] 0.0
        %368 = vst [vmem:[#allocation2 + $0x68] sm:$0xff] 0.0
        %369 = vst [vmem:[#allocation2 + $0x70] sm:$0xff] 0.0
        %370 = vst [vmem:[#allocation2 + $0x78] sm:$0x7] 0.0
        %371 = vst [vmem:[#allocation2 + $0x80] sm:$0x7] 0.0
        %372 = vst [vmem:[#allocation2 + $0x88] sm:$0x7] 0.0
        %373 = vst [vmem:[#allocation2 + $0x90] sm:$0xff] 0.0
        %374 = vst [vmem:[#allocation2 + $0x98] sm:$0xff] 0.0
        %375 = vst [vmem:[#allocation2 + $0xa0] sm:$0xff] 0.0
        %376 = vst [vmem:[#allocation2 + $0xa8] sm:$0x7] 0.0
        %377 = vst [vmem:[#allocation2 + $0xb0] sm:$0x7] 0.0
        %378 = vst [vmem:[#allocation2 + $0xb8] sm:$0x7] 0.0
        %379 = vst [vmem:[#allocation2 + $0xc0] sm:$0xff] 0.0
        %380 = vst [vmem:[#allocation2 + $0xc8] sm:$0xff] 0.0
        %381 = vst [vmem:[#allocation2 + $0xd0] sm:$0xff] 0.0
        %382 = vst [vmem:[#allocation2 + $0xd8] sm:$0x7] 0.0
        %383 = vst [vmem:[#allocation2 + $0xe0] sm:$0x7] 0.0
        %384 = vst [vmem:[#allocation2 + $0xe8] sm:$0x7] 0.0
        %385 = vst [vmem:[#allocation2 + $0xf0] sm:$0xff] 0.0
        %386 = vst [vmem:[#allocation2 + $0xf8] sm:$0xff] 0.0
        %387 = vst [vmem:[#allocation2 + $0x100] sm:$0xff] 0.0
        %388 = vst [vmem:[#allocation2 + $0x108] sm:$0x7] 0.0
        %389 = vst [vmem:[#allocation2 + $0x110] sm:$0x7] 0.0
        %390 = vst [vmem:[#allocation2 + $0x118] sm:$0x7] 0.0
        %391 = vst [vmem:[#allocation2 + $0x120] sm:$0xff] 0.0
        %392 = vst [vmem:[#allocation2 + $0x128] sm:$0xff] 0.0
        %393 = vst [vmem:[#allocation2 + $0x130] sm:$0xff] 0.0
        %394 = vst [vmem:[#allocation2 + $0x138] sm:$0x7] 0.0
        %395 = vst [vmem:[#allocation2 + $0x140] sm:$0x7] 0.0
        %396 = vst [vmem:[#allocation2 + $0x148] sm:$0x7] 0.0
        %397 = vst [vmem:[#allocation2 + $0x150] sm:$0xff] 0.0
        %398 = vst [vmem:[#allocation2 + $0x158] sm:$0xff] 0.0
        %399 = vst [vmem:[#allocation2 + $0x160] sm:$0xff] 0.0
        %400 = vst [vmem:[#allocation2 + $0x168] sm:$0x7] 0.0
        %401 = vst [vmem:[#allocation2 + $0x170] sm:$0x7] 0.0
        %402 = vst [vmem:[#allocation2 + $0x178] sm:$0x7] 0.0
        %403 = vst [vmem:[#allocation2 + $0x180] sm:$0xff] 0.0
        %404 = vst [vmem:[#allocation2 + $0x188] sm:$0xff] 0.0
        %405 = vst [vmem:[#allocation2 + $0x190] sm:$0xff] 0.0
        %406 = vst [vmem:[#allocation2 + $0x198] sm:$0x7] 0.0
        %407 = vst [vmem:[#allocation2 + $0x1a0] sm:$0x7] 0.0
        %408 = vst [vmem:[#allocation2 + $0x1a8] sm:$0x7] 0.0
        %409 = vst [vmem:[#allocation2 + $0x1b0] sm:$0xff] 0.0
        %410 = vst [vmem:[#allocation2 + $0x1b8] sm:$0xff] 0.0
        %411 = vst [vmem:[#allocation2 + $0x1c0] sm:$0xff] 0.0
        %412 = vst [vmem:[#allocation2 + $0x1c8] sm:$0x7] 0.0
        %413 = vst [vmem:[#allocation2 + $0x1d0] sm:$0x7] 0.0
        %414 = vst [vmem:[#allocation2 + $0x1d8] sm:$0x7] 0.0
        %415 = vst [vmem:[#allocation2 + $0x1e0] sm:$0xff] 0.0
        %416 = vst [vmem:[#allocation2 + $0x1e8] sm:$0xff] 0.0
        %417 = vst [vmem:[#allocation2 + $0x1f0] sm:$0xff] 0.0
        %418 = vst [vmem:[#allocation2 + $0x1f8] sm:$0x7] 0.0
        %419 = vst [vmem:[#allocation2 + $0x200] sm:$0x7] 0.0
        %420 = vst [vmem:[#allocation2 + $0x208] sm:$0x7] 0.0
        %v421 = vld [vmem:[%s301] sm:$0x7f]
        %v422 = vld [vmem:[%s301 + $0x8] sm:$0x7f]
        %v423 = vld [vmem:[%s301 + $0x10] sm:$0x7f]
        %v424 = vld [vmem:[%s301 + $0x18] sm:$0x7f]
        %v425 = vld [vmem:[%s301 + $0x20] sm:$0x7f]
        %v426 = vld [vmem:[%s301 + $0x28] sm:$0x7f]
        %v427 = vld [vmem:[%s301 + $0x30] sm:$0x7f]
        %v428 = vld [vmem:[%s301 + $0x38] sm:$0x7f]
        %v429 = vld [vmem:[%s301 + $0x40] sm:$0x7f]
        %v430 = vld [vmem:[%s301 + $0x48] sm:$0x7f]
        %v431 = vld [vmem:[%s301 + $0x50] sm:$0x7f]
        %v432 = vld [vmem:[%s301 + $0x58] sm:$0x7f]
        %v433 = vld [vmem:[%s301 + $0x60] sm:$0x7f]
        %v434 = vld [vmem:[%s301 + $0x68] sm:$0x7f]
        %v435 = vld [vmem:[%s301 + $0x70] sm:$0x7f]
        %v436 = vld [vmem:[%s301 + $0x78] sm:$0x7f]
        %v437 = vld [vmem:[%s301 + $0x80] sm:$0x7f]
        %v438 = vld [vmem:[%s301 + $0x88] sm:$0x7f]
        %v439 = vld [vmem:[%s301 + $0x90] sm:$0x7f]
        %v440 = vld [vmem:[%s301 + $0x98] sm:$0x7f]
        %v441 = vld [vmem:[%s301 + $0xa0] sm:$0x7f]
        %v463 = vrot.slane %v421, 6
        %v464 = vrot.slane %v422, 6
        %v465 = vrot.slane %v423, 6
        %v466 = vrot.slane %v424, 6
        %v467 = vrot.slane %v425, 6
        %v468 = vrot.slane %v426, 6
        %v469 = vrot.slane %v427, 6
        %v470 = vrot.slane %v428, 6
        %v471 = vrot.slane %v429, 6
        %v472 = vrot.slane %v430, 6
        %v473 = vrot.slane %v431, 6
        %v474 = vrot.slane %v432, 6
        %v475 = vrot.slane %v433, 6
        %v476 = vrot.slane %v434, 6
        %v477 = vrot.slane %v435, 6
        %v478 = vrot.slane %v436, 6
        %v479 = vrot.slane %v437, 6
        %v480 = vrot.slane %v438, 6
        %v481 = vrot.slane %v439, 6
        %v482 = vrot.slane %v440, 6
        %v483 = vrot.slane %v441, 6
        %s505 = scalar_lea.vmem [#allocation2], 96
        %506 = vst [vmem:[%s505] sm:$0xfc] %v463
        %507 = vst [vmem:[%s505 + $0x8] sm:$0xfc] %v464
        %508 = vst [vmem:[%s505 + $0x10] sm:$0xfc] %v465
        %509 = vst [vmem:[%s505 + $0x18] sm:$0x1] %v463
        %510 = vst [vmem:[%s505 + $0x20] sm:$0x1] %v464
        %511 = vst [vmem:[%s505 + $0x28] sm:$0x1] %v465
        %512 = vst [vmem:[%s505 + $0x30] sm:$0xfc] %v466
        %513 = vst [vmem:[%s505 + $0x38] sm:$0xfc] %v467
        %514 = vst [vmem:[%s505 + $0x40] sm:$0xfc] %v468
        %515 = vst [vmem:[%s505 + $0x48] sm:$0x1] %v466
        %516 = vst [vmem:[%s505 + $0x50] sm:$0x1] %v467
        %517 = vst [vmem:[%s505 + $0x58] sm:$0x1] %v468
        %518 = vst [vmem:[%s505 + $0x60] sm:$0xfc] %v469
        %519 = vst [vmem:[%s505 + $0x68] sm:$0xfc] %v470
        %520 = vst [vmem:[%s505 + $0x70] sm:$0xfc] %v471
        %521 = vst [vmem:[%s505 + $0x78] sm:$0x1] %v469
        %522 = vst [vmem:[%s505 + $0x80] sm:$0x1] %v470
        %523 = vst [vmem:[%s505 + $0x88] sm:$0x1] %v471
        %524 = vst [vmem:[%s505 + $0x90] sm:$0xfc] %v472
        %525 = vst [vmem:[%s505 + $0x98] sm:$0xfc] %v473
        %526 = vst [vmem:[%s505 + $0xa0] sm:$0xfc] %v474
        %527 = vst [vmem:[%s505 + $0xa8] sm:$0x1] %v472
        %528 = vst [vmem:[%s505 + $0xb0] sm:$0x1] %v473
        %529 = vst [vmem:[%s505 + $0xb8] sm:$0x1] %v474
        %530 = vst [vmem:[%s505 + $0xc0] sm:$0xfc] %v475
        %531 = vst [vmem:[%s505 + $0xc8] sm:$0xfc] %v476
        %532 = vst [vmem:[%s505 + $0xd0] sm:$0xfc] %v477
        %533 = vst [vmem:[%s505 + $0xd8] sm:$0x1] %v475
        %534 = vst [vmem:[%s505 + $0xe0] sm:$0x1] %v476
        %535 = vst [vmem:[%s505 + $0xe8] sm:$0x1] %v477
        %536 = vst [vmem:[%s505 + $0xf0] sm:$0xfc] %v478
        %537 = vst [vmem:[%s505 + $0xf8] sm:$0xfc] %v479
        %538 = vst [vmem:[%s505 + $0x100] sm:$0xfc] %v480
        %539 = vst [vmem:[%s505 + $0x108] sm:$0x1] %v478
        %540 = vst [vmem:[%s505 + $0x110] sm:$0x1] %v479
        %541 = vst [vmem:[%s505 + $0x118] sm:$0x1] %v480
        %542 = vst [vmem:[%s505 + $0x120] sm:$0xfc] %v481
        %543 = vst [vmem:[%s505 + $0x128] sm:$0xfc] %v482
        %544 = vst [vmem:[%s505 + $0x130] sm:$0xfc] %v483
        %545 = vst [vmem:[%s505 + $0x138] sm:$0x1] %v481
        %546 = vst [vmem:[%s505 + $0x140] sm:$0x1] %v482
        %547 = vst [vmem:[%s505 + $0x148] sm:$0x1] %v483
        %v548 = vld [vmem:[#allocation2] sm:$0x7f]
        %v549 = vld [vmem:[#allocation2 + $0x8] sm:$0x7f]
        %v550 = vld [vmem:[#allocation2 + $0x10] sm:$0x7f]
        %v551 = vld [vmem:[#allocation2 + $0x30] sm:$0x7f]
        %v552 = vld [vmem:[#allocation2 + $0x38] sm:$0x7f]
        %v553 = vld [vmem:[#allocation2 + $0x40] sm:$0x7f]
        %v554 = vld [vmem:[#allocation2 + $0x60] sm:$0x7f]
        %v555 = vld [vmem:[#allocation2 + $0x68] sm:$0x7f]
        %v556 = vld [vmem:[#allocation2 + $0x70] sm:$0x7f]
        %v557 = vld [vmem:[#allocation2 + $0x90] sm:$0x7f]
        %v558 = vld [vmem:[#allocation2 + $0x98] sm:$0x7f]
        %v559 = vld [vmem:[#allocation2 + $0xa0] sm:$0x7f]
        %v560 = vld [vmem:[#allocation2 + $0xc0] sm:$0x7f]
        %v561 = vld [vmem:[#allocation2 + $0xc8] sm:$0x7f]
        %v562 = vld [vmem:[#allocation2 + $0xd0] sm:$0x7f]
        %v563 = vld [vmem:[#allocation2 + $0xf0] sm:$0x7f]
        %v564 = vld [vmem:[#allocation2 + $0xf8] sm:$0x7f]
        %v565 = vld [vmem:[#allocation2 + $0x100] sm:$0x7f]
        %v566 = vld [vmem:[#allocation2 + $0x120] sm:$0x7f]
        %v567 = vld [vmem:[#allocation2 + $0x128] sm:$0x7f]
        %v568 = vld [vmem:[#allocation2 + $0x130] sm:$0x7f]
        %v569 = vld [vmem:[%s308] ss:$8 sm:$0x7]
        %v571 = vperm.slane %v569, 0
        %v572 = vperm.slane %v569, 1
        %v573 = vperm.slane %v569, 2
        %v577 = vmul.f32 %v548, %v571
        %v578 = vmul.f32 %v549, %v572
        %v579 = vmul.f32 %v550, %v573
        %v580 = vmul.f32 %v551, %v571
        %v581 = vmul.f32 %v552, %v572
        %v582 = vmul.f32 %v553, %v573
        %v583 = vmul.f32 %v554, %v571
        %v584 = vmul.f32 %v555, %v572
        %v585 = vmul.f32 %v556, %v573
        %v586 = vmul.f32 %v557, %v571
        %v587 = vmul.f32 %v558, %v572
        %v588 = vmul.f32 %v559, %v573
        %v589 = vmul.f32 %v560, %v571
        %v590 = vmul.f32 %v561, %v572
        %v591 = vmul.f32 %v562, %v573
        %v592 = vmul.f32 %v563, %v571
        %v593 = vmul.f32 %v564, %v572
        %v594 = vmul.f32 %v565, %v573
        %v595 = vmul.f32 %v566, %v571
        %v596 = vmul.f32 %v567, %v572
        %v597 = vmul.f32 %v568, %v573
        %v598 = vadd.f32 %v577, 0.0
        %v599 = vadd.f32 %v578, 0.0
        %v600 = vadd.f32 %v579, 0.0
        %v601 = vadd.f32 %v580, 0.0
        %v602 = vadd.f32 %v581, 0.0
        %v603 = vadd.f32 %v582, 0.0
        %v604 = vadd.f32 %v583, 0.0
        %v605 = vadd.f32 %v584, 0.0
        %v606 = vadd.f32 %v585, 0.0
        %v607 = vadd.f32 %v586, 0.0
        %v608 = vadd.f32 %v587, 0.0
        %v609 = vadd.f32 %v588, 0.0
        %v610 = vadd.f32 %v589, 0.0
        %v611 = vadd.f32 %v590, 0.0
        %v612 = vadd.f32 %v591, 0.0
        %v613 = vadd.f32 %v592, 0.0
        %v614 = vadd.f32 %v593, 0.0
        %v615 = vadd.f32 %v594, 0.0
        %v616 = vadd.f32 %v595, 0.0
        %v617 = vadd.f32 %v596, 0.0
        %v618 = vadd.f32 %v597, 0.0
        %v619 = vld [vmem:[#allocation2] sm:$0xfe]
        %v620 = vld [vmem:[#allocation2 + $0x8] sm:$0xfe]
        %v621 = vld [vmem:[#allocation2 + $0x10] sm:$0xfe]
        %v622 = vld [vmem:[#allocation2 + $0x30] sm:$0xfe]
        %v623 = vld [vmem:[#allocation2 + $0x38] sm:$0xfe]
        %v624 = vld [vmem:[#allocation2 + $0x40] sm:$0xfe]
        %v625 = vld [vmem:[#allocation2 + $0x60] sm:$0xfe]
        %v626 = vld [vmem:[#allocation2 + $0x68] sm:$0xfe]
        %v627 = vld [vmem:[#allocation2 + $0x70] sm:$0xfe]
        %v628 = vld [vmem:[#allocation2 + $0x90] sm:$0xfe]
        %v629 = vld [vmem:[#allocation2 + $0x98] sm:$0xfe]
        %v630 = vld [vmem:[#allocation2 + $0xa0] sm:$0xfe]
        %v631 = vld [vmem:[#allocation2 + $0xc0] sm:$0xfe]
        %v632 = vld [vmem:[#allocation2 + $0xc8] sm:$0xfe]
        %v633 = vld [vmem:[#allocation2 + $0xd0] sm:$0xfe]
        %v634 = vld [vmem:[#allocation2 + $0xf0] sm:$0xfe]
        %v635 = vld [vmem:[#allocation2 + $0xf8] sm:$0xfe]
        %v636 = vld [vmem:[#allocation2 + $0x100] sm:$0xfe]
        %v637 = vld [vmem:[#allocation2 + $0x120] sm:$0xfe]
        %v638 = vld [vmem:[#allocation2 + $0x128] sm:$0xfe]
        %v639 = vld [vmem:[#allocation2 + $0x130] sm:$0xfe]
        %s640 = scalar_lea.vmem %s308, 1 [#allocation4]
        %v641 = vld [vmem:[%s640] ss:$8 sm:$0x7]
        %v643 = vperm.slane %v641, 0
        %v644 = vperm.slane %v641, 1
        %v645 = vperm.slane %v641, 2
        %v649 = vmul.f32 %v619, %v643
        %v650 = vmul.f32 %v620, %v644
        %v651 = vmul.f32 %v621, %v645
        %v652 = vmul.f32 %v622, %v643
        %v653 = vmul.f32 %v623, %v644
        %v654 = vmul.f32 %v624, %v645
        %v655 = vmul.f32 %v625, %v643
        %v656 = vmul.f32 %v626, %v644
        %v657 = vmul.f32 %v627, %v645
        %v658 = vmul.f32 %v628, %v643
        %v659 = vmul.f32 %v629, %v644
        %v660 = vmul.f32 %v630, %v645
        %v661 = vmul.f32 %v631, %v643
        %v662 = vmul.f32 %v632, %v644
        %v663 = vmul.f32 %v633, %v645
        %v664 = vmul.f32 %v634, %v643
        %v665 = vmul.f32 %v635, %v644
        %v666 = vmul.f32 %v636, %v645
        %v667 = vmul.f32 %v637, %v643
        %v668 = vmul.f32 %v638, %v644
        %v669 = vmul.f32 %v639, %v645
        %v691 = vrot.slane %v649, 1
        %v692 = vrot.slane %v650, 1
        %v693 = vrot.slane %v651, 1
        %v694 = vrot.slane %v652, 1
        %v695 = vrot.slane %v653, 1
        %v696 = vrot.slane %v654, 1
        %v697 = vrot.slane %v655, 1
        %v698 = vrot.slane %v656, 1
        %v699 = vrot.slane %v657, 1
        %v700 = vrot.slane %v658, 1
        %v701 = vrot.slane %v659, 1
        %v702 = vrot.slane %v660, 1
        %v703 = vrot.slane %v661, 1
        %v704 = vrot.slane %v662, 1
        %v705 = vrot.slane %v663, 1
        %v706 = vrot.slane %v664, 1
        %v707 = vrot.slane %v665, 1
        %v708 = vrot.slane %v666, 1
        %v709 = vrot.slane %v667, 1
        %v710 = vrot.slane %v668, 1
        %v711 = vrot.slane %v669, 1
        %v733 = vadd.f32 %v598, %v691
        %v734 = vadd.f32 %v599, %v692
        %v735 = vadd.f32 %v600, %v693
        %v736 = vadd.f32 %v601, %v694
        %v737 = vadd.f32 %v602, %v695
        %v738 = vadd.f32 %v603, %v696
        %v739 = vadd.f32 %v604, %v697
        %v740 = vadd.f32 %v605, %v698
        %v741 = vadd.f32 %v606, %v699
        %v742 = vadd.f32 %v607, %v700
        %v743 = vadd.f32 %v608, %v701
        %v744 = vadd.f32 %v609, %v702
        %v745 = vadd.f32 %v610, %v703
        %v746 = vadd.f32 %v611, %v704
        %v747 = vadd.f32 %v612, %v705
        %v748 = vadd.f32 %v613, %v706
        %v749 = vadd.f32 %v614, %v707
        %v750 = vadd.f32 %v615, %v708
        %v751 = vadd.f32 %v616, %v709
        %v752 = vadd.f32 %v617, %v710
        %v753 = vadd.f32 %v618, %v711
        %v754 = vld [vmem:[#allocation2] sm:$0xfc]
        %v755 = vld [vmem:[#allocation2 + $0x8] sm:$0xfc]
        %v756 = vld [vmem:[#allocation2 + $0x10] sm:$0xfc]
        %v757 = vld [vmem:[#allocation2 + $0x18] sm:$0x1]
        %v758 = vld [vmem:[#allocation2 + $0x20] sm:$0x1]
        %v759 = vld [vmem:[#allocation2 + $0x28] sm:$0x1]
        %v760 = vld [vmem:[#allocation2 + $0x30] sm:$0xfc]
        %v761 = vld [vmem:[#allocation2 + $0x38] sm:$0xfc]
        %v762 = vld [vmem:[#allocation2 + $0x40] sm:$0xfc]
        %v763 = vld [vmem:[#allocation2 + $0x48] sm:$0x1]
        %v764 = vld [vmem:[#allocation2 + $0x50] sm:$0x1]
        %v765 = vld [vmem:[#allocation2 + $0x58] sm:$0x1]
        %v766 = vld [vmem:[#allocation2 + $0x60] sm:$0xfc]
        %v767 = vld [vmem:[#allocation2 + $0x68] sm:$0xfc]
        %v768 = vld [vmem:[#allocation2 + $0x70] sm:$0xfc]
        %v769 = vld [vmem:[#allocation2 + $0x78] sm:$0x1]
        %v770 = vld [vmem:[#allocation2 + $0x80] sm:$0x1]
        %v771 = vld [vmem:[#allocation2 + $0x88] sm:$0x1]
        %v772 = vld [vmem:[#allocation2 + $0x90] sm:$0xfc]
        %v773 = vld [vmem:[#allocation2 + $0x98] sm:$0xfc]
        %v774 = vld [vmem:[#allocation2 + $0xa0] sm:$0xfc]
        %v775 = vld [vmem:[#allocation2 + $0xa8] sm:$0x1]
        %v776 = vld [vmem:[#allocation2 + $0xb0] sm:$0x1]
        %v777 = vld [vmem:[#allocation2 + $0xb8] sm:$0x1]
        %v778 = vld [vmem:[#allocation2 + $0xc0] sm:$0xfc]
        %v779 = vld [vmem:[#allocation2 + $0xc8] sm:$0xfc]
        %v780 = vld [vmem:[#allocation2 + $0xd0] sm:$0xfc]
        %v781 = vld [vmem:[#allocation2 + $0xd8] sm:$0x1]
        %v782 = vld [vmem:[#allocation2 + $0xe0] sm:$0x1]
        %v783 = vld [vmem:[#allocation2 + $0xe8] sm:$0x1]
        %v784 = vld [vmem:[#allocation2 + $0xf0] sm:$0xfc]
        %v785 = vld [vmem:[#allocation2 + $0xf8] sm:$0xfc]
        %v786 = vld [vmem:[#allocation2 + $0x100] sm:$0xfc]
        %v787 = vld [vmem:[#allocation2 + $0x108] sm:$0x1]
        %v788 = vld [vmem:[#allocation2 + $0x110] sm:$0x1]
        %v789 = vld [vmem:[#allocation2 + $0x118] sm:$0x1]
        %v790 = vld [vmem:[#allocation2 + $0x120] sm:$0xfc]
        %v791 = vld [vmem:[#allocation2 + $0x128] sm:$0xfc]
        %v792 = vld [vmem:[#allocation2 + $0x130] sm:$0xfc]
        %v793 = vld [vmem:[#allocation2 + $0x138] sm:$0x1]
        %v794 = vld [vmem:[#allocation2 + $0x140] sm:$0x1]
        %v795 = vld [vmem:[#allocation2 + $0x148] sm:$0x1]
        %s796 = scalar_lea.vmem %s308, 2 [#allocation4]
        %v797 = vld [vmem:[%s796] ss:$8 sm:$0x7]
        %v799 = vperm.slane %v797, 0
        %v800 = vperm.slane %v797, 1
        %v801 = vperm.slane %v797, 2
        %v805 = vmul.f32 %v754, %v799
        %v806 = vmul.f32 %v755, %v800
        %v807 = vmul.f32 %v756, %v801
        %v808 = vmul.f32 %v757, %v799
        %v809 = vmul.f32 %v758, %v800
        %v810 = vmul.f32 %v759, %v801
        %v811 = vmul.f32 %v760, %v799
        %v812 = vmul.f32 %v761, %v800
        %v813 = vmul.f32 %v762, %v801
        %v814 = vmul.f32 %v763, %v799
        %v815 = vmul.f32 %v764, %v800
        %v816 = vmul.f32 %v765, %v801
        %v817 = vmul.f32 %v766, %v799
        %v818 = vmul.f32 %v767, %v800
        %v819 = vmul.f32 %v768, %v801
        %v820 = vmul.f32 %v769, %v799
        %v821 = vmul.f32 %v770, %v800
        %v822 = vmul.f32 %v771, %v801
        %v823 = vmul.f32 %v772, %v799
        %v824 = vmul.f32 %v773, %v800
        %v825 = vmul.f32 %v774, %v801
        %v826 = vmul.f32 %v775, %v799
        %v827 = vmul.f32 %v776, %v800
        %v828 = vmul.f32 %v777, %v801
        %v829 = vmul.f32 %v778, %v799
        %v830 = vmul.f32 %v779, %v800
        %v831 = vmul.f32 %v780, %v801
        %v832 = vmul.f32 %v781, %v799
        %v833 = vmul.f32 %v782, %v800
        %v834 = vmul.f32 %v783, %v801
        %v835 = vmul.f32 %v784, %v799
        %v836 = vmul.f32 %v785, %v800
        %v837 = vmul.f32 %v786, %v801
        %v838 = vmul.f32 %v787, %v799
        %v839 = vmul.f32 %v788, %v800
        %v840 = vmul.f32 %v789, %v801
        %v841 = vmul.f32 %v790, %v799
        %v842 = vmul.f32 %v791, %v800
        %v843 = vmul.f32 %v792, %v801
        %v844 = vmul.f32 %v793, %v799
        %v845 = vmul.f32 %v794, %v800
        %v846 = vmul.f32 %v795, %v801
        %vm889 = vcmask 1045504
        %v890 = vrot.slane %v805, 2
        %v891 = vrot.slane %v808, 2
        %v892 = vsel %vm889, %v890, %v891
        %v893 = vrot.slane %v806, 2
        %v894 = vrot.slane %v809, 2
        %v895 = vsel %vm889, %v893, %v894
        %v896 = vrot.slane %v807, 2
        %v897 = vrot.slane %v810, 2
        %v898 = vsel %vm889, %v896, %v897
        %v899 = vrot.slane %v811, 2
        %v900 = vrot.slane %v814, 2
        %v901 = vsel %vm889, %v899, %v900
        %v902 = vrot.slane %v812, 2
        %v903 = vrot.slane %v815, 2
        %v904 = vsel %vm889, %v902, %v903
        %v905 = vrot.slane %v813, 2
        %v906 = vrot.slane %v816, 2
        %v907 = vsel %vm889, %v905, %v906
        %v908 = vrot.slane %v817, 2
        %v909 = vrot.slane %v820, 2
        %v910 = vsel %vm889, %v908, %v909
        %v911 = vrot.slane %v818, 2
        %v912 = vrot.slane %v821, 2
        %v913 = vsel %vm889, %v911, %v912
        %v914 = vrot.slane %v819, 2
        %v915 = vrot.slane %v822, 2
        %v916 = vsel %vm889, %v914, %v915
        %v917 = vrot.slane %v823, 2
        %v918 = vrot.slane %v826, 2
        %v919 = vsel %vm889, %v917, %v918
        %v920 = vrot.slane %v824, 2
        %v921 = vrot.slane %v827, 2
        %v922 = vsel %vm889, %v920, %v921
        %v923 = vrot.slane %v825, 2
        %v924 = vrot.slane %v828, 2
        %v925 = vsel %vm889, %v923, %v924
        %v926 = vrot.slane %v829, 2
        %v927 = vrot.slane %v832, 2
        %v928 = vsel %vm889, %v926, %v927
        %v929 = vrot.slane %v830, 2
        %v930 = vrot.slane %v833, 2
        %v931 = vsel %vm889, %v929, %v930
        %v932 = vrot.slane %v831, 2
        %v933 = vrot.slane %v834, 2
        %v934 = vsel %vm889, %v932, %v933
        %v935 = vrot.slane %v835, 2
        %v936 = vrot.slane %v838, 2
        %v937 = vsel %vm889, %v935, %v936
        %v938 = vrot.slane %v836, 2
        %v939 = vrot.slane %v839, 2
        %v940 = vsel %vm889, %v938, %v939
        %v941 = vrot.slane %v837, 2
        %v942 = vrot.slane %v840, 2
        %v943 = vsel %vm889, %v941, %v942
        %v944 = vrot.slane %v841, 2
        %v945 = vrot.slane %v844, 2
        %v946 = vsel %vm889, %v944, %v945
        %v947 = vrot.slane %v842, 2
        %v948 = vrot.slane %v845, 2
        %v949 = vsel %vm889, %v947, %v948
        %v950 = vrot.slane %v843, 2
        %v951 = vrot.slane %v846, 2
        %v952 = vsel %vm889, %v950, %v951
        %v974 = vadd.f32 %v733, %v892
        %v975 = vadd.f32 %v734, %v895
        %v976 = vadd.f32 %v735, %v898
        %v977 = vadd.f32 %v736, %v901
        %v978 = vadd.f32 %v737, %v904
        %v979 = vadd.f32 %v738, %v907
        %v980 = vadd.f32 %v739, %v910
        %v981 = vadd.f32 %v740, %v913
        %v982 = vadd.f32 %v741, %v916
        %v983 = vadd.f32 %v742, %v919
        %v984 = vadd.f32 %v743, %v922
        %v985 = vadd.f32 %v744, %v925
        %v986 = vadd.f32 %v745, %v928
        %v987 = vadd.f32 %v746, %v931
        %v988 = vadd.f32 %v747, %v934
        %v989 = vadd.f32 %v748, %v937
        %v990 = vadd.f32 %v749, %v940
        %v991 = vadd.f32 %v750, %v943
        %v992 = vadd.f32 %v751, %v946
        %v993 = vadd.f32 %v752, %v949
        %v994 = vadd.f32 %v753, %v952
        %v995 = vld [vmem:[#allocation2] sm:$0xf8]
        %v996 = vld [vmem:[#allocation2 + $0x8] sm:$0xf8]
        %v997 = vld [vmem:[#allocation2 + $0x10] sm:$0xf8]
        %v998 = vld [vmem:[#allocation2 + $0x18] sm:$0x3]
        %v999 = vld [vmem:[#allocation2 + $0x20] sm:$0x3]
        %v1000 = vld [vmem:[#allocation2 + $0x28] sm:$0x3]
        %v1001 = vld [vmem:[#allocation2 + $0x30] sm:$0xf8]
        %v1002 = vld [vmem:[#allocation2 + $0x38] sm:$0xf8]
        %v1003 = vld [vmem:[#allocation2 + $0x40] sm:$0xf8]
        %v1004 = vld [vmem:[#allocation2 + $0x48] sm:$0x3]
        %v1005 = vld [vmem:[#allocation2 + $0x50] sm:$0x3]
        %v1006 = vld [vmem:[#allocation2 + $0x58] sm:$0x3]
        %v1007 = vld [vmem:[#allocation2 + $0x60] sm:$0xf8]
        %v1008 = vld [vmem:[#allocation2 + $0x68] sm:$0xf8]
        %v1009 = vld [vmem:[#allocation2 + $0x70] sm:$0xf8]
        %v1010 = vld [vmem:[#allocation2 + $0x78] sm:$0x3]
        %v1011 = vld [vmem:[#allocation2 + $0x80] sm:$0x3]
        %v1012 = vld [vmem:[#allocation2 + $0x88] sm:$0x3]
        %v1013 = vld [vmem:[#allocation2 + $0x90] sm:$0xf8]
        %v1014 = vld [vmem:[#allocation2 + $0x98] sm:$0xf8]
        %v1015 = vld [vmem:[#allocation2 + $0xa0] sm:$0xf8]
        %v1016 = vld [vmem:[#allocation2 + $0xa8] sm:$0x3]
        %v1017 = vld [vmem:[#allocation2 + $0xb0] sm:$0x3]
        %v1018 = vld [vmem:[#allocation2 + $0xb8] sm:$0x3]
        %v1019 = vld [vmem:[#allocation2 + $0xc0] sm:$0xf8]
        %v1020 = vld [vmem:[#allocation2 + $0xc8] sm:$0xf8]
        %v1021 = vld [vmem:[#allocation2 + $0xd0] sm:$0xf8]
        %v1022 = vld [vmem:[#allocation2 + $0xd8] sm:$0x3]
        %v1023 = vld [vmem:[#allocation2 + $0xe0] sm:$0x3]
        %v1024 = vld [vmem:[#allocation2 + $0xe8] sm:$0x3]
        %v1025 = vld [vmem:[#allocation2 + $0xf0] sm:$0xf8]
        %v1026 = vld [vmem:[#allocation2 + $0xf8] sm:$0xf8]
        %v1027 = vld [vmem:[#allocation2 + $0x100] sm:$0xf8]
        %v1028 = vld [vmem:[#allocation2 + $0x108] sm:$0x3]
        %v1029 = vld [vmem:[#allocation2 + $0x110] sm:$0x3]
        %v1030 = vld [vmem:[#allocation2 + $0x118] sm:$0x3]
        %v1031 = vld [vmem:[#allocation2 + $0x120] sm:$0xf8]
        %v1032 = vld [vmem:[#allocation2 + $0x128] sm:$0xf8]
        %v1033 = vld [vmem:[#allocation2 + $0x130] sm:$0xf8]
        %v1034 = vld [vmem:[#allocation2 + $0x138] sm:$0x3]
        %v1035 = vld [vmem:[#allocation2 + $0x140] sm:$0x3]
        %v1036 = vld [vmem:[#allocation2 + $0x148] sm:$0x3]
        %s1037 = scalar_lea.vmem %s308, 3 [#allocation4]
        %v1038 = vld [vmem:[%s1037] ss:$8 sm:$0x7]
        %v1040 = vperm.slane %v1038, 0
        %v1041 = vperm.slane %v1038, 1
        %v1042 = vperm.slane %v1038, 2
        %v1046 = vmul.f32 %v995, %v1040
        %v1047 = vmul.f32 %v996, %v1041
        %v1048 = vmul.f32 %v997, %v1042
        %v1049 = vmul.f32 %v998, %v1040
        %v1050 = vmul.f32 %v999, %v1041
        %v1051 = vmul.f32 %v1000, %v1042
        %v1052 = vmul.f32 %v1001, %v1040
        %v1053 = vmul.f32 %v1002, %v1041
        %v1054 = vmul.f32 %v1003, %v1042
        %v1055 = vmul.f32 %v1004, %v1040
        %v1056 = vmul.f32 %v1005, %v1041
        %v1057 = vmul.f32 %v1006, %v1042
        %v1058 = vmul.f32 %v1007, %v1040
        %v1059 = vmul.f32 %v1008, %v1041
        %v1060 = vmul.f32 %v1009, %v1042
        %v1061 = vmul.f32 %v1010, %v1040
        %v1062 = vmul.f32 %v1011, %v1041
        %v1063 = vmul.f32 %v1012, %v1042
        %v1064 = vmul.f32 %v1013, %v1040
        %v1065 = vmul.f32 %v1014, %v1041
        %v1066 = vmul.f32 %v1015, %v1042
        %v1067 = vmul.f32 %v1016, %v1040
        %v1068 = vmul.f32 %v1017, %v1041
        %v1069 = vmul.f32 %v1018, %v1042
        %v1070 = vmul.f32 %v1019, %v1040
        %v1071 = vmul.f32 %v1020, %v1041
        %v1072 = vmul.f32 %v1021, %v1042
        %v1073 = vmul.f32 %v1022, %v1040
        %v1074 = vmul.f32 %v1023, %v1041
        %v1075 = vmul.f32 %v1024, %v1042
        %v1076 = vmul.f32 %v1025, %v1040
        %v1077 = vmul.f32 %v1026, %v1041
        %v1078 = vmul.f32 %v1027, %v1042
        %v1079 = vmul.f32 %v1028, %v1040
        %v1080 = vmul.f32 %v1029, %v1041
        %v1081 = vmul.f32 %v1030, %v1042
        %v1082 = vmul.f32 %v1031, %v1040
        %v1083 = vmul.f32 %v1032, %v1041
        %v1084 = vmul.f32 %v1033, %v1042
        %v1085 = vmul.f32 %v1034, %v1040
        %v1086 = vmul.f32 %v1035, %v1041
        %v1087 = vmul.f32 %v1036, %v1042
        %vm1130 = vcmask 1044480
        %v1131 = vrot.slane %v1046, 3
        %v1132 = vrot.slane %v1049, 3
        %v1133 = vsel %vm1130, %v1131, %v1132
        %v1134 = vrot.slane %v1047, 3
        %v1135 = vrot.slane %v1050, 3
        %v1136 = vsel %vm1130, %v1134, %v1135
        %v1137 = vrot.slane %v1048, 3
        %v1138 = vrot.slane %v1051, 3
        %v1139 = vsel %vm1130, %v1137, %v1138
        %v1140 = vrot.slane %v1052, 3
        %v1141 = vrot.slane %v1055, 3
        %v1142 = vsel %vm1130, %v1140, %v1141
        %v1143 = vrot.slane %v1053, 3
        %v1144 = vrot.slane %v1056, 3
        %v1145 = vsel %vm1130, %v1143, %v1144
        %v1146 = vrot.slane %v1054, 3
        %v1147 = vrot.slane %v1057, 3
        %v1148 = vsel %vm1130, %v1146, %v1147
        %v1149 = vrot.slane %v1058, 3
        %v1150 = vrot.slane %v1061, 3
        %v1151 = vsel %vm1130, %v1149, %v1150
        %v1152 = vrot.slane %v1059, 3
        %v1153 = vrot.slane %v1062, 3
        %v1154 = vsel %vm1130, %v1152, %v1153
        %v1155 = vrot.slane %v1060, 3
        %v1156 = vrot.slane %v1063, 3
        %v1157 = vsel %vm1130, %v1155, %v1156
        %v1158 = vrot.slane %v1064, 3
        %v1159 = vrot.slane %v1067, 3
        %v1160 = vsel %vm1130, %v1158, %v1159
        %v1161 = vrot.slane %v1065, 3
        %v1162 = vrot.slane %v1068, 3
        %v1163 = vsel %vm1130, %v1161, %v1162
        %v1164 = vrot.slane %v1066, 3
        %v1165 = vrot.slane %v1069, 3
        %v1166 = vsel %vm1130, %v1164, %v1165
        %v1167 = vrot.slane %v1070, 3
        %v1168 = vrot.slane %v1073, 3
        %v1169 = vsel %vm1130, %v1167, %v1168
        %v1170 = vrot.slane %v1071, 3
        %v1171 = vrot.slane %v1074, 3
        %v1172 = vsel %vm1130, %v1170, %v1171
        %v1173 = vrot.slane %v1072, 3
        %v1174 = vrot.slane %v1075, 3
        %v1175 = vsel %vm1130, %v1173, %v1174
        %v1176 = vrot.slane %v1076, 3
        %v1177 = vrot.slane %v1079, 3
        %v1178 = vsel %vm1130, %v1176, %v1177
        %v1179 = vrot.slane %v1077, 3
        %v1180 = vrot.slane %v1080, 3
        %v1181 = vsel %vm1130, %v1179, %v1180
        %v1182 = vrot.slane %v1078, 3
        %v1183 = vrot.slane %v1081, 3
        %v1184 = vsel %vm1130, %v1182, %v1183
        %v1185 = vrot.slane %v1082, 3
        %v1186 = vrot.slane %v1085, 3
        %v1187 = vsel %vm1130, %v1185, %v1186
        %v1188 = vrot.slane %v1083, 3
        %v1189 = vrot.slane %v1086, 3
        %v1190 = vsel %vm1130, %v1188, %v1189
        %v1191 = vrot.slane %v1084, 3
        %v1192 = vrot.slane %v1087, 3
        %v1193 = vsel %vm1130, %v1191, %v1192
        %v1215 = vadd.f32 %v974, %v1133
        %v1216 = vadd.f32 %v975, %v1136
        %v1217 = vadd.f32 %v976, %v1139
        %v1218 = vadd.f32 %v977, %v1142
        %v1219 = vadd.f32 %v978, %v1145
        %v1220 = vadd.f32 %v979, %v1148
        %v1221 = vadd.f32 %v980, %v1151
        %v1222 = vadd.f32 %v981, %v1154
        %v1223 = vadd.f32 %v982, %v1157
        %v1224 = vadd.f32 %v983, %v1160
        %v1225 = vadd.f32 %v984, %v1163
        %v1226 = vadd.f32 %v985, %v1166
        %v1227 = vadd.f32 %v986, %v1169
        %v1228 = vadd.f32 %v987, %v1172
        %v1229 = vadd.f32 %v988, %v1175
        %v1230 = vadd.f32 %v989, %v1178
        %v1231 = vadd.f32 %v990, %v1181
        %v1232 = vadd.f32 %v991, %v1184
        %v1233 = vadd.f32 %v992, %v1187
        %v1234 = vadd.f32 %v993, %v1190
        %v1235 = vadd.f32 %v994, %v1193
        %v1236 = vld [vmem:[#allocation2] sm:$0xf0]
        %v1237 = vld [vmem:[#allocation2 + $0x8] sm:$0xf0]
        %v1238 = vld [vmem:[#allocation2 + $0x10] sm:$0xf0]
        %v1239 = vld [vmem:[#allocation2 + $0x18] sm:$0x7]
        %v1240 = vld [vmem:[#allocation2 + $0x20] sm:$0x7]
        %v1241 = vld [vmem:[#allocation2 + $0x28] sm:$0x7]
        %v1242 = vld [vmem:[#allocation2 + $0x30] sm:$0xf0]
        %v1243 = vld [vmem:[#allocation2 + $0x38] sm:$0xf0]
        %v1244 = vld [vmem:[#allocation2 + $0x40] sm:$0xf0]
        %v1245 = vld [vmem:[#allocation2 + $0x48] sm:$0x7]
        %v1246 = vld [vmem:[#allocation2 + $0x50] sm:$0x7]
        %v1247 = vld [vmem:[#allocation2 + $0x58] sm:$0x7]
        %v1248 = vld [vmem:[#allocation2 + $0x60] sm:$0xf0]
        %v1249 = vld [vmem:[#allocation2 + $0x68] sm:$0xf0]
        %v1250 = vld [vmem:[#allocation2 + $0x70] sm:$0xf0]
        %v1251 = vld [vmem:[#allocation2 + $0x78] sm:$0x7]
        %v1252 = vld [vmem:[#allocation2 + $0x80] sm:$0x7]
        %v1253 = vld [vmem:[#allocation2 + $0x88] sm:$0x7]
        %v1254 = vld [vmem:[#allocation2 + $0x90] sm:$0xf0]
        %v1255 = vld [vmem:[#allocation2 + $0x98] sm:$0xf0]
        %v1256 = vld [vmem:[#allocation2 + $0xa0] sm:$0xf0]
        %v1257 = vld [vmem:[#allocation2 + $0xa8] sm:$0x7]
        %v1258 = vld [vmem:[#allocation2 + $0xb0] sm:$0x7]
        %v1259 = vld [vmem:[#allocation2 + $0xb8] sm:$0x7]
        %v1260 = vld [vmem:[#allocation2 + $0xc0] sm:$0xf0]
        %v1261 = vld [vmem:[#allocation2 + $0xc8] sm:$0xf0]
        %v1262 = vld [vmem:[#allocation2 + $0xd0] sm:$0xf0]
        %v1263 = vld [vmem:[#allocation2 + $0xd8] sm:$0x7]
        %v1264 = vld [vmem:[#allocation2 + $0xe0] sm:$0x7]
        %v1265 = vld [vmem:[#allocation2 + $0xe8] sm:$0x7]
        %v1266 = vld [vmem:[#allocation2 + $0xf0] sm:$0xf0]
        %v1267 = vld [vmem:[#allocation2 + $0xf8] sm:$0xf0]
        %v1268 = vld [vmem:[#allocation2 + $0x100] sm:$0xf0]
        %v1269 = vld [vmem:[#allocation2 + $0x108] sm:$0x7]
        %v1270 = vld [vmem:[#allocation2 + $0x110] sm:$0x7]
        %v1271 = vld [vmem:[#allocation2 + $0x118] sm:$0x7]
        %v1272 = vld [vmem:[#allocation2 + $0x120] sm:$0xf0]
        %v1273 = vld [vmem:[#allocation2 + $0x128] sm:$0xf0]
        %v1274 = vld [vmem:[#allocation2 + $0x130] sm:$0xf0]
        %v1275 = vld [vmem:[#allocation2 + $0x138] sm:$0x7]
        %v1276 = vld [vmem:[#allocation2 + $0x140] sm:$0x7]
        %v1277 = vld [vmem:[#allocation2 + $0x148] sm:$0x7]
        %s1278 = scalar_lea.vmem %s308, 4 [#allocation4]
        %v1279 = vld [vmem:[%s1278] ss:$8 sm:$0x7]
        %v1281 = vperm.slane %v1279, 0
        %v1282 = vperm.slane %v1279, 1
        %v1283 = vperm.slane %v1279, 2
        %v1287 = vmul.f32 %v1236, %v1281
        %v1288 = vmul.f32 %v1237, %v1282
        %v1289 = vmul.f32 %v1238, %v1283
        %v1290 = vmul.f32 %v1239, %v1281
        %v1291 = vmul.f32 %v1240, %v1282
        %v1292 = vmul.f32 %v1241, %v1283
        %v1293 = vmul.f32 %v1242, %v1281
        %v1294 = vmul.f32 %v1243, %v1282
        %v1295 = vmul.f32 %v1244, %v1283
        %v1296 = vmul.f32 %v1245, %v1281
        %v1297 = vmul.f32 %v1246, %v1282
        %v1298 = vmul.f32 %v1247, %v1283
        %v1299 = vmul.f32 %v1248, %v1281
        %v1300 = vmul.f32 %v1249, %v1282
        %v1301 = vmul.f32 %v1250, %v1283
        %v1302 = vmul.f32 %v1251, %v1281
        %v1303 = vmul.f32 %v1252, %v1282
        %v1304 = vmul.f32 %v1253, %v1283
        %v1305 = vmul.f32 %v1254, %v1281
        %v1306 = vmul.f32 %v1255, %v1282
        %v1307 = vmul.f32 %v1256, %v1283
        %v1308 = vmul.f32 %v1257, %v1281
        %v1309 = vmul.f32 %v1258, %v1282
        %v1310 = vmul.f32 %v1259, %v1283
        %v1311 = vmul.f32 %v1260, %v1281
        %v1312 = vmul.f32 %v1261, %v1282
        %v1313 = vmul.f32 %v1262, %v1283
        %v1314 = vmul.f32 %v1263, %v1281
        %v1315 = vmul.f32 %v1264, %v1282
        %v1316 = vmul.f32 %v1265, %v1283
        %v1317 = vmul.f32 %v1266, %v1281
        %v1318 = vmul.f32 %v1267, %v1282
        %v1319 = vmul.f32 %v1268, %v1283
        %v1320 = vmul.f32 %v1269, %v1281
        %v1321 = vmul.f32 %v1270, %v1282
        %v1322 = vmul.f32 %v1271, %v1283
        %v1323 = vmul.f32 %v1272, %v1281
        %v1324 = vmul.f32 %v1273, %v1282
        %v1325 = vmul.f32 %v1274, %v1283
        %v1326 = vmul.f32 %v1275, %v1281
        %v1327 = vmul.f32 %v1276, %v1282
        %v1328 = vmul.f32 %v1277, %v1283
        %vm1371 = vcmask 1043456
        %v1372 = vrot.slane %v1287, 4
        %v1373 = vrot.slane %v1290, 4
        %v1374 = vsel %vm1371, %v1372, %v1373
        %v1375 = vrot.slane %v1288, 4
        %v1376 = vrot.slane %v1291, 4
        %v1377 = vsel %vm1371, %v1375, %v1376
        %v1378 = vrot.slane %v1289, 4
        %v1379 = vrot.slane %v1292, 4
        %v1380 = vsel %vm1371, %v1378, %v1379
        %v1381 = vrot.slane %v1293, 4
        %v1382 = vrot.slane %v1296, 4
        %v1383 = vsel %vm1371, %v1381, %v1382
        %v1384 = vrot.slane %v1294, 4
        %v1385 = vrot.slane %v1297, 4
        %v1386 = vsel %vm1371, %v1384, %v1385
        %v1387 = vrot.slane %v1295, 4
        %v1388 = vrot.slane %v1298, 4
        %v1389 = vsel %vm1371, %v1387, %v1388
        %v1390 = vrot.slane %v1299, 4
        %v1391 = vrot.slane %v1302, 4
        %v1392 = vsel %vm1371, %v1390, %v1391
        %v1393 = vrot.slane %v1300, 4
        %v1394 = vrot.slane %v1303, 4
        %v1395 = vsel %vm1371, %v1393, %v1394
        %v1396 = vrot.slane %v1301, 4
        %v1397 = vrot.slane %v1304, 4
        %v1398 = vsel %vm1371, %v1396, %v1397
        %v1399 = vrot.slane %v1305, 4
        %v1400 = vrot.slane %v1308, 4
        %v1401 = vsel %vm1371, %v1399, %v1400
        %v1402 = vrot.slane %v1306, 4
        %v1403 = vrot.slane %v1309, 4
        %v1404 = vsel %vm1371, %v1402, %v1403
        %v1405 = vrot.slane %v1307, 4
        %v1406 = vrot.slane %v1310, 4
        %v1407 = vsel %vm1371, %v1405, %v1406
        %v1408 = vrot.slane %v1311, 4
        %v1409 = vrot.slane %v1314, 4
        %v1410 = vsel %vm1371, %v1408, %v1409
        %v1411 = vrot.slane %v1312, 4
        %v1412 = vrot.slane %v1315, 4
        %v1413 = vsel %vm1371, %v1411, %v1412
        %v1414 = vrot.slane %v1313, 4
        %v1415 = vrot.slane %v1316, 4
        %v1416 = vsel %vm1371, %v1414, %v1415
        %v1417 = vrot.slane %v1317, 4
        %v1418 = vrot.slane %v1320, 4
        %v1419 = vsel %vm1371, %v1417, %v1418
        %v1420 = vrot.slane %v1318, 4
        %v1421 = vrot.slane %v1321, 4
        %v1422 = vsel %vm1371, %v1420, %v1421
        %v1423 = vrot.slane %v1319, 4
        %v1424 = vrot.slane %v1322, 4
        %v1425 = vsel %vm1371, %v1423, %v1424
        %v1426 = vrot.slane %v1323, 4
        %v1427 = vrot.slane %v1326, 4
        %v1428 = vsel %vm1371, %v1426, %v1427
        %v1429 = vrot.slane %v1324, 4
        %v1430 = vrot.slane %v1327, 4
        %v1431 = vsel %vm1371, %v1429, %v1430
        %v1432 = vrot.slane %v1325, 4
        %v1433 = vrot.slane %v1328, 4
        %v1434 = vsel %vm1371, %v1432, %v1433
        %v1456 = vadd.f32 %v1215, %v1374
        %v1457 = vadd.f32 %v1216, %v1377
        %v1458 = vadd.f32 %v1217, %v1380
        %v1459 = vadd.f32 %v1218, %v1383
        %v1460 = vadd.f32 %v1219, %v1386
        %v1461 = vadd.f32 %v1220, %v1389
        %v1462 = vadd.f32 %v1221, %v1392
        %v1463 = vadd.f32 %v1222, %v1395
        %v1464 = vadd.f32 %v1223, %v1398
        %v1465 = vadd.f32 %v1224, %v1401
        %v1466 = vadd.f32 %v1225, %v1404
        %v1467 = vadd.f32 %v1226, %v1407
        %v1468 = vadd.f32 %v1227, %v1410
        %v1469 = vadd.f32 %v1228, %v1413
        %v1470 = vadd.f32 %v1229, %v1416
        %v1471 = vadd.f32 %v1230, %v1419
        %v1472 = vadd.f32 %v1231, %v1422
        %v1473 = vadd.f32 %v1232, %v1425
        %v1474 = vadd.f32 %v1233, %v1428
        %v1475 = vadd.f32 %v1234, %v1431
        %v1476 = vadd.f32 %v1235, %v1434
        %s1477 = scalar_lea.vmem [#allocation2], 48
        %v1478 = vld [vmem:[%s1477] sm:$0x7f]
        %v1479 = vld [vmem:[%s1477 + $0x8] sm:$0x7f]
        %v1480 = vld [vmem:[%s1477 + $0x10] sm:$0x7f]
        %v1481 = vld [vmem:[%s1477 + $0x30] sm:$0x7f]
        %v1482 = vld [vmem:[%s1477 + $0x38] sm:$0x7f]
        %v1483 = vld [vmem:[%s1477 + $0x40] sm:$0x7f]
        %v1484 = vld [vmem:[%s1477 + $0x60] sm:$0x7f]
        %v1485 = vld [vmem:[%s1477 + $0x68] sm:$0x7f]
        %v1486 = vld [vmem:[%s1477 + $0x70] sm:$0x7f]
        %v1487 = vld [vmem:[%s1477 + $0x90] sm:$0x7f]
        %v1488 = vld [vmem:[%s1477 + $0x98] sm:$0x7f]
        %v1489 = vld [vmem:[%s1477 + $0xa0] sm:$0x7f]
        %v1490 = vld [vmem:[%s1477 + $0xc0] sm:$0x7f]
        %v1491 = vld [vmem:[%s1477 + $0xc8] sm:$0x7f]
        %v1492 = vld [vmem:[%s1477 + $0xd0] sm:$0x7f]
        %v1493 = vld [vmem:[%s1477 + $0xf0] sm:$0x7f]
        %v1494 = vld [vmem:[%s1477 + $0xf8] sm:$0x7f]
        %v1495 = vld [vmem:[%s1477 + $0x100] sm:$0x7f]
        %v1496 = vld [vmem:[%s1477 + $0x120] sm:$0x7f]
        %v1497 = vld [vmem:[%s1477 + $0x128] sm:$0x7f]
        %v1498 = vld [vmem:[%s1477 + $0x130] sm:$0x7f]
        %s1499 = scalar_lea.vmem %s308, 5 [#allocation4]
        %v1500 = vld [vmem:[%s1499] ss:$8 sm:$0x7]
        %v1502 = vperm.slane %v1500, 0
        %v1503 = vperm.slane %v1500, 1
        %v1504 = vperm.slane %v1500, 2
        %v1508 = vmul.f32 %v1478, %v1502
        %v1509 = vmul.f32 %v1479, %v1503
        %v1510 = vmul.f32 %v1480, %v1504
        %v1511 = vmul.f32 %v1481, %v1502
        %v1512 = vmul.f32 %v1482, %v1503
        %v1513 = vmul.f32 %v1483, %v1504
        %v1514 = vmul.f32 %v1484, %v1502
        %v1515 = vmul.f32 %v1485, %v1503
        %v1516 = vmul.f32 %v1486, %v1504
        %v1517 = vmul.f32 %v1487, %v1502
        %v1518 = vmul.f32 %v1488, %v1503
        %v1519 = vmul.f32 %v1489, %v1504
        %v1520 = vmul.f32 %v1490, %v1502
        %v1521 = vmul.f32 %v1491, %v1503
        %v1522 = vmul.f32 %v1492, %v1504
        %v1523 = vmul.f32 %v1493, %v1502
        %v1524 = vmul.f32 %v1494, %v1503
        %v1525 = vmul.f32 %v1495, %v1504
        %v1526 = vmul.f32 %v1496, %v1502
        %v1527 = vmul.f32 %v1497, %v1503
        %v1528 = vmul.f32 %v1498, %v1504
        %v1529 = vadd.f32 %v1456, %v1508
        %v1530 = vadd.f32 %v1457, %v1509
        %v1531 = vadd.f32 %v1458, %v1510
        %v1532 = vadd.f32 %v1459, %v1511
        %v1533 = vadd.f32 %v1460, %v1512
        %v1534 = vadd.f32 %v1461, %v1513
        %v1535 = vadd.f32 %v1462, %v1514
        %v1536 = vadd.f32 %v1463, %v1515
        %v1537 = vadd.f32 %v1464, %v1516
        %v1538 = vadd.f32 %v1465, %v1517
        %v1539 = vadd.f32 %v1466, %v1518
        %v1540 = vadd.f32 %v1467, %v1519
        %v1541 = vadd.f32 %v1468, %v1520
        %v1542 = vadd.f32 %v1469, %v1521
        %v1543 = vadd.f32 %v1470, %v1522
        %v1544 = vadd.f32 %v1471, %v1523
        %v1545 = vadd.f32 %v1472, %v1524
        %v1546 = vadd.f32 %v1473, %v1525
        %v1547 = vadd.f32 %v1474, %v1526
        %v1548 = vadd.f32 %v1475, %v1527
        %v1549 = vadd.f32 %v1476, %v1528
        %v1550 = vld [vmem:[%s1477] sm:$0xfe]
        %v1551 = vld [vmem:[%s1477 + $0x8] sm:$0xfe]
        %v1552 = vld [vmem:[%s1477 + $0x10] sm:$0xfe]
        %v1553 = vld [vmem:[%s1477 + $0x30] sm:$0xfe]
        %v1554 = vld [vmem:[%s1477 + $0x38] sm:$0xfe]
        %v1555 = vld [vmem:[%s1477 + $0x40] sm:$0xfe]
        %v1556 = vld [vmem:[%s1477 + $0x60] sm:$0xfe]
        %v1557 = vld [vmem:[%s1477 + $0x68] sm:$0xfe]
        %v1558 = vld [vmem:[%s1477 + $0x70] sm:$0xfe]
        %v1559 = vld [vmem:[%s1477 + $0x90] sm:$0xfe]
        %v1560 = vld [vmem:[%s1477 + $0x98] sm:$0xfe]
        %v1561 = vld [vmem:[%s1477 + $0xa0] sm:$0xfe]
        %v1562 = vld [vmem:[%s1477 + $0xc0] sm:$0xfe]
        %v1563 = vld [vmem:[%s1477 + $0xc8] sm:$0xfe]
        %v1564 = vld [vmem:[%s1477 + $0xd0] sm:$0xfe]
        %v1565 = vld [vmem:[%s1477 + $0xf0] sm:$0xfe]
        %v1566 = vld [vmem:[%s1477 + $0xf8] sm:$0xfe]
        %v1567 = vld [vmem:[%s1477 + $0x100] sm:$0xfe]
        %v1568 = vld [vmem:[%s1477 + $0x120] sm:$0xfe]
        %v1569 = vld [vmem:[%s1477 + $0x128] sm:$0xfe]
        %v1570 = vld [vmem:[%s1477 + $0x130] sm:$0xfe]
        %s1571 = scalar_lea.vmem %s308, 6 [#allocation4]
        %v1572 = vld [vmem:[%s1571] ss:$8 sm:$0x7]
        %v1574 = vperm.slane %v1572, 0
        %v1575 = vperm.slane %v1572, 1
        %v1576 = vperm.slane %v1572, 2
        %v1580 = vmul.f32 %v1550, %v1574
        %v1581 = vmul.f32 %v1551, %v1575
        %v1582 = vmul.f32 %v1552, %v1576
        %v1583 = vmul.f32 %v1553, %v1574
        %v1584 = vmul.f32 %v1554, %v1575
        %v1585 = vmul.f32 %v1555, %v1576
        %v1586 = vmul.f32 %v1556, %v1574
        %v1587 = vmul.f32 %v1557, %v1575
        %v1588 = vmul.f32 %v1558, %v1576
        %v1589 = vmul.f32 %v1559, %v1574
        %v1590 = vmul.f32 %v1560, %v1575
        %v1591 = vmul.f32 %v1561, %v1576
        %v1592 = vmul.f32 %v1562, %v1574
        %v1593 = vmul.f32 %v1563, %v1575
        %v1594 = vmul.f32 %v1564, %v1576
        %v1595 = vmul.f32 %v1565, %v1574
        %v1596 = vmul.f32 %v1566, %v1575
        %v1597 = vmul.f32 %v1567, %v1576
        %v1598 = vmul.f32 %v1568, %v1574
        %v1599 = vmul.f32 %v1569, %v1575
        %v1600 = vmul.f32 %v1570, %v1576
        %v1622 = vrot.slane %v1580, 1
        %v1623 = vrot.slane %v1581, 1
        %v1624 = vrot.slane %v1582, 1
        %v1625 = vrot.slane %v1583, 1
        %v1626 = vrot.slane %v1584, 1
        %v1627 = vrot.slane %v1585, 1
        %v1628 = vrot.slane %v1586, 1
        %v1629 = vrot.slane %v1587, 1
        %v1630 = vrot.slane %v1588, 1
        %v1631 = vrot.slane %v1589, 1
        %v1632 = vrot.slane %v1590, 1
        %v1633 = vrot.slane %v1591, 1
        %v1634 = vrot.slane %v1592, 1
        %v1635 = vrot.slane %v1593, 1
        %v1636 = vrot.slane %v1594, 1
        %v1637 = vrot.slane %v1595, 1
        %v1638 = vrot.slane %v1596, 1
        %v1639 = vrot.slane %v1597, 1
        %v1640 = vrot.slane %v1598, 1
        %v1641 = vrot.slane %v1599, 1
        %v1642 = vrot.slane %v1600, 1
        %v1664 = vadd.f32 %v1529, %v1622
        %v1665 = vadd.f32 %v1530, %v1623
        %v1666 = vadd.f32 %v1531, %v1624
        %v1667 = vadd.f32 %v1532, %v1625
        %v1668 = vadd.f32 %v1533, %v1626
        %v1669 = vadd.f32 %v1534, %v1627
        %v1670 = vadd.f32 %v1535, %v1628
        %v1671 = vadd.f32 %v1536, %v1629
        %v1672 = vadd.f32 %v1537, %v1630
        %v1673 = vadd.f32 %v1538, %v1631
        %v1674 = vadd.f32 %v1539, %v1632
        %v1675 = vadd.f32 %v1540, %v1633
        %v1676 = vadd.f32 %v1541, %v1634
        %v1677 = vadd.f32 %v1542, %v1635
        %v1678 = vadd.f32 %v1543, %v1636
        %v1679 = vadd.f32 %v1544, %v1637
        %v1680 = vadd.f32 %v1545, %v1638
        %v1681 = vadd.f32 %v1546, %v1639
        %v1682 = vadd.f32 %v1547, %v1640
        %v1683 = vadd.f32 %v1548, %v1641
        %v1684 = vadd.f32 %v1549, %v1642
        %v1685 = vld [vmem:[%s1477] sm:$0xfc]
        %v1686 = vld [vmem:[%s1477 + $0x8] sm:$0xfc]
        %v1687 = vld [vmem:[%s1477 + $0x10] sm:$0xfc]
        %v1688 = vld [vmem:[%s1477 + $0x18] sm:$0x1]
        %v1689 = vld [vmem:[%s1477 + $0x20] sm:$0x1]
        %v1690 = vld [vmem:[%s1477 + $0x28] sm:$0x1]
        %v1691 = vld [vmem:[%s1477 + $0x30] sm:$0xfc]
        %v1692 = vld [vmem:[%s1477 + $0x38] sm:$0xfc]
        %v1693 = vld [vmem:[%s1477 + $0x40] sm:$0xfc]
        %v1694 = vld [vmem:[%s1477 + $0x48] sm:$0x1]
        %v1695 = vld [vmem:[%s1477 + $0x50] sm:$0x1]
        %v1696 = vld [vmem:[%s1477 + $0x58] sm:$0x1]
        %v1697 = vld [vmem:[%s1477 + $0x60] sm:$0xfc]
        %v1698 = vld [vmem:[%s1477 + $0x68] sm:$0xfc]
        %v1699 = vld [vmem:[%s1477 + $0x70] sm:$0xfc]
        %v1700 = vld [vmem:[%s1477 + $0x78] sm:$0x1]
        %v1701 = vld [vmem:[%s1477 + $0x80] sm:$0x1]
        %v1702 = vld [vmem:[%s1477 + $0x88] sm:$0x1]
        %v1703 = vld [vmem:[%s1477 + $0x90] sm:$0xfc]
        %v1704 = vld [vmem:[%s1477 + $0x98] sm:$0xfc]
        %v1705 = vld [vmem:[%s1477 + $0xa0] sm:$0xfc]
        %v1706 = vld [vmem:[%s1477 + $0xa8] sm:$0x1]
        %v1707 = vld [vmem:[%s1477 + $0xb0] sm:$0x1]
        %v1708 = vld [vmem:[%s1477 + $0xb8] sm:$0x1]
        %v1709 = vld [vmem:[%s1477 + $0xc0] sm:$0xfc]
        %v1710 = vld [vmem:[%s1477 + $0xc8] sm:$0xfc]
        %v1711 = vld [vmem:[%s1477 + $0xd0] sm:$0xfc]
        %v1712 = vld [vmem:[%s1477 + $0xd8] sm:$0x1]
        %v1713 = vld [vmem:[%s1477 + $0xe0] sm:$0x1]
        %v1714 = vld [vmem:[%s1477 + $0xe8] sm:$0x1]
        %v1715 = vld [vmem:[%s1477 + $0xf0] sm:$0xfc]
        %v1716 = vld [vmem:[%s1477 + $0xf8] sm:$0xfc]
        %v1717 = vld [vmem:[%s1477 + $0x100] sm:$0xfc]
        %v1718 = vld [vmem:[%s1477 + $0x108] sm:$0x1]
        %v1719 = vld [vmem:[%s1477 + $0x110] sm:$0x1]
        %v1720 = vld [vmem:[%s1477 + $0x118] sm:$0x1]
        %v1721 = vld [vmem:[%s1477 + $0x120] sm:$0xfc]
        %v1722 = vld [vmem:[%s1477 + $0x128] sm:$0xfc]
        %v1723 = vld [vmem:[%s1477 + $0x130] sm:$0xfc]
        %v1724 = vld [vmem:[%s1477 + $0x138] sm:$0x1]
        %v1725 = vld [vmem:[%s1477 + $0x140] sm:$0x1]
        %v1726 = vld [vmem:[%s1477 + $0x148] sm:$0x1]
        %s1727 = scalar_lea.vmem %s308, 7 [#allocation4]
        %v1728 = vld [vmem:[%s1727] ss:$8 sm:$0x7]
        %v1730 = vperm.slane %v1728, 0
        %v1731 = vperm.slane %v1728, 1
        %v1732 = vperm.slane %v1728, 2
        %v1736 = vmul.f32 %v1685, %v1730
        %v1737 = vmul.f32 %v1686, %v1731
        %v1738 = vmul.f32 %v1687, %v1732
        %v1739 = vmul.f32 %v1688, %v1730
        %v1740 = vmul.f32 %v1689, %v1731
        %v1741 = vmul.f32 %v1690, %v1732
        %v1742 = vmul.f32 %v1691, %v1730
        %v1743 = vmul.f32 %v1692, %v1731
        %v1744 = vmul.f32 %v1693, %v1732
        %v1745 = vmul.f32 %v1694, %v1730
        %v1746 = vmul.f32 %v1695, %v1731
        %v1747 = vmul.f32 %v1696, %v1732
        %v1748 = vmul.f32 %v1697, %v1730
        %v1749 = vmul.f32 %v1698, %v1731
        %v1750 = vmul.f32 %v1699, %v1732
        %v1751 = vmul.f32 %v1700, %v1730
        %v1752 = vmul.f32 %v1701, %v1731
        %v1753 = vmul.f32 %v1702, %v1732
        %v1754 = vmul.f32 %v1703, %v1730
        %v1755 = vmul.f32 %v1704, %v1731
        %v1756 = vmul.f32 %v1705, %v1732
        %v1757 = vmul.f32 %v1706, %v1730
        %v1758 = vmul.f32 %v1707, %v1731
        %v1759 = vmul.f32 %v1708, %v1732
        %v1760 = vmul.f32 %v1709, %v1730
        %v1761 = vmul.f32 %v1710, %v1731
        %v1762 = vmul.f32 %v1711, %v1732
        %v1763 = vmul.f32 %v1712, %v1730
        %v1764 = vmul.f32 %v1713, %v1731
        %v1765 = vmul.f32 %v1714, %v1732
        %v1766 = vmul.f32 %v1715, %v1730
        %v1767 = vmul.f32 %v1716, %v1731
        %v1768 = vmul.f32 %v1717, %v1732
        %v1769 = vmul.f32 %v1718, %v1730
        %v1770 = vmul.f32 %v1719, %v1731
        %v1771 = vmul.f32 %v1720, %v1732
        %v1772 = vmul.f32 %v1721, %v1730
        %v1773 = vmul.f32 %v1722, %v1731
        %v1774 = vmul.f32 %v1723, %v1732
        %v1775 = vmul.f32 %v1724, %v1730
        %v1776 = vmul.f32 %v1725, %v1731
        %v1777 = vmul.f32 %v1726, %v1732
        %v1820 = vrot.slane %v1736, 2
        %v1821 = vrot.slane %v1739, 2
        %v1822 = vsel %vm889, %v1820, %v1821
        %v1823 = vrot.slane %v1737, 2
        %v1824 = vrot.slane %v1740, 2
        %v1825 = vsel %vm889, %v1823, %v1824
        %v1826 = vrot.slane %v1738, 2
        %v1827 = vrot.slane %v1741, 2
        %v1828 = vsel %vm889, %v1826, %v1827
        %v1829 = vrot.slane %v1742, 2
        %v1830 = vrot.slane %v1745, 2
        %v1831 = vsel %vm889, %v1829, %v1830
        %v1832 = vrot.slane %v1743, 2
        %v1833 = vrot.slane %v1746, 2
        %v1834 = vsel %vm889, %v1832, %v1833
        %v1835 = vrot.slane %v1744, 2
        %v1836 = vrot.slane %v1747, 2
        %v1837 = vsel %vm889, %v1835, %v1836
        %v1838 = vrot.slane %v1748, 2
        %v1839 = vrot.slane %v1751, 2
        %v1840 = vsel %vm889, %v1838, %v1839
        %v1841 = vrot.slane %v1749, 2
        %v1842 = vrot.slane %v1752, 2
        %v1843 = vsel %vm889, %v1841, %v1842
        %v1844 = vrot.slane %v1750, 2
        %v1845 = vrot.slane %v1753, 2
        %v1846 = vsel %vm889, %v1844, %v1845
        %v1847 = vrot.slane %v1754, 2
        %v1848 = vrot.slane %v1757, 2
        %v1849 = vsel %vm889, %v1847, %v1848
        %v1850 = vrot.slane %v1755, 2
        %v1851 = vrot.slane %v1758, 2
        %v1852 = vsel %vm889, %v1850, %v1851
        %v1853 = vrot.slane %v1756, 2
        %v1854 = vrot.slane %v1759, 2
        %v1855 = vsel %vm889, %v1853, %v1854
        %v1856 = vrot.slane %v1760, 2
        %v1857 = vrot.slane %v1763, 2
        %v1858 = vsel %vm889, %v1856, %v1857
        %v1859 = vrot.slane %v1761, 2
        %v1860 = vrot.slane %v1764, 2
        %v1861 = vsel %vm889, %v1859, %v1860
        %v1862 = vrot.slane %v1762, 2
        %v1863 = vrot.slane %v1765, 2
        %v1864 = vsel %vm889, %v1862, %v1863
        %v1865 = vrot.slane %v1766, 2
        %v1866 = vrot.slane %v1769, 2
        %v1867 = vsel %vm889, %v1865, %v1866
        %v1868 = vrot.slane %v1767, 2
        %v1869 = vrot.slane %v1770, 2
        %v1870 = vsel %vm889, %v1868, %v1869
        %v1871 = vrot.slane %v1768, 2
        %v1872 = vrot.slane %v1771, 2
        %v1873 = vsel %vm889, %v1871, %v1872
        %v1874 = vrot.slane %v1772, 2
        %v1875 = vrot.slane %v1775, 2
        %v1876 = vsel %vm889, %v1874, %v1875
        %v1877 = vrot.slane %v1773, 2
        %v1878 = vrot.slane %v1776, 2
        %v1879 = vsel %vm889, %v1877, %v1878
        %v1880 = vrot.slane %v1774, 2
        %v1881 = vrot.slane %v1777, 2
        %v1882 = vsel %vm889, %v1880, %v1881
        %v1904 = vadd.f32 %v1664, %v1822
        %v1905 = vadd.f32 %v1665, %v1825
        %v1906 = vadd.f32 %v1666, %v1828
        %v1907 = vadd.f32 %v1667, %v1831
        %v1908 = vadd.f32 %v1668, %v1834
        %v1909 = vadd.f32 %v1669, %v1837
        %v1910 = vadd.f32 %v1670, %v1840
        %v1911 = vadd.f32 %v1671, %v1843
        %v1912 = vadd.f32 %v1672, %v1846
        %v1913 = vadd.f32 %v1673, %v1849
        %v1914 = vadd.f32 %v1674, %v1852
        %v1915 = vadd.f32 %v1675, %v1855
        %v1916 = vadd.f32 %v1676, %v1858
        %v1917 = vadd.f32 %v1677, %v1861
        %v1918 = vadd.f32 %v1678, %v1864
        %v1919 = vadd.f32 %v1679, %v1867
        %v1920 = vadd.f32 %v1680, %v1870
        %v1921 = vadd.f32 %v1681, %v1873
        %v1922 = vadd.f32 %v1682, %v1876
        %v1923 = vadd.f32 %v1683, %v1879
        %v1924 = vadd.f32 %v1684, %v1882
        %v1925 = vld [vmem:[%s1477] sm:$0xf8]
        %v1926 = vld [vmem:[%s1477 + $0x8] sm:$0xf8]
        %v1927 = vld [vmem:[%s1477 + $0x10] sm:$0xf8]
        %v1928 = vld [vmem:[%s1477 + $0x18] sm:$0x3]
        %v1929 = vld [vmem:[%s1477 + $0x20] sm:$0x3]
        %v1930 = vld [vmem:[%s1477 + $0x28] sm:$0x3]
        %v1931 = vld [vmem:[%s1477 + $0x30] sm:$0xf8]
        %v1932 = vld [vmem:[%s1477 + $0x38] sm:$0xf8]
        %v1933 = vld [vmem:[%s1477 + $0x40] sm:$0xf8]
        %v1934 = vld [vmem:[%s1477 + $0x48] sm:$0x3]
        %v1935 = vld [vmem:[%s1477 + $0x50] sm:$0x3]
        %v1936 = vld [vmem:[%s1477 + $0x58] sm:$0x3]
        %v1937 = vld [vmem:[%s1477 + $0x60] sm:$0xf8]
        %v1938 = vld [vmem:[%s1477 + $0x68] sm:$0xf8]
        %v1939 = vld [vmem:[%s1477 + $0x70] sm:$0xf8]
        %v1940 = vld [vmem:[%s1477 + $0x78] sm:$0x3]
        %v1941 = vld [vmem:[%s1477 + $0x80] sm:$0x3]
        %v1942 = vld [vmem:[%s1477 + $0x88] sm:$0x3]
        %v1943 = vld [vmem:[%s1477 + $0x90] sm:$0xf8]
        %v1944 = vld [vmem:[%s1477 + $0x98] sm:$0xf8]
        %v1945 = vld [vmem:[%s1477 + $0xa0] sm:$0xf8]
        %v1946 = vld [vmem:[%s1477 + $0xa8] sm:$0x3]
        %v1947 = vld [vmem:[%s1477 + $0xb0] sm:$0x3]
        %v1948 = vld [vmem:[%s1477 + $0xb8] sm:$0x3]
        %v1949 = vld [vmem:[%s1477 + $0xc0] sm:$0xf8]
        %v1950 = vld [vmem:[%s1477 + $0xc8] sm:$0xf8]
        %v1951 = vld [vmem:[%s1477 + $0xd0] sm:$0xf8]
        %v1952 = vld [vmem:[%s1477 + $0xd8] sm:$0x3]
        %v1953 = vld [vmem:[%s1477 + $0xe0] sm:$0x3]
        %v1954 = vld [vmem:[%s1477 + $0xe8] sm:$0x3]
        %v1955 = vld [vmem:[%s1477 + $0xf0] sm:$0xf8]
        %v1956 = vld [vmem:[%s1477 + $0xf8] sm:$0xf8]
        %v1957 = vld [vmem:[%s1477 + $0x100] sm:$0xf8]
        %v1958 = vld [vmem:[%s1477 + $0x108] sm:$0x3]
        %v1959 = vld [vmem:[%s1477 + $0x110] sm:$0x3]
        %v1960 = vld [vmem:[%s1477 + $0x118] sm:$0x3]
        %v1961 = vld [vmem:[%s1477 + $0x120] sm:$0xf8]
        %v1962 = vld [vmem:[%s1477 + $0x128] sm:$0xf8]
        %v1963 = vld [vmem:[%s1477 + $0x130] sm:$0xf8]
        %v1964 = vld [vmem:[%s1477 + $0x138] sm:$0x3]
        %v1965 = vld [vmem:[%s1477 + $0x140] sm:$0x3]
        %v1966 = vld [vmem:[%s1477 + $0x148] sm:$0x3]
        %s1967 = scalar_lea.vmem %s308, 24 [#allocation4]
        %v1968 = vld [vmem:[%s1967] ss:$8 sm:$0x7]
        %v1970 = vperm.slane %v1968, 0
        %v1971 = vperm.slane %v1968, 1
        %v1972 = vperm.slane %v1968, 2
        %v1976 = vmul.f32 %v1925, %v1970
        %v1977 = vmul.f32 %v1926, %v1971
        %v1978 = vmul.f32 %v1927, %v1972
        %v1979 = vmul.f32 %v1928, %v1970
        %v1980 = vmul.f32 %v1929, %v1971
        %v1981 = vmul.f32 %v1930, %v1972
        %v1982 = vmul.f32 %v1931, %v1970
        %v1983 = vmul.f32 %v1932, %v1971
        %v1984 = vmul.f32 %v1933, %v1972
        %v1985 = vmul.f32 %v1934, %v1970
        %v1986 = vmul.f32 %v1935, %v1971
        %v1987 = vmul.f32 %v1936, %v1972
        %v1988 = vmul.f32 %v1937, %v1970
        %v1989 = vmul.f32 %v1938, %v1971
        %v1990 = vmul.f32 %v1939, %v1972
        %v1991 = vmul.f32 %v1940, %v1970
        %v1992 = vmul.f32 %v1941, %v1971
        %v1993 = vmul.f32 %v1942, %v1972
        %v1994 = vmul.f32 %v1943, %v1970
        %v1995 = vmul.f32 %v1944, %v1971
        %v1996 = vmul.f32 %v1945, %v1972
        %v1997 = vmul.f32 %v1946, %v1970
        %v1998 = vmul.f32 %v1947, %v1971
        %v1999 = vmul.f32 %v1948, %v1972
        %v2000 = vmul.f32 %v1949, %v1970
        %v2001 = vmul.f32 %v1950, %v1971
        %v2002 = vmul.f32 %v1951, %v1972
        %v2003 = vmul.f32 %v1952, %v1970
        %v2004 = vmul.f32 %v1953, %v1971
        %v2005 = vmul.f32 %v1954, %v1972
        %v2006 = vmul.f32 %v1955, %v1970
        %v2007 = vmul.f32 %v1956, %v1971
        %v2008 = vmul.f32 %v1957, %v1972
        %v2009 = vmul.f32 %v1958, %v1970
        %v2010 = vmul.f32 %v1959, %v1971
        %v2011 = vmul.f32 %v1960, %v1972
        %v2012 = vmul.f32 %v1961, %v1970
        %v2013 = vmul.f32 %v1962, %v1971
        %v2014 = vmul.f32 %v1963, %v1972
        %v2015 = vmul.f32 %v1964, %v1970
        %v2016 = vmul.f32 %v1965, %v1971
        %v2017 = vmul.f32 %v1966, %v1972
        %v2060 = vrot.slane %v1976, 3
        %v2061 = vrot.slane %v1979, 3
        %v2062 = vsel %vm1130, %v2060, %v2061
        %v2063 = vrot.slane %v1977, 3
        %v2064 = vrot.slane %v1980, 3
        %v2065 = vsel %vm1130, %v2063, %v2064
        %v2066 = vrot.slane %v1978, 3
        %v2067 = vrot.slane %v1981, 3
        %v2068 = vsel %vm1130, %v2066, %v2067
        %v2069 = vrot.slane %v1982, 3
        %v2070 = vrot.slane %v1985, 3
        %v2071 = vsel %vm1130, %v2069, %v2070
        %v2072 = vrot.slane %v1983, 3
        %v2073 = vrot.slane %v1986, 3
        %v2074 = vsel %vm1130, %v2072, %v2073
        %v2075 = vrot.slane %v1984, 3
        %v2076 = vrot.slane %v1987, 3
        %v2077 = vsel %vm1130, %v2075, %v2076
        %v2078 = vrot.slane %v1988, 3
        %v2079 = vrot.slane %v1991, 3
        %v2080 = vsel %vm1130, %v2078, %v2079
        %v2081 = vrot.slane %v1989, 3
        %v2082 = vrot.slane %v1992, 3
        %v2083 = vsel %vm1130, %v2081, %v2082
        %v2084 = vrot.slane %v1990, 3
        %v2085 = vrot.slane %v1993, 3
        %v2086 = vsel %vm1130, %v2084, %v2085
        %v2087 = vrot.slane %v1994, 3
        %v2088 = vrot.slane %v1997, 3
        %v2089 = vsel %vm1130, %v2087, %v2088
        %v2090 = vrot.slane %v1995, 3
        %v2091 = vrot.slane %v1998, 3
        %v2092 = vsel %vm1130, %v2090, %v2091
        %v2093 = vrot.slane %v1996, 3
        %v2094 = vrot.slane %v1999, 3
        %v2095 = vsel %vm1130, %v2093, %v2094
        %v2096 = vrot.slane %v2000, 3
        %v2097 = vrot.slane %v2003, 3
        %v2098 = vsel %vm1130, %v2096, %v2097
        %v2099 = vrot.slane %v2001, 3
        %v2100 = vrot.slane %v2004, 3
        %v2101 = vsel %vm1130, %v2099, %v2100
        %v2102 = vrot.slane %v2002, 3
        %v2103 = vrot.slane %v2005, 3
        %v2104 = vsel %vm1130, %v2102, %v2103
        %v2105 = vrot.slane %v2006, 3
        %v2106 = vrot.slane %v2009, 3
        %v2107 = vsel %vm1130, %v2105, %v2106
        %v2108 = vrot.slane %v2007, 3
        %v2109 = vrot.slane %v2010, 3
        %v2110 = vsel %vm1130, %v2108, %v2109
        %v2111 = vrot.slane %v2008, 3
        %v2112 = vrot.slane %v2011, 3
        %v2113 = vsel %vm1130, %v2111, %v2112
        %v2114 = vrot.slane %v2012, 3
        %v2115 = vrot.slane %v2015, 3
        %v2116 = vsel %vm1130, %v2114, %v2115
        %v2117 = vrot.slane %v2013, 3
        %v2118 = vrot.slane %v2016, 3
        %v2119 = vsel %vm1130, %v2117, %v2118
        %v2120 = vrot.slane %v2014, 3
        %v2121 = vrot.slane %v2017, 3
        %v2122 = vsel %vm1130, %v2120, %v2121
        %v2144 = vadd.f32 %v1904, %v2062
        %v2145 = vadd.f32 %v1905, %v2065
        %v2146 = vadd.f32 %v1906, %v2068
        %v2147 = vadd.f32 %v1907, %v2071
        %v2148 = vadd.f32 %v1908, %v2074
        %v2149 = vadd.f32 %v1909, %v2077
        %v2150 = vadd.f32 %v1910, %v2080
        %v2151 = vadd.f32 %v1911, %v2083
        %v2152 = vadd.f32 %v1912, %v2086
        %v2153 = vadd.f32 %v1913, %v2089
        %v2154 = vadd.f32 %v1914, %v2092
        %v2155 = vadd.f32 %v1915, %v2095
        %v2156 = vadd.f32 %v1916, %v2098
        %v2157 = vadd.f32 %v1917, %v2101
        %v2158 = vadd.f32 %v1918, %v2104
        %v2159 = vadd.f32 %v1919, %v2107
        %v2160 = vadd.f32 %v1920, %v2110
        %v2161 = vadd.f32 %v1921, %v2113
        %v2162 = vadd.f32 %v1922, %v2116
        %v2163 = vadd.f32 %v1923, %v2119
        %v2164 = vadd.f32 %v1924, %v2122
        %v2165 = vld [vmem:[%s1477] sm:$0xf0]
        %v2166 = vld [vmem:[%s1477 + $0x8] sm:$0xf0]
        %v2167 = vld [vmem:[%s1477 + $0x10] sm:$0xf0]
        %v2168 = vld [vmem:[%s1477 + $0x18] sm:$0x7]
        %v2169 = vld [vmem:[%s1477 + $0x20] sm:$0x7]
        %v2170 = vld [vmem:[%s1477 + $0x28] sm:$0x7]
        %v2171 = vld [vmem:[%s1477 + $0x30] sm:$0xf0]
        %v2172 = vld [vmem:[%s1477 + $0x38] sm:$0xf0]
        %v2173 = vld [vmem:[%s1477 + $0x40] sm:$0xf0]
        %v2174 = vld [vmem:[%s1477 + $0x48] sm:$0x7]
        %v2175 = vld [vmem:[%s1477 + $0x50] sm:$0x7]
        %v2176 = vld [vmem:[%s1477 + $0x58] sm:$0x7]
        %v2177 = vld [vmem:[%s1477 + $0x60] sm:$0xf0]
        %v2178 = vld [vmem:[%s1477 + $0x68] sm:$0xf0]
        %v2179 = vld [vmem:[%s1477 + $0x70] sm:$0xf0]
        %v2180 = vld [vmem:[%s1477 + $0x78] sm:$0x7]
        %v2181 = vld [vmem:[%s1477 + $0x80] sm:$0x7]
        %v2182 = vld [vmem:[%s1477 + $0x88] sm:$0x7]
        %v2183 = vld [vmem:[%s1477 + $0x90] sm:$0xf0]
        %v2184 = vld [vmem:[%s1477 + $0x98] sm:$0xf0]
        %v2185 = vld [vmem:[%s1477 + $0xa0] sm:$0xf0]
        %v2186 = vld [vmem:[%s1477 + $0xa8] sm:$0x7]
        %v2187 = vld [vmem:[%s1477 + $0xb0] sm:$0x7]
        %v2188 = vld [vmem:[%s1477 + $0xb8] sm:$0x7]
        %v2189 = vld [vmem:[%s1477 + $0xc0] sm:$0xf0]
        %v2190 = vld [vmem:[%s1477 + $0xc8] sm:$0xf0]
        %v2191 = vld [vmem:[%s1477 + $0xd0] sm:$0xf0]
        %v2192 = vld [vmem:[%s1477 + $0xd8] sm:$0x7]
        %v2193 = vld [vmem:[%s1477 + $0xe0] sm:$0x7]
        %v2194 = vld [vmem:[%s1477 + $0xe8] sm:$0x7]
        %v2195 = vld [vmem:[%s1477 + $0xf0] sm:$0xf0]
        %v2196 = vld [vmem:[%s1477 + $0xf8] sm:$0xf0]
        %v2197 = vld [vmem:[%s1477 + $0x100] sm:$0xf0]
        %v2198 = vld [vmem:[%s1477 + $0x108] sm:$0x7]
        %v2199 = vld [vmem:[%s1477 + $0x110] sm:$0x7]
        %v2200 = vld [vmem:[%s1477 + $0x118] sm:$0x7]
        %v2201 = vld [vmem:[%s1477 + $0x120] sm:$0xf0]
        %v2202 = vld [vmem:[%s1477 + $0x128] sm:$0xf0]
        %v2203 = vld [vmem:[%s1477 + $0x130] sm:$0xf0]
        %v2204 = vld [vmem:[%s1477 + $0x138] sm:$0x7]
        %v2205 = vld [vmem:[%s1477 + $0x140] sm:$0x7]
        %v2206 = vld [vmem:[%s1477 + $0x148] sm:$0x7]
        %s2207 = scalar_lea.vmem %s308, 25 [#allocation4]
        %v2208 = vld [vmem:[%s2207] ss:$8 sm:$0x7]
        %v2210 = vperm.slane %v2208, 0
        %v2211 = vperm.slane %v2208, 1
        %v2212 = vperm.slane %v2208, 2
        %v2216 = vmul.f32 %v2165, %v2210
        %v2217 = vmul.f32 %v2166, %v2211
        %v2218 = vmul.f32 %v2167, %v2212
        %v2219 = vmul.f32 %v2168, %v2210
        %v2220 = vmul.f32 %v2169, %v2211
        %v2221 = vmul.f32 %v2170, %v2212
        %v2222 = vmul.f32 %v2171, %v2210
        %v2223 = vmul.f32 %v2172, %v2211
        %v2224 = vmul.f32 %v2173, %v2212
        %v2225 = vmul.f32 %v2174, %v2210
        %v2226 = vmul.f32 %v2175, %v2211
        %v2227 = vmul.f32 %v2176, %v2212
        %v2228 = vmul.f32 %v2177, %v2210
        %v2229 = vmul.f32 %v2178, %v2211
        %v2230 = vmul.f32 %v2179, %v2212
        %v2231 = vmul.f32 %v2180, %v2210
        %v2232 = vmul.f32 %v2181, %v2211
        %v2233 = vmul.f32 %v2182, %v2212
        %v2234 = vmul.f32 %v2183, %v2210
        %v2235 = vmul.f32 %v2184, %v2211
        %v2236 = vmul.f32 %v2185, %v2212
        %v2237 = vmul.f32 %v2186, %v2210
        %v2238 = vmul.f32 %v2187, %v2211
        %v2239 = vmul.f32 %v2188, %v2212
        %v2240 = vmul.f32 %v2189, %v2210
        %v2241 = vmul.f32 %v2190, %v2211
        %v2242 = vmul.f32 %v2191, %v2212
        %v2243 = vmul.f32 %v2192, %v2210
        %v2244 = vmul.f32 %v2193, %v2211
        %v2245 = vmul.f32 %v2194, %v2212
        %v2246 = vmul.f32 %v2195, %v2210
        %v2247 = vmul.f32 %v2196, %v2211
        %v2248 = vmul.f32 %v2197, %v2212
        %v2249 = vmul.f32 %v2198, %v2210
        %v2250 = vmul.f32 %v2199, %v2211
        %v2251 = vmul.f32 %v2200, %v2212
        %v2252 = vmul.f32 %v2201, %v2210
        %v2253 = vmul.f32 %v2202, %v2211
        %v2254 = vmul.f32 %v2203, %v2212
        %v2255 = vmul.f32 %v2204, %v2210
        %v2256 = vmul.f32 %v2205, %v2211
        %v2257 = vmul.f32 %v2206, %v2212
        %v2300 = vrot.slane %v2216, 4
        %v2301 = vrot.slane %v2219, 4
        %v2302 = vsel %vm1371, %v2300, %v2301
        %v2303 = vrot.slane %v2217, 4
        %v2304 = vrot.slane %v2220, 4
        %v2305 = vsel %vm1371, %v2303, %v2304
        %v2306 = vrot.slane %v2218, 4
        %v2307 = vrot.slane %v2221, 4
        %v2308 = vsel %vm1371, %v2306, %v2307
        %v2309 = vrot.slane %v2222, 4
        %v2310 = vrot.slane %v2225, 4
        %v2311 = vsel %vm1371, %v2309, %v2310
        %v2312 = vrot.slane %v2223, 4
        %v2313 = vrot.slane %v2226, 4
        %v2314 = vsel %vm1371, %v2312, %v2313
        %v2315 = vrot.slane %v2224, 4
        %v2316 = vrot.slane %v2227, 4
        %v2317 = vsel %vm1371, %v2315, %v2316
        %v2318 = vrot.slane %v2228, 4
        %v2319 = vrot.slane %v2231, 4
        %v2320 = vsel %vm1371, %v2318, %v2319
        %v2321 = vrot.slane %v2229, 4
        %v2322 = vrot.slane %v2232, 4
        %v2323 = vsel %vm1371, %v2321, %v2322
        %v2324 = vrot.slane %v2230, 4
        %v2325 = vrot.slane %v2233, 4
        %v2326 = vsel %vm1371, %v2324, %v2325
        %v2327 = vrot.slane %v2234, 4
        %v2328 = vrot.slane %v2237, 4
        %v2329 = vsel %vm1371, %v2327, %v2328
        %v2330 = vrot.slane %v2235, 4
        %v2331 = vrot.slane %v2238, 4
        %v2332 = vsel %vm1371, %v2330, %v2331
        %v2333 = vrot.slane %v2236, 4
        %v2334 = vrot.slane %v2239, 4
        %v2335 = vsel %vm1371, %v2333, %v2334
        %v2336 = vrot.slane %v2240, 4
        %v2337 = vrot.slane %v2243, 4
        %v2338 = vsel %vm1371, %v2336, %v2337
        %v2339 = vrot.slane %v2241, 4
        %v2340 = vrot.slane %v2244, 4
        %v2341 = vsel %vm1371, %v2339, %v2340
        %v2342 = vrot.slane %v2242, 4
        %v2343 = vrot.slane %v2245, 4
        %v2344 = vsel %vm1371, %v2342, %v2343
        %v2345 = vrot.slane %v2246, 4
        %v2346 = vrot.slane %v2249, 4
        %v2347 = vsel %vm1371, %v2345, %v2346
        %v2348 = vrot.slane %v2247, 4
        %v2349 = vrot.slane %v2250, 4
        %v2350 = vsel %vm1371, %v2348, %v2349
        %v2351 = vrot.slane %v2248, 4
        %v2352 = vrot.slane %v2251, 4
        %v2353 = vsel %vm1371, %v2351, %v2352
        %v2354 = vrot.slane %v2252, 4
        %v2355 = vrot.slane %v2255, 4
        %v2356 = vsel %vm1371, %v2354, %v2355
        %v2357 = vrot.slane %v2253, 4
        %v2358 = vrot.slane %v2256, 4
        %v2359 = vsel %vm1371, %v2357, %v2358
        %v2360 = vrot.slane %v2254, 4
        %v2361 = vrot.slane %v2257, 4
        %v2362 = vsel %vm1371, %v2360, %v2361
        %v2384 = vadd.f32 %v2144, %v2302
        %v2385 = vadd.f32 %v2145, %v2305
        %v2386 = vadd.f32 %v2146, %v2308
        %v2387 = vadd.f32 %v2147, %v2311
        %v2388 = vadd.f32 %v2148, %v2314
        %v2389 = vadd.f32 %v2149, %v2317
        %v2390 = vadd.f32 %v2150, %v2320
        %v2391 = vadd.f32 %v2151, %v2323
        %v2392 = vadd.f32 %v2152, %v2326
        %v2393 = vadd.f32 %v2153, %v2329
        %v2394 = vadd.f32 %v2154, %v2332
        %v2395 = vadd.f32 %v2155, %v2335
        %v2396 = vadd.f32 %v2156, %v2338
        %v2397 = vadd.f32 %v2157, %v2341
        %v2398 = vadd.f32 %v2158, %v2344
        %v2399 = vadd.f32 %v2159, %v2347
        %v2400 = vadd.f32 %v2160, %v2350
        %v2401 = vadd.f32 %v2161, %v2353
        %v2402 = vadd.f32 %v2162, %v2356
        %v2403 = vadd.f32 %v2163, %v2359
        %v2404 = vadd.f32 %v2164, %v2362
        %v2405 = vld [vmem:[%s505] sm:$0x7f]
        %v2406 = vld [vmem:[%s505 + $0x8] sm:$0x7f]
        %v2407 = vld [vmem:[%s505 + $0x10] sm:$0x7f]
        %v2408 = vld [vmem:[%s505 + $0x30] sm:$0x7f]
        %v2409 = vld [vmem:[%s505 + $0x38] sm:$0x7f]
        %v2410 = vld [vmem:[%s505 + $0x40] sm:$0x7f]
        %v2411 = vld [vmem:[%s505 + $0x60] sm:$0x7f]
        %v2412 = vld [vmem:[%s505 + $0x68] sm:$0x7f]
        %v2413 = vld [vmem:[%s505 + $0x70] sm:$0x7f]
        %v2414 = vld [vmem:[%s505 + $0x90] sm:$0x7f]
        %v2415 = vld [vmem:[%s505 + $0x98] sm:$0x7f]
        %v2416 = vld [vmem:[%s505 + $0xa0] sm:$0x7f]
        %v2417 = vld [vmem:[%s505 + $0xc0] sm:$0x7f]
        %v2418 = vld [vmem:[%s505 + $0xc8] sm:$0x7f]
        %v2419 = vld [vmem:[%s505 + $0xd0] sm:$0x7f]
        %v2420 = vld [vmem:[%s505 + $0xf0] sm:$0x7f]
        %v2421 = vld [vmem:[%s505 + $0xf8] sm:$0x7f]
        %v2422 = vld [vmem:[%s505 + $0x100] sm:$0x7f]
        %v2423 = vld [vmem:[%s505 + $0x120] sm:$0x7f]
        %v2424 = vld [vmem:[%s505 + $0x128] sm:$0x7f]
        %v2425 = vld [vmem:[%s505 + $0x130] sm:$0x7f]
        %s2426 = scalar_lea.vmem %s308, 26 [#allocation4]
        %v2427 = vld [vmem:[%s2426] ss:$8 sm:$0x7]
        %v2429 = vperm.slane %v2427, 0
        %v2430 = vperm.slane %v2427, 1
        %v2431 = vperm.slane %v2427, 2
        %v2435 = vmul.f32 %v2405, %v2429
        %v2436 = vmul.f32 %v2406, %v2430
        %v2437 = vmul.f32 %v2407, %v2431
        %v2438 = vmul.f32 %v2408, %v2429
        %v2439 = vmul.f32 %v2409, %v2430
        %v2440 = vmul.f32 %v2410, %v2431
        %v2441 = vmul.f32 %v2411, %v2429
        %v2442 = vmul.f32 %v2412, %v2430
        %v2443 = vmul.f32 %v2413, %v2431
        %v2444 = vmul.f32 %v2414, %v2429
        %v2445 = vmul.f32 %v2415, %v2430
        %v2446 = vmul.f32 %v2416, %v2431
        %v2447 = vmul.f32 %v2417, %v2429
        %v2448 = vmul.f32 %v2418, %v2430
        %v2449 = vmul.f32 %v2419, %v2431
        %v2450 = vmul.f32 %v2420, %v2429
        %v2451 = vmul.f32 %v2421, %v2430
        %v2452 = vmul.f32 %v2422, %v2431
        %v2453 = vmul.f32 %v2423, %v2429
        %v2454 = vmul.f32 %v2424, %v2430
        %v2455 = vmul.f32 %v2425, %v2431
        %v2456 = vadd.f32 %v2384, %v2435
        %v2457 = vadd.f32 %v2385, %v2436
        %v2458 = vadd.f32 %v2386, %v2437
        %v2459 = vadd.f32 %v2387, %v2438
        %v2460 = vadd.f32 %v2388, %v2439
        %v2461 = vadd.f32 %v2389, %v2440
        %v2462 = vadd.f32 %v2390, %v2441
        %v2463 = vadd.f32 %v2391, %v2442
        %v2464 = vadd.f32 %v2392, %v2443
        %v2465 = vadd.f32 %v2393, %v2444
        %v2466 = vadd.f32 %v2394, %v2445
        %v2467 = vadd.f32 %v2395, %v2446
        %v2468 = vadd.f32 %v2396, %v2447
        %v2469 = vadd.f32 %v2397, %v2448
        %v2470 = vadd.f32 %v2398, %v2449
        %v2471 = vadd.f32 %v2399, %v2450
        %v2472 = vadd.f32 %v2400, %v2451
        %v2473 = vadd.f32 %v2401, %v2452
        %v2474 = vadd.f32 %v2402, %v2453
        %v2475 = vadd.f32 %v2403, %v2454
        %v2476 = vadd.f32 %v2404, %v2455
        %v2477 = vld [vmem:[%s505] sm:$0xfe]
        %v2478 = vld [vmem:[%s505 + $0x8] sm:$0xfe]
        %v2479 = vld [vmem:[%s505 + $0x10] sm:$0xfe]
        %v2480 = vld [vmem:[%s505 + $0x30] sm:$0xfe]
        %v2481 = vld [vmem:[%s505 + $0x38] sm:$0xfe]
        %v2482 = vld [vmem:[%s505 + $0x40] sm:$0xfe]
        %v2483 = vld [vmem:[%s505 + $0x60] sm:$0xfe]
        %v2484 = vld [vmem:[%s505 + $0x68] sm:$0xfe]
        %v2485 = vld [vmem:[%s505 + $0x70] sm:$0xfe]
        %v2486 = vld [vmem:[%s505 + $0x90] sm:$0xfe]
        %v2487 = vld [vmem:[%s505 + $0x98] sm:$0xfe]
        %v2488 = vld [vmem:[%s505 + $0xa0] sm:$0xfe]
        %v2489 = vld [vmem:[%s505 + $0xc0] sm:$0xfe]
        %v2490 = vld [vmem:[%s505 + $0xc8] sm:$0xfe]
        %v2491 = vld [vmem:[%s505 + $0xd0] sm:$0xfe]
        %v2492 = vld [vmem:[%s505 + $0xf0] sm:$0xfe]
        %v2493 = vld [vmem:[%s505 + $0xf8] sm:$0xfe]
        %v2494 = vld [vmem:[%s505 + $0x100] sm:$0xfe]
        %v2495 = vld [vmem:[%s505 + $0x120] sm:$0xfe]
        %v2496 = vld [vmem:[%s505 + $0x128] sm:$0xfe]
        %v2497 = vld [vmem:[%s505 + $0x130] sm:$0xfe]
        %s2498 = scalar_lea.vmem %s308, 27 [#allocation4]
        %v2499 = vld [vmem:[%s2498] ss:$8 sm:$0x7]
        %v2501 = vperm.slane %v2499, 0
        %v2502 = vperm.slane %v2499, 1
        %v2503 = vperm.slane %v2499, 2
        %v2507 = vmul.f32 %v2477, %v2501
        %v2508 = vmul.f32 %v2478, %v2502
        %v2509 = vmul.f32 %v2479, %v2503
        %v2510 = vmul.f32 %v2480, %v2501
        %v2511 = vmul.f32 %v2481, %v2502
        %v2512 = vmul.f32 %v2482, %v2503
        %v2513 = vmul.f32 %v2483, %v2501
        %v2514 = vmul.f32 %v2484, %v2502
        %v2515 = vmul.f32 %v2485, %v2503
        %v2516 = vmul.f32 %v2486, %v2501
        %v2517 = vmul.f32 %v2487, %v2502
        %v2518 = vmul.f32 %v2488, %v2503
        %v2519 = vmul.f32 %v2489, %v2501
        %v2520 = vmul.f32 %v2490, %v2502
        %v2521 = vmul.f32 %v2491, %v2503
        %v2522 = vmul.f32 %v2492, %v2501
        %v2523 = vmul.f32 %v2493, %v2502
        %v2524 = vmul.f32 %v2494, %v2503
        %v2525 = vmul.f32 %v2495, %v2501
        %v2526 = vmul.f32 %v2496, %v2502
        %v2527 = vmul.f32 %v2497, %v2503
        %v2549 = vrot.slane %v2507, 1
        %v2550 = vrot.slane %v2508, 1
        %v2551 = vrot.slane %v2509, 1
        %v2552 = vrot.slane %v2510, 1
        %v2553 = vrot.slane %v2511, 1
        %v2554 = vrot.slane %v2512, 1
        %v2555 = vrot.slane %v2513, 1
        %v2556 = vrot.slane %v2514, 1
        %v2557 = vrot.slane %v2515, 1
        %v2558 = vrot.slane %v2516, 1
        %v2559 = vrot.slane %v2517, 1
        %v2560 = vrot.slane %v2518, 1
        %v2561 = vrot.slane %v2519, 1
        %v2562 = vrot.slane %v2520, 1
        %v2563 = vrot.slane %v2521, 1
        %v2564 = vrot.slane %v2522, 1
        %v2565 = vrot.slane %v2523, 1
        %v2566 = vrot.slane %v2524, 1
        %v2567 = vrot.slane %v2525, 1
        %v2568 = vrot.slane %v2526, 1
        %v2569 = vrot.slane %v2527, 1
        %v2591 = vadd.f32 %v2456, %v2549
        %v2592 = vadd.f32 %v2457, %v2550
        %v2593 = vadd.f32 %v2458, %v2551
        %v2594 = vadd.f32 %v2459, %v2552
        %v2595 = vadd.f32 %v2460, %v2553
        %v2596 = vadd.f32 %v2461, %v2554
        %v2597 = vadd.f32 %v2462, %v2555
        %v2598 = vadd.f32 %v2463, %v2556
        %v2599 = vadd.f32 %v2464, %v2557
        %v2600 = vadd.f32 %v2465, %v2558
        %v2601 = vadd.f32 %v2466, %v2559
        %v2602 = vadd.f32 %v2467, %v2560
        %v2603 = vadd.f32 %v2468, %v2561
        %v2604 = vadd.f32 %v2469, %v2562
        %v2605 = vadd.f32 %v2470, %v2563
        %v2606 = vadd.f32 %v2471, %v2564
        %v2607 = vadd.f32 %v2472, %v2565
        %v2608 = vadd.f32 %v2473, %v2566
        %v2609 = vadd.f32 %v2474, %v2567
        %v2610 = vadd.f32 %v2475, %v2568
        %v2611 = vadd.f32 %v2476, %v2569
        %v2612 = vld [vmem:[%s505] sm:$0xfc]
        %v2613 = vld [vmem:[%s505 + $0x8] sm:$0xfc]
        %v2614 = vld [vmem:[%s505 + $0x10] sm:$0xfc]
        %v2615 = vld [vmem:[%s505 + $0x18] sm:$0x1]
        %v2616 = vld [vmem:[%s505 + $0x20] sm:$0x1]
        %v2617 = vld [vmem:[%s505 + $0x28] sm:$0x1]
        %v2618 = vld [vmem:[%s505 + $0x30] sm:$0xfc]
        %v2619 = vld [vmem:[%s505 + $0x38] sm:$0xfc]
        %v2620 = vld [vmem:[%s505 + $0x40] sm:$0xfc]
        %v2621 = vld [vmem:[%s505 + $0x48] sm:$0x1]
        %v2622 = vld [vmem:[%s505 + $0x50] sm:$0x1]
        %v2623 = vld [vmem:[%s505 + $0x58] sm:$0x1]
        %v2624 = vld [vmem:[%s505 + $0x60] sm:$0xfc]
        %v2625 = vld [vmem:[%s505 + $0x68] sm:$0xfc]
        %v2626 = vld [vmem:[%s505 + $0x70] sm:$0xfc]
        %v2627 = vld [vmem:[%s505 + $0x78] sm:$0x1]
        %v2628 = vld [vmem:[%s505 + $0x80] sm:$0x1]
        %v2629 = vld [vmem:[%s505 + $0x88] sm:$0x1]
        %v2630 = vld [vmem:[%s505 + $0x90] sm:$0xfc]
        %v2631 = vld [vmem:[%s505 + $0x98] sm:$0xfc]
        %v2632 = vld [vmem:[%s505 + $0xa0] sm:$0xfc]
        %v2633 = vld [vmem:[%s505 + $0xa8] sm:$0x1]
        %v2634 = vld [vmem:[%s505 + $0xb0] sm:$0x1]
        %v2635 = vld [vmem:[%s505 + $0xb8] sm:$0x1]
        %v2636 = vld [vmem:[%s505 + $0xc0] sm:$0xfc]
        %v2637 = vld [vmem:[%s505 + $0xc8] sm:$0xfc]
        %v2638 = vld [vmem:[%s505 + $0xd0] sm:$0xfc]
        %v2639 = vld [vmem:[%s505 + $0xd8] sm:$0x1]
        %v2640 = vld [vmem:[%s505 + $0xe0] sm:$0x1]
        %v2641 = vld [vmem:[%s505 + $0xe8] sm:$0x1]
        %v2642 = vld [vmem:[%s505 + $0xf0] sm:$0xfc]
        %v2643 = vld [vmem:[%s505 + $0xf8] sm:$0xfc]
        %v2644 = vld [vmem:[%s505 + $0x100] sm:$0xfc]
        %v2645 = vld [vmem:[%s505 + $0x108] sm:$0x1]
        %v2646 = vld [vmem:[%s505 + $0x110] sm:$0x1]
        %v2647 = vld [vmem:[%s505 + $0x118] sm:$0x1]
        %v2648 = vld [vmem:[%s505 + $0x120] sm:$0xfc]
        %v2649 = vld [vmem:[%s505 + $0x128] sm:$0xfc]
        %v2650 = vld [vmem:[%s505 + $0x130] sm:$0xfc]
        %v2651 = vld [vmem:[%s505 + $0x138] sm:$0x1]
        %v2652 = vld [vmem:[%s505 + $0x140] sm:$0x1]
        %v2653 = vld [vmem:[%s505 + $0x148] sm:$0x1]
        %s2654 = scalar_lea.vmem %s308, 28 [#allocation4]
        %v2655 = vld [vmem:[%s2654] ss:$8 sm:$0x7]
        %v2657 = vperm.slane %v2655, 0
        %v2658 = vperm.slane %v2655, 1
        %v2659 = vperm.slane %v2655, 2
        %v2663 = vmul.f32 %v2612, %v2657
        %v2664 = vmul.f32 %v2613, %v2658
        %v2665 = vmul.f32 %v2614, %v2659
        %v2666 = vmul.f32 %v2615, %v2657
        %v2667 = vmul.f32 %v2616, %v2658
        %v2668 = vmul.f32 %v2617, %v2659
        %v2669 = vmul.f32 %v2618, %v2657
        %v2670 = vmul.f32 %v2619, %v2658
        %v2671 = vmul.f32 %v2620, %v2659
        %v2672 = vmul.f32 %v2621, %v2657
        %v2673 = vmul.f32 %v2622, %v2658
        %v2674 = vmul.f32 %v2623, %v2659
        %v2675 = vmul.f32 %v2624, %v2657
        %v2676 = vmul.f32 %v2625, %v2658
        %v2677 = vmul.f32 %v2626, %v2659
        %v2678 = vmul.f32 %v2627, %v2657
        %v2679 = vmul.f32 %v2628, %v2658
        %v2680 = vmul.f32 %v2629, %v2659
        %v2681 = vmul.f32 %v2630, %v2657
        %v2682 = vmul.f32 %v2631, %v2658
        %v2683 = vmul.f32 %v2632, %v2659
        %v2684 = vmul.f32 %v2633, %v2657
        %v2685 = vmul.f32 %v2634, %v2658
        %v2686 = vmul.f32 %v2635, %v2659
        %v2687 = vmul.f32 %v2636, %v2657
        %v2688 = vmul.f32 %v2637, %v2658
        %v2689 = vmul.f32 %v2638, %v2659
        %v2690 = vmul.f32 %v2639, %v2657
        %v2691 = vmul.f32 %v2640, %v2658
        %v2692 = vmul.f32 %v2641, %v2659
        %v2693 = vmul.f32 %v2642, %v2657
        %v2694 = vmul.f32 %v2643, %v2658
        %v2695 = vmul.f32 %v2644, %v2659
        %v2696 = vmul.f32 %v2645, %v2657
        %v2697 = vmul.f32 %v2646, %v2658
        %v2698 = vmul.f32 %v2647, %v2659
        %v2699 = vmul.f32 %v2648, %v2657
        %v2700 = vmul.f32 %v2649, %v2658
        %v2701 = vmul.f32 %v2650, %v2659
        %v2702 = vmul.f32 %v2651, %v2657
        %v2703 = vmul.f32 %v2652, %v2658
        %v2704 = vmul.f32 %v2653, %v2659
        %v2747 = vrot.slane %v2663, 2
        %v2748 = vrot.slane %v2666, 2
        %v2749 = vsel %vm889, %v2747, %v2748
        %v2750 = vrot.slane %v2664, 2
        %v2751 = vrot.slane %v2667, 2
        %v2752 = vsel %vm889, %v2750, %v2751
        %v2753 = vrot.slane %v2665, 2
        %v2754 = vrot.slane %v2668, 2
        %v2755 = vsel %vm889, %v2753, %v2754
        %v2756 = vrot.slane %v2669, 2
        %v2757 = vrot.slane %v2672, 2
        %v2758 = vsel %vm889, %v2756, %v2757
        %v2759 = vrot.slane %v2670, 2
        %v2760 = vrot.slane %v2673, 2
        %v2761 = vsel %vm889, %v2759, %v2760
        %v2762 = vrot.slane %v2671, 2
        %v2763 = vrot.slane %v2674, 2
        %v2764 = vsel %vm889, %v2762, %v2763
        %v2765 = vrot.slane %v2675, 2
        %v2766 = vrot.slane %v2678, 2
        %v2767 = vsel %vm889, %v2765, %v2766
        %v2768 = vrot.slane %v2676, 2
        %v2769 = vrot.slane %v2679, 2
        %v2770 = vsel %vm889, %v2768, %v2769
        %v2771 = vrot.slane %v2677, 2
        %v2772 = vrot.slane %v2680, 2
        %v2773 = vsel %vm889, %v2771, %v2772
        %v2774 = vrot.slane %v2681, 2
        %v2775 = vrot.slane %v2684, 2
        %v2776 = vsel %vm889, %v2774, %v2775
        %v2777 = vrot.slane %v2682, 2
        %v2778 = vrot.slane %v2685, 2
        %v2779 = vsel %vm889, %v2777, %v2778
        %v2780 = vrot.slane %v2683, 2
        %v2781 = vrot.slane %v2686, 2
        %v2782 = vsel %vm889, %v2780, %v2781
        %v2783 = vrot.slane %v2687, 2
        %v2784 = vrot.slane %v2690, 2
        %v2785 = vsel %vm889, %v2783, %v2784
        %v2786 = vrot.slane %v2688, 2
        %v2787 = vrot.slane %v2691, 2
        %v2788 = vsel %vm889, %v2786, %v2787
        %v2789 = vrot.slane %v2689, 2
        %v2790 = vrot.slane %v2692, 2
        %v2791 = vsel %vm889, %v2789, %v2790
        %v2792 = vrot.slane %v2693, 2
        %v2793 = vrot.slane %v2696, 2
        %v2794 = vsel %vm889, %v2792, %v2793
        %v2795 = vrot.slane %v2694, 2
        %v2796 = vrot.slane %v2697, 2
        %v2797 = vsel %vm889, %v2795, %v2796
        %v2798 = vrot.slane %v2695, 2
        %v2799 = vrot.slane %v2698, 2
        %v2800 = vsel %vm889, %v2798, %v2799
        %v2801 = vrot.slane %v2699, 2
        %v2802 = vrot.slane %v2702, 2
        %v2803 = vsel %vm889, %v2801, %v2802
        %v2804 = vrot.slane %v2700, 2
        %v2805 = vrot.slane %v2703, 2
        %v2806 = vsel %vm889, %v2804, %v2805
        %v2807 = vrot.slane %v2701, 2
        %v2808 = vrot.slane %v2704, 2
        %v2809 = vsel %vm889, %v2807, %v2808
        %v2831 = vadd.f32 %v2591, %v2749
        %v2832 = vadd.f32 %v2592, %v2752
        %v2833 = vadd.f32 %v2593, %v2755
        %v2834 = vadd.f32 %v2594, %v2758
        %v2835 = vadd.f32 %v2595, %v2761
        %v2836 = vadd.f32 %v2596, %v2764
        %v2837 = vadd.f32 %v2597, %v2767
        %v2838 = vadd.f32 %v2598, %v2770
        %v2839 = vadd.f32 %v2599, %v2773
        %v2840 = vadd.f32 %v2600, %v2776
        %v2841 = vadd.f32 %v2601, %v2779
        %v2842 = vadd.f32 %v2602, %v2782
        %v2843 = vadd.f32 %v2603, %v2785
        %v2844 = vadd.f32 %v2604, %v2788
        %v2845 = vadd.f32 %v2605, %v2791
        %v2846 = vadd.f32 %v2606, %v2794
        %v2847 = vadd.f32 %v2607, %v2797
        %v2848 = vadd.f32 %v2608, %v2800
        %v2849 = vadd.f32 %v2609, %v2803
        %v2850 = vadd.f32 %v2610, %v2806
        %v2851 = vadd.f32 %v2611, %v2809
        %v2852 = vld [vmem:[%s505] sm:$0xf8]
        %v2853 = vld [vmem:[%s505 + $0x8] sm:$0xf8]
        %v2854 = vld [vmem:[%s505 + $0x10] sm:$0xf8]
        %v2855 = vld [vmem:[%s505 + $0x18] sm:$0x3]
        %v2856 = vld [vmem:[%s505 + $0x20] sm:$0x3]
        %v2857 = vld [vmem:[%s505 + $0x28] sm:$0x3]
        %v2858 = vld [vmem:[%s505 + $0x30] sm:$0xf8]
        %v2859 = vld [vmem:[%s505 + $0x38] sm:$0xf8]
        %v2860 = vld [vmem:[%s505 + $0x40] sm:$0xf8]
        %v2861 = vld [vmem:[%s505 + $0x48] sm:$0x3]
        %v2862 = vld [vmem:[%s505 + $0x50] sm:$0x3]
        %v2863 = vld [vmem:[%s505 + $0x58] sm:$0x3]
        %v2864 = vld [vmem:[%s505 + $0x60] sm:$0xf8]
        %v2865 = vld [vmem:[%s505 + $0x68] sm:$0xf8]
        %v2866 = vld [vmem:[%s505 + $0x70] sm:$0xf8]
        %v2867 = vld [vmem:[%s505 + $0x78] sm:$0x3]
        %v2868 = vld [vmem:[%s505 + $0x80] sm:$0x3]
        %v2869 = vld [vmem:[%s505 + $0x88] sm:$0x3]
        %v2870 = vld [vmem:[%s505 + $0x90] sm:$0xf8]
        %v2871 = vld [vmem:[%s505 + $0x98] sm:$0xf8]
        %v2872 = vld [vmem:[%s505 + $0xa0] sm:$0xf8]
        %v2873 = vld [vmem:[%s505 + $0xa8] sm:$0x3]
        %v2874 = vld [vmem:[%s505 + $0xb0] sm:$0x3]
        %v2875 = vld [vmem:[%s505 + $0xb8] sm:$0x3]
        %v2876 = vld [vmem:[%s505 + $0xc0] sm:$0xf8]
        %v2877 = vld [vmem:[%s505 + $0xc8] sm:$0xf8]
        %v2878 = vld [vmem:[%s505 + $0xd0] sm:$0xf8]
        %v2879 = vld [vmem:[%s505 + $0xd8] sm:$0x3]
        %v2880 = vld [vmem:[%s505 + $0xe0] sm:$0x3]
        %v2881 = vld [vmem:[%s505 + $0xe8] sm:$0x3]
        %v2882 = vld [vmem:[%s505 + $0xf0] sm:$0xf8]
        %v2883 = vld [vmem:[%s505 + $0xf8] sm:$0xf8]
        %v2884 = vld [vmem:[%s505 + $0x100] sm:$0xf8]
        %v2885 = vld [vmem:[%s505 + $0x108] sm:$0x3]
        %v2886 = vld [vmem:[%s505 + $0x110] sm:$0x3]
        %v2887 = vld [vmem:[%s505 + $0x118] sm:$0x3]
        %v2888 = vld [vmem:[%s505 + $0x120] sm:$0xf8]
        %v2889 = vld [vmem:[%s505 + $0x128] sm:$0xf8]
        %v2890 = vld [vmem:[%s505 + $0x130] sm:$0xf8]
        %v2891 = vld [vmem:[%s505 + $0x138] sm:$0x3]
        %v2892 = vld [vmem:[%s505 + $0x140] sm:$0x3]
        %v2893 = vld [vmem:[%s505 + $0x148] sm:$0x3]
        %s2894 = scalar_lea.vmem %s308, 29 [#allocation4]
        %v2895 = vld [vmem:[%s2894] ss:$8 sm:$0x7]
        %v2897 = vperm.slane %v2895, 0
        %v2898 = vperm.slane %v2895, 1
        %v2899 = vperm.slane %v2895, 2
        %v2903 = vmul.f32 %v2852, %v2897
        %v2904 = vmul.f32 %v2853, %v2898
        %v2905 = vmul.f32 %v2854, %v2899
        %v2906 = vmul.f32 %v2855, %v2897
        %v2907 = vmul.f32 %v2856, %v2898
        %v2908 = vmul.f32 %v2857, %v2899
        %v2909 = vmul.f32 %v2858, %v2897
        %v2910 = vmul.f32 %v2859, %v2898
        %v2911 = vmul.f32 %v2860, %v2899
        %v2912 = vmul.f32 %v2861, %v2897
        %v2913 = vmul.f32 %v2862, %v2898
        %v2914 = vmul.f32 %v2863, %v2899
        %v2915 = vmul.f32 %v2864, %v2897
        %v2916 = vmul.f32 %v2865, %v2898
        %v2917 = vmul.f32 %v2866, %v2899
        %v2918 = vmul.f32 %v2867, %v2897
        %v2919 = vmul.f32 %v2868, %v2898
        %v2920 = vmul.f32 %v2869, %v2899
        %v2921 = vmul.f32 %v2870, %v2897
        %v2922 = vmul.f32 %v2871, %v2898
        %v2923 = vmul.f32 %v2872, %v2899
        %v2924 = vmul.f32 %v2873, %v2897
        %v2925 = vmul.f32 %v2874, %v2898
        %v2926 = vmul.f32 %v2875, %v2899
        %v2927 = vmul.f32 %v2876, %v2897
        %v2928 = vmul.f32 %v2877, %v2898
        %v2929 = vmul.f32 %v2878, %v2899
        %v2930 = vmul.f32 %v2879, %v2897
        %v2931 = vmul.f32 %v2880, %v2898
        %v2932 = vmul.f32 %v2881, %v2899
        %v2933 = vmul.f32 %v2882, %v2897
        %v2934 = vmul.f32 %v2883, %v2898
        %v2935 = vmul.f32 %v2884, %v2899
        %v2936 = vmul.f32 %v2885, %v2897
        %v2937 = vmul.f32 %v2886, %v2898
        %v2938 = vmul.f32 %v2887, %v2899
        %v2939 = vmul.f32 %v2888, %v2897
        %v2940 = vmul.f32 %v2889, %v2898
        %v2941 = vmul.f32 %v2890, %v2899
        %v2942 = vmul.f32 %v2891, %v2897
        %v2943 = vmul.f32 %v2892, %v2898
        %v2944 = vmul.f32 %v2893, %v2899
        %v2987 = vrot.slane %v2903, 3
        %v2988 = vrot.slane %v2906, 3
        %v2989 = vsel %vm1130, %v2987, %v2988
        %v2990 = vrot.slane %v2904, 3
        %v2991 = vrot.slane %v2907, 3
        %v2992 = vsel %vm1130, %v2990, %v2991
        %v2993 = vrot.slane %v2905, 3
        %v2994 = vrot.slane %v2908, 3
        %v2995 = vsel %vm1130, %v2993, %v2994
        %v2996 = vrot.slane %v2909, 3
        %v2997 = vrot.slane %v2912, 3
        %v2998 = vsel %vm1130, %v2996, %v2997
        %v2999 = vrot.slane %v2910, 3
        %v3000 = vrot.slane %v2913, 3
        %v3001 = vsel %vm1130, %v2999, %v3000
        %v3002 = vrot.slane %v2911, 3
        %v3003 = vrot.slane %v2914, 3
        %v3004 = vsel %vm1130, %v3002, %v3003
        %v3005 = vrot.slane %v2915, 3
        %v3006 = vrot.slane %v2918, 3
        %v3007 = vsel %vm1130, %v3005, %v3006
        %v3008 = vrot.slane %v2916, 3
        %v3009 = vrot.slane %v2919, 3
        %v3010 = vsel %vm1130, %v3008, %v3009
        %v3011 = vrot.slane %v2917, 3
        %v3012 = vrot.slane %v2920, 3
        %v3013 = vsel %vm1130, %v3011, %v3012
        %v3014 = vrot.slane %v2921, 3
        %v3015 = vrot.slane %v2924, 3
        %v3016 = vsel %vm1130, %v3014, %v3015
        %v3017 = vrot.slane %v2922, 3
        %v3018 = vrot.slane %v2925, 3
        %v3019 = vsel %vm1130, %v3017, %v3018
        %v3020 = vrot.slane %v2923, 3
        %v3021 = vrot.slane %v2926, 3
        %v3022 = vsel %vm1130, %v3020, %v3021
        %v3023 = vrot.slane %v2927, 3
        %v3024 = vrot.slane %v2930, 3
        %v3025 = vsel %vm1130, %v3023, %v3024
        %v3026 = vrot.slane %v2928, 3
        %v3027 = vrot.slane %v2931, 3
        %v3028 = vsel %vm1130, %v3026, %v3027
        %v3029 = vrot.slane %v2929, 3
        %v3030 = vrot.slane %v2932, 3
        %v3031 = vsel %vm1130, %v3029, %v3030
        %v3032 = vrot.slane %v2933, 3
        %v3033 = vrot.slane %v2936, 3
        %v3034 = vsel %vm1130, %v3032, %v3033
        %v3035 = vrot.slane %v2934, 3
        %v3036 = vrot.slane %v2937, 3
        %v3037 = vsel %vm1130, %v3035, %v3036
        %v3038 = vrot.slane %v2935, 3
        %v3039 = vrot.slane %v2938, 3
        %v3040 = vsel %vm1130, %v3038, %v3039
        %v3041 = vrot.slane %v2939, 3
        %v3042 = vrot.slane %v2942, 3
        %v3043 = vsel %vm1130, %v3041, %v3042
        %v3044 = vrot.slane %v2940, 3
        %v3045 = vrot.slane %v2943, 3
        %v3046 = vsel %vm1130, %v3044, %v3045
        %v3047 = vrot.slane %v2941, 3
        %v3048 = vrot.slane %v2944, 3
        %v3049 = vsel %vm1130, %v3047, %v3048
        %v3071 = vadd.f32 %v2831, %v2989
        %v3072 = vadd.f32 %v2832, %v2992
        %v3073 = vadd.f32 %v2833, %v2995
        %v3074 = vadd.f32 %v2834, %v2998
        %v3075 = vadd.f32 %v2835, %v3001
        %v3076 = vadd.f32 %v2836, %v3004
        %v3077 = vadd.f32 %v2837, %v3007
        %v3078 = vadd.f32 %v2838, %v3010
        %v3079 = vadd.f32 %v2839, %v3013
        %v3080 = vadd.f32 %v2840, %v3016
        %v3081 = vadd.f32 %v2841, %v3019
        %v3082 = vadd.f32 %v2842, %v3022
        %v3083 = vadd.f32 %v2843, %v3025
        %v3084 = vadd.f32 %v2844, %v3028
        %v3085 = vadd.f32 %v2845, %v3031
        %v3086 = vadd.f32 %v2846, %v3034
        %v3087 = vadd.f32 %v2847, %v3037
        %v3088 = vadd.f32 %v2848, %v3040
        %v3089 = vadd.f32 %v2849, %v3043
        %v3090 = vadd.f32 %v2850, %v3046
        %v3091 = vadd.f32 %v2851, %v3049
        %v3092 = vld [vmem:[%s505] sm:$0xf0]
        %v3093 = vld [vmem:[%s505 + $0x8] sm:$0xf0]
        %v3094 = vld [vmem:[%s505 + $0x10] sm:$0xf0]
        %v3095 = vld [vmem:[%s505 + $0x18] sm:$0x7]
        %v3096 = vld [vmem:[%s505 + $0x20] sm:$0x7]
        %v3097 = vld [vmem:[%s505 + $0x28] sm:$0x7]
        %v3098 = vld [vmem:[%s505 + $0x30] sm:$0xf0]
        %v3099 = vld [vmem:[%s505 + $0x38] sm:$0xf0]
        %v3100 = vld [vmem:[%s505 + $0x40] sm:$0xf0]
        %v3101 = vld [vmem:[%s505 + $0x48] sm:$0x7]
        %v3102 = vld [vmem:[%s505 + $0x50] sm:$0x7]
        %v3103 = vld [vmem:[%s505 + $0x58] sm:$0x7]
        %v3104 = vld [vmem:[%s505 + $0x60] sm:$0xf0]
        %v3105 = vld [vmem:[%s505 + $0x68] sm:$0xf0]
        %v3106 = vld [vmem:[%s505 + $0x70] sm:$0xf0]
        %v3107 = vld [vmem:[%s505 + $0x78] sm:$0x7]
        %v3108 = vld [vmem:[%s505 + $0x80] sm:$0x7]
        %v3109 = vld [vmem:[%s505 + $0x88] sm:$0x7]
        %v3110 = vld [vmem:[%s505 + $0x90] sm:$0xf0]
        %v3111 = vld [vmem:[%s505 + $0x98] sm:$0xf0]
        %v3112 = vld [vmem:[%s505 + $0xa0] sm:$0xf0]
        %v3113 = vld [vmem:[%s505 + $0xa8] sm:$0x7]
        %v3114 = vld [vmem:[%s505 + $0xb0] sm:$0x7]
        %v3115 = vld [vmem:[%s505 + $0xb8] sm:$0x7]
        %v3116 = vld [vmem:[%s505 + $0xc0] sm:$0xf0]
        %v3117 = vld [vmem:[%s505 + $0xc8] sm:$0xf0]
        %v3118 = vld [vmem:[%s505 + $0xd0] sm:$0xf0]
        %v3119 = vld [vmem:[%s505 + $0xd8] sm:$0x7]
        %v3120 = vld [vmem:[%s505 + $0xe0] sm:$0x7]
        %v3121 = vld [vmem:[%s505 + $0xe8] sm:$0x7]
        %v3122 = vld [vmem:[%s505 + $0xf0] sm:$0xf0]
        %v3123 = vld [vmem:[%s505 + $0xf8] sm:$0xf0]
        %v3124 = vld [vmem:[%s505 + $0x100] sm:$0xf0]
        %v3125 = vld [vmem:[%s505 + $0x108] sm:$0x7]
        %v3126 = vld [vmem:[%s505 + $0x110] sm:$0x7]
        %v3127 = vld [vmem:[%s505 + $0x118] sm:$0x7]
        %v3128 = vld [vmem:[%s505 + $0x120] sm:$0xf0]
        %v3129 = vld [vmem:[%s505 + $0x128] sm:$0xf0]
        %v3130 = vld [vmem:[%s505 + $0x130] sm:$0xf0]
        %v3131 = vld [vmem:[%s505 + $0x138] sm:$0x7]
        %v3132 = vld [vmem:[%s505 + $0x140] sm:$0x7]
        %v3133 = vld [vmem:[%s505 + $0x148] sm:$0x7]
        %s3134 = scalar_lea.vmem %s308, 30 [#allocation4]
        %v3135 = vld [vmem:[%s3134] ss:$8 sm:$0x7]
        %v3137 = vperm.slane %v3135, 0
        %v3138 = vperm.slane %v3135, 1
        %v3139 = vperm.slane %v3135, 2
        %v3143 = vmul.f32 %v3092, %v3137
        %v3144 = vmul.f32 %v3093, %v3138
        %v3145 = vmul.f32 %v3094, %v3139
        %v3146 = vmul.f32 %v3095, %v3137
        %v3147 = vmul.f32 %v3096, %v3138
        %v3148 = vmul.f32 %v3097, %v3139
        %v3149 = vmul.f32 %v3098, %v3137
        %v3150 = vmul.f32 %v3099, %v3138
        %v3151 = vmul.f32 %v3100, %v3139
        %v3152 = vmul.f32 %v3101, %v3137
        %v3153 = vmul.f32 %v3102, %v3138
        %v3154 = vmul.f32 %v3103, %v3139
        %v3155 = vmul.f32 %v3104, %v3137
        %v3156 = vmul.f32 %v3105, %v3138
        %v3157 = vmul.f32 %v3106, %v3139
        %v3158 = vmul.f32 %v3107, %v3137
        %v3159 = vmul.f32 %v3108, %v3138
        %v3160 = vmul.f32 %v3109, %v3139
        %v3161 = vmul.f32 %v3110, %v3137
        %v3162 = vmul.f32 %v3111, %v3138
        %v3163 = vmul.f32 %v3112, %v3139
        %v3164 = vmul.f32 %v3113, %v3137
        %v3165 = vmul.f32 %v3114, %v3138
        %v3166 = vmul.f32 %v3115, %v3139
        %v3167 = vmul.f32 %v3116, %v3137
        %v3168 = vmul.f32 %v3117, %v3138
        %v3169 = vmul.f32 %v3118, %v3139
        %v3170 = vmul.f32 %v3119, %v3137
        %v3171 = vmul.f32 %v3120, %v3138
        %v3172 = vmul.f32 %v3121, %v3139
        %v3173 = vmul.f32 %v3122, %v3137
        %v3174 = vmul.f32 %v3123, %v3138
        %v3175 = vmul.f32 %v3124, %v3139
        %v3176 = vmul.f32 %v3125, %v3137
        %v3177 = vmul.f32 %v3126, %v3138
        %v3178 = vmul.f32 %v3127, %v3139
        %v3179 = vmul.f32 %v3128, %v3137
        %v3180 = vmul.f32 %v3129, %v3138
        %v3181 = vmul.f32 %v3130, %v3139
        %v3182 = vmul.f32 %v3131, %v3137
        %v3183 = vmul.f32 %v3132, %v3138
        %v3184 = vmul.f32 %v3133, %v3139
        %v3227 = vrot.slane %v3143, 4
        %v3228 = vrot.slane %v3146, 4
        %v3229 = vsel %vm1371, %v3227, %v3228
        %v3230 = vrot.slane %v3144, 4
        %v3231 = vrot.slane %v3147, 4
        %v3232 = vsel %vm1371, %v3230, %v3231
        %v3233 = vrot.slane %v3145, 4
        %v3234 = vrot.slane %v3148, 4
        %v3235 = vsel %vm1371, %v3233, %v3234
        %v3236 = vrot.slane %v3149, 4
        %v3237 = vrot.slane %v3152, 4
        %v3238 = vsel %vm1371, %v3236, %v3237
        %v3239 = vrot.slane %v3150, 4
        %v3240 = vrot.slane %v3153, 4
        %v3241 = vsel %vm1371, %v3239, %v3240
        %v3242 = vrot.slane %v3151, 4
        %v3243 = vrot.slane %v3154, 4
        %v3244 = vsel %vm1371, %v3242, %v3243
        %v3245 = vrot.slane %v3155, 4
        %v3246 = vrot.slane %v3158, 4
        %v3247 = vsel %vm1371, %v3245, %v3246
        %v3248 = vrot.slane %v3156, 4
        %v3249 = vrot.slane %v3159, 4
        %v3250 = vsel %vm1371, %v3248, %v3249
        %v3251 = vrot.slane %v3157, 4
        %v3252 = vrot.slane %v3160, 4
        %v3253 = vsel %vm1371, %v3251, %v3252
        %v3254 = vrot.slane %v3161, 4
        %v3255 = vrot.slane %v3164, 4
        %v3256 = vsel %vm1371, %v3254, %v3255
        %v3257 = vrot.slane %v3162, 4
        %v3258 = vrot.slane %v3165, 4
        %v3259 = vsel %vm1371, %v3257, %v3258
        %v3260 = vrot.slane %v3163, 4
        %v3261 = vrot.slane %v3166, 4
        %v3262 = vsel %vm1371, %v3260, %v3261
        %v3263 = vrot.slane %v3167, 4
        %v3264 = vrot.slane %v3170, 4
        %v3265 = vsel %vm1371, %v3263, %v3264
        %v3266 = vrot.slane %v3168, 4
        %v3267 = vrot.slane %v3171, 4
        %v3268 = vsel %vm1371, %v3266, %v3267
        %v3269 = vrot.slane %v3169, 4
        %v3270 = vrot.slane %v3172, 4
        %v3271 = vsel %vm1371, %v3269, %v3270
        %v3272 = vrot.slane %v3173, 4
        %v3273 = vrot.slane %v3176, 4
        %v3274 = vsel %vm1371, %v3272, %v3273
        %v3275 = vrot.slane %v3174, 4
        %v3276 = vrot.slane %v3177, 4
        %v3277 = vsel %vm1371, %v3275, %v3276
        %v3278 = vrot.slane %v3175, 4
        %v3279 = vrot.slane %v3178, 4
        %v3280 = vsel %vm1371, %v3278, %v3279
        %v3281 = vrot.slane %v3179, 4
        %v3282 = vrot.slane %v3182, 4
        %v3283 = vsel %vm1371, %v3281, %v3282
        %v3284 = vrot.slane %v3180, 4
        %v3285 = vrot.slane %v3183, 4
        %v3286 = vsel %vm1371, %v3284, %v3285
        %v3287 = vrot.slane %v3181, 4
        %v3288 = vrot.slane %v3184, 4
        %v3289 = vsel %vm1371, %v3287, %v3288
        %v3311 = vadd.f32 %v3071, %v3229
        %v3312 = vadd.f32 %v3072, %v3232
        %v3313 = vadd.f32 %v3073, %v3235
        %v3314 = vadd.f32 %v3074, %v3238
        %v3315 = vadd.f32 %v3075, %v3241
        %v3316 = vadd.f32 %v3076, %v3244
        %v3317 = vadd.f32 %v3077, %v3247
        %v3318 = vadd.f32 %v3078, %v3250
        %v3319 = vadd.f32 %v3079, %v3253
        %v3320 = vadd.f32 %v3080, %v3256
        %v3321 = vadd.f32 %v3081, %v3259
        %v3322 = vadd.f32 %v3082, %v3262
        %v3323 = vadd.f32 %v3083, %v3265
        %v3324 = vadd.f32 %v3084, %v3268
        %v3325 = vadd.f32 %v3085, %v3271
        %v3326 = vadd.f32 %v3086, %v3274
        %v3327 = vadd.f32 %v3087, %v3277
        %v3328 = vadd.f32 %v3088, %v3280
        %v3329 = vadd.f32 %v3089, %v3283
        %v3330 = vadd.f32 %v3090, %v3286
        %v3331 = vadd.f32 %v3091, %v3289
        %s3332 = scalar_lea.vmem [#allocation2], 144
        %v3333 = vld [vmem:[%s3332] sm:$0x7f]
        %v3334 = vld [vmem:[%s3332 + $0x8] sm:$0x7f]
        %v3335 = vld [vmem:[%s3332 + $0x10] sm:$0x7f]
        %v3336 = vld [vmem:[%s3332 + $0x30] sm:$0x7f]
        %v3337 = vld [vmem:[%s3332 + $0x38] sm:$0x7f]
        %v3338 = vld [vmem:[%s3332 + $0x40] sm:$0x7f]
        %v3339 = vld [vmem:[%s3332 + $0x60] sm:$0x7f]
        %v3340 = vld [vmem:[%s3332 + $0x68] sm:$0x7f]
        %v3341 = vld [vmem:[%s3332 + $0x70] sm:$0x7f]
        %v3342 = vld [vmem:[%s3332 + $0x90] sm:$0x7f]
        %v3343 = vld [vmem:[%s3332 + $0x98] sm:$0x7f]
        %v3344 = vld [vmem:[%s3332 + $0xa0] sm:$0x7f]
        %v3345 = vld [vmem:[%s3332 + $0xc0] sm:$0x7f]
        %v3346 = vld [vmem:[%s3332 + $0xc8] sm:$0x7f]
        %v3347 = vld [vmem:[%s3332 + $0xd0] sm:$0x7f]
        %v3348 = vld [vmem:[%s3332 + $0xf0] sm:$0x7f]
        %v3349 = vld [vmem:[%s3332 + $0xf8] sm:$0x7f]
        %v3350 = vld [vmem:[%s3332 + $0x100] sm:$0x7f]
        %v3351 = vld [vmem:[%s3332 + $0x120] sm:$0x7f]
        %v3352 = vld [vmem:[%s3332 + $0x128] sm:$0x7f]
        %v3353 = vld [vmem:[%s3332 + $0x130] sm:$0x7f]
        %s3354 = scalar_lea.vmem %s308, 31 [#allocation4]
        %v3355 = vld [vmem:[%s3354] ss:$8 sm:$0x7]
        %v3357 = vperm.slane %v3355, 0
        %v3358 = vperm.slane %v3355, 1
        %v3359 = vperm.slane %v3355, 2
        %v3363 = vmul.f32 %v3333, %v3357
        %v3364 = vmul.f32 %v3334, %v3358
        %v3365 = vmul.f32 %v3335, %v3359
        %v3366 = vmul.f32 %v3336, %v3357
        %v3367 = vmul.f32 %v3337, %v3358
        %v3368 = vmul.f32 %v3338, %v3359
        %v3369 = vmul.f32 %v3339, %v3357
        %v3370 = vmul.f32 %v3340, %v3358
        %v3371 = vmul.f32 %v3341, %v3359
        %v3372 = vmul.f32 %v3342, %v3357
        %v3373 = vmul.f32 %v3343, %v3358
        %v3374 = vmul.f32 %v3344, %v3359
        %v3375 = vmul.f32 %v3345, %v3357
        %v3376 = vmul.f32 %v3346, %v3358
        %v3377 = vmul.f32 %v3347, %v3359
        %v3378 = vmul.f32 %v3348, %v3357
        %v3379 = vmul.f32 %v3349, %v3358
        %v3380 = vmul.f32 %v3350, %v3359
        %v3381 = vmul.f32 %v3351, %v3357
        %v3382 = vmul.f32 %v3352, %v3358
        %v3383 = vmul.f32 %v3353, %v3359
        %v3384 = vadd.f32 %v3311, %v3363
        %v3385 = vadd.f32 %v3312, %v3364
        %v3386 = vadd.f32 %v3313, %v3365
        %v3387 = vadd.f32 %v3314, %v3366
        %v3388 = vadd.f32 %v3315, %v3367
        %v3389 = vadd.f32 %v3316, %v3368
        %v3390 = vadd.f32 %v3317, %v3369
        %v3391 = vadd.f32 %v3318, %v3370
        %v3392 = vadd.f32 %v3319, %v3371
        %v3393 = vadd.f32 %v3320, %v3372
        %v3394 = vadd.f32 %v3321, %v3373
        %v3395 = vadd.f32 %v3322, %v3374
        %v3396 = vadd.f32 %v3323, %v3375
        %v3397 = vadd.f32 %v3324, %v3376
        %v3398 = vadd.f32 %v3325, %v3377
        %v3399 = vadd.f32 %v3326, %v3378
        %v3400 = vadd.f32 %v3327, %v3379
        %v3401 = vadd.f32 %v3328, %v3380
        %v3402 = vadd.f32 %v3329, %v3381
        %v3403 = vadd.f32 %v3330, %v3382
        %v3404 = vadd.f32 %v3331, %v3383
        %v3405 = vld [vmem:[%s3332] sm:$0xfe]
        %v3406 = vld [vmem:[%s3332 + $0x8] sm:$0xfe]
        %v3407 = vld [vmem:[%s3332 + $0x10] sm:$0xfe]
        %v3408 = vld [vmem:[%s3332 + $0x30] sm:$0xfe]
        %v3409 = vld [vmem:[%s3332 + $0x38] sm:$0xfe]
        %v3410 = vld [vmem:[%s3332 + $0x40] sm:$0xfe]
        %v3411 = vld [vmem:[%s3332 + $0x60] sm:$0xfe]
        %v3412 = vld [vmem:[%s3332 + $0x68] sm:$0xfe]
        %v3413 = vld [vmem:[%s3332 + $0x70] sm:$0xfe]
        %v3414 = vld [vmem:[%s3332 + $0x90] sm:$0xfe]
        %v3415 = vld [vmem:[%s3332 + $0x98] sm:$0xfe]
        %v3416 = vld [vmem:[%s3332 + $0xa0] sm:$0xfe]
        %v3417 = vld [vmem:[%s3332 + $0xc0] sm:$0xfe]
        %v3418 = vld [vmem:[%s3332 + $0xc8] sm:$0xfe]
        %v3419 = vld [vmem:[%s3332 + $0xd0] sm:$0xfe]
        %v3420 = vld [vmem:[%s3332 + $0xf0] sm:$0xfe]
        %v3421 = vld [vmem:[%s3332 + $0xf8] sm:$0xfe]
        %v3422 = vld [vmem:[%s3332 + $0x100] sm:$0xfe]
        %v3423 = vld [vmem:[%s3332 + $0x120] sm:$0xfe]
        %v3424 = vld [vmem:[%s3332 + $0x128] sm:$0xfe]
        %v3425 = vld [vmem:[%s3332 + $0x130] sm:$0xfe]
        %s3426 = scalar_lea.vmem %s308, 48 [#allocation4]
        %v3427 = vld [vmem:[%s3426] ss:$8 sm:$0x7]
        %v3429 = vperm.slane %v3427, 0
        %v3430 = vperm.slane %v3427, 1
        %v3431 = vperm.slane %v3427, 2
        %v3435 = vmul.f32 %v3405, %v3429
        %v3436 = vmul.f32 %v3406, %v3430
        %v3437 = vmul.f32 %v3407, %v3431
        %v3438 = vmul.f32 %v3408, %v3429
        %v3439 = vmul.f32 %v3409, %v3430
        %v3440 = vmul.f32 %v3410, %v3431
        %v3441 = vmul.f32 %v3411, %v3429
        %v3442 = vmul.f32 %v3412, %v3430
        %v3443 = vmul.f32 %v3413, %v3431
        %v3444 = vmul.f32 %v3414, %v3429
        %v3445 = vmul.f32 %v3415, %v3430
        %v3446 = vmul.f32 %v3416, %v3431
        %v3447 = vmul.f32 %v3417, %v3429
        %v3448 = vmul.f32 %v3418, %v3430
        %v3449 = vmul.f32 %v3419, %v3431
        %v3450 = vmul.f32 %v3420, %v3429
        %v3451 = vmul.f32 %v3421, %v3430
        %v3452 = vmul.f32 %v3422, %v3431
        %v3453 = vmul.f32 %v3423, %v3429
        %v3454 = vmul.f32 %v3424, %v3430
        %v3455 = vmul.f32 %v3425, %v3431
        %v3477 = vrot.slane %v3435, 1
        %v3478 = vrot.slane %v3436, 1
        %v3479 = vrot.slane %v3437, 1
        %v3480 = vrot.slane %v3438, 1
        %v3481 = vrot.slane %v3439, 1
        %v3482 = vrot.slane %v3440, 1
        %v3483 = vrot.slane %v3441, 1
        %v3484 = vrot.slane %v3442, 1
        %v3485 = vrot.slane %v3443, 1
        %v3486 = vrot.slane %v3444, 1
        %v3487 = vrot.slane %v3445, 1
        %v3488 = vrot.slane %v3446, 1
        %v3489 = vrot.slane %v3447, 1
        %v3490 = vrot.slane %v3448, 1
        %v3491 = vrot.slane %v3449, 1
        %v3492 = vrot.slane %v3450, 1
        %v3493 = vrot.slane %v3451, 1
        %v3494 = vrot.slane %v3452, 1
        %v3495 = vrot.slane %v3453, 1
        %v3496 = vrot.slane %v3454, 1
        %v3497 = vrot.slane %v3455, 1
        %v3519 = vadd.f32 %v3384, %v3477
        %v3520 = vadd.f32 %v3385, %v3478
        %v3521 = vadd.f32 %v3386, %v3479
        %v3522 = vadd.f32 %v3387, %v3480
        %v3523 = vadd.f32 %v3388, %v3481
        %v3524 = vadd.f32 %v3389, %v3482
        %v3525 = vadd.f32 %v3390, %v3483
        %v3526 = vadd.f32 %v3391, %v3484
        %v3527 = vadd.f32 %v3392, %v3485
        %v3528 = vadd.f32 %v3393, %v3486
        %v3529 = vadd.f32 %v3394, %v3487
        %v3530 = vadd.f32 %v3395, %v3488
        %v3531 = vadd.f32 %v3396, %v3489
        %v3532 = vadd.f32 %v3397, %v3490
        %v3533 = vadd.f32 %v3398, %v3491
        %v3534 = vadd.f32 %v3399, %v3492
        %v3535 = vadd.f32 %v3400, %v3493
        %v3536 = vadd.f32 %v3401, %v3494
        %v3537 = vadd.f32 %v3402, %v3495
        %v3538 = vadd.f32 %v3403, %v3496
        %v3539 = vadd.f32 %v3404, %v3497
        %v3540 = vld [vmem:[%s3332] sm:$0xfc]
        %v3541 = vld [vmem:[%s3332 + $0x8] sm:$0xfc]
        %v3542 = vld [vmem:[%s3332 + $0x10] sm:$0xfc]
        %v3543 = vld [vmem:[%s3332 + $0x18] sm:$0x1]
        %v3544 = vld [vmem:[%s3332 + $0x20] sm:$0x1]
        %v3545 = vld [vmem:[%s3332 + $0x28] sm:$0x1]
        %v3546 = vld [vmem:[%s3332 + $0x30] sm:$0xfc]
        %v3547 = vld [vmem:[%s3332 + $0x38] sm:$0xfc]
        %v3548 = vld [vmem:[%s3332 + $0x40] sm:$0xfc]
        %v3549 = vld [vmem:[%s3332 + $0x48] sm:$0x1]
        %v3550 = vld [vmem:[%s3332 + $0x50] sm:$0x1]
        %v3551 = vld [vmem:[%s3332 + $0x58] sm:$0x1]
        %v3552 = vld [vmem:[%s3332 + $0x60] sm:$0xfc]
        %v3553 = vld [vmem:[%s3332 + $0x68] sm:$0xfc]
        %v3554 = vld [vmem:[%s3332 + $0x70] sm:$0xfc]
        %v3555 = vld [vmem:[%s3332 + $0x78] sm:$0x1]
        %v3556 = vld [vmem:[%s3332 + $0x80] sm:$0x1]
        %v3557 = vld [vmem:[%s3332 + $0x88] sm:$0x1]
        %v3558 = vld [vmem:[%s3332 + $0x90] sm:$0xfc]
        %v3559 = vld [vmem:[%s3332 + $0x98] sm:$0xfc]
        %v3560 = vld [vmem:[%s3332 + $0xa0] sm:$0xfc]
        %v3561 = vld [vmem:[%s3332 + $0xa8] sm:$0x1]
        %v3562 = vld [vmem:[%s3332 + $0xb0] sm:$0x1]
        %v3563 = vld [vmem:[%s3332 + $0xb8] sm:$0x1]
        %v3564 = vld [vmem:[%s3332 + $0xc0] sm:$0xfc]
        %v3565 = vld [vmem:[%s3332 + $0xc8] sm:$0xfc]
        %v3566 = vld [vmem:[%s3332 + $0xd0] sm:$0xfc]
        %v3567 = vld [vmem:[%s3332 + $0xd8] sm:$0x1]
        %v3568 = vld [vmem:[%s3332 + $0xe0] sm:$0x1]
        %v3569 = vld [vmem:[%s3332 + $0xe8] sm:$0x1]
        %v3570 = vld [vmem:[%s3332 + $0xf0] sm:$0xfc]
        %v3571 = vld [vmem:[%s3332 + $0xf8] sm:$0xfc]
        %v3572 = vld [vmem:[%s3332 + $0x100] sm:$0xfc]
        %v3573 = vld [vmem:[%s3332 + $0x108] sm:$0x1]
        %v3574 = vld [vmem:[%s3332 + $0x110] sm:$0x1]
        %v3575 = vld [vmem:[%s3332 + $0x118] sm:$0x1]
        %v3576 = vld [vmem:[%s3332 + $0x120] sm:$0xfc]
        %v3577 = vld [vmem:[%s3332 + $0x128] sm:$0xfc]
        %v3578 = vld [vmem:[%s3332 + $0x130] sm:$0xfc]
        %v3579 = vld [vmem:[%s3332 + $0x138] sm:$0x1]
        %v3580 = vld [vmem:[%s3332 + $0x140] sm:$0x1]
        %v3581 = vld [vmem:[%s3332 + $0x148] sm:$0x1]
        %s3582 = scalar_lea.vmem %s308, 49 [#allocation4]
        %v3583 = vld [vmem:[%s3582] ss:$8 sm:$0x7]
        %v3585 = vperm.slane %v3583, 0
        %v3586 = vperm.slane %v3583, 1
        %v3587 = vperm.slane %v3583, 2
        %v3591 = vmul.f32 %v3540, %v3585
        %v3592 = vmul.f32 %v3541, %v3586
        %v3593 = vmul.f32 %v3542, %v3587
        %v3594 = vmul.f32 %v3543, %v3585
        %v3595 = vmul.f32 %v3544, %v3586
        %v3596 = vmul.f32 %v3545, %v3587
        %v3597 = vmul.f32 %v3546, %v3585
        %v3598 = vmul.f32 %v3547, %v3586
        %v3599 = vmul.f32 %v3548, %v3587
        %v3600 = vmul.f32 %v3549, %v3585
        %v3601 = vmul.f32 %v3550, %v3586
        %v3602 = vmul.f32 %v3551, %v3587
        %v3603 = vmul.f32 %v3552, %v3585
        %v3604 = vmul.f32 %v3553, %v3586
        %v3605 = vmul.f32 %v3554, %v3587
        %v3606 = vmul.f32 %v3555, %v3585
        %v3607 = vmul.f32 %v3556, %v3586
        %v3608 = vmul.f32 %v3557, %v3587
        %v3609 = vmul.f32 %v3558, %v3585
        %v3610 = vmul.f32 %v3559, %v3586
        %v3611 = vmul.f32 %v3560, %v3587
        %v3612 = vmul.f32 %v3561, %v3585
        %v3613 = vmul.f32 %v3562, %v3586
        %v3614 = vmul.f32 %v3563, %v3587
        %v3615 = vmul.f32 %v3564, %v3585
        %v3616 = vmul.f32 %v3565, %v3586
        %v3617 = vmul.f32 %v3566, %v3587
        %v3618 = vmul.f32 %v3567, %v3585
        %v3619 = vmul.f32 %v3568, %v3586
        %v3620 = vmul.f32 %v3569, %v3587
        %v3621 = vmul.f32 %v3570, %v3585
        %v3622 = vmul.f32 %v3571, %v3586
        %v3623 = vmul.f32 %v3572, %v3587
        %v3624 = vmul.f32 %v3573, %v3585
        %v3625 = vmul.f32 %v3574, %v3586
        %v3626 = vmul.f32 %v3575, %v3587
        %v3627 = vmul.f32 %v3576, %v3585
        %v3628 = vmul.f32 %v3577, %v3586
        %v3629 = vmul.f32 %v3578, %v3587
        %v3630 = vmul.f32 %v3579, %v3585
        %v3631 = vmul.f32 %v3580, %v3586
        %v3632 = vmul.f32 %v3581, %v3587
        %v3675 = vrot.slane %v3591, 2
        %v3676 = vrot.slane %v3594, 2
        %v3677 = vsel %vm889, %v3675, %v3676
        %v3678 = vrot.slane %v3592, 2
        %v3679 = vrot.slane %v3595, 2
        %v3680 = vsel %vm889, %v3678, %v3679
        %v3681 = vrot.slane %v3593, 2
        %v3682 = vrot.slane %v3596, 2
        %v3683 = vsel %vm889, %v3681, %v3682
        %v3684 = vrot.slane %v3597, 2
        %v3685 = vrot.slane %v3600, 2
        %v3686 = vsel %vm889, %v3684, %v3685
        %v3687 = vrot.slane %v3598, 2
        %v3688 = vrot.slane %v3601, 2
        %v3689 = vsel %vm889, %v3687, %v3688
        %v3690 = vrot.slane %v3599, 2
        %v3691 = vrot.slane %v3602, 2
        %v3692 = vsel %vm889, %v3690, %v3691
        %v3693 = vrot.slane %v3603, 2
        %v3694 = vrot.slane %v3606, 2
        %v3695 = vsel %vm889, %v3693, %v3694
        %v3696 = vrot.slane %v3604, 2
        %v3697 = vrot.slane %v3607, 2
        %v3698 = vsel %vm889, %v3696, %v3697
        %v3699 = vrot.slane %v3605, 2
        %v3700 = vrot.slane %v3608, 2
        %v3701 = vsel %vm889, %v3699, %v3700
        %v3702 = vrot.slane %v3609, 2
        %v3703 = vrot.slane %v3612, 2
        %v3704 = vsel %vm889, %v3702, %v3703
        %v3705 = vrot.slane %v3610, 2
        %v3706 = vrot.slane %v3613, 2
        %v3707 = vsel %vm889, %v3705, %v3706
        %v3708 = vrot.slane %v3611, 2
        %v3709 = vrot.slane %v3614, 2
        %v3710 = vsel %vm889, %v3708, %v3709
        %v3711 = vrot.slane %v3615, 2
        %v3712 = vrot.slane %v3618, 2
        %v3713 = vsel %vm889, %v3711, %v3712
        %v3714 = vrot.slane %v3616, 2
        %v3715 = vrot.slane %v3619, 2
        %v3716 = vsel %vm889, %v3714, %v3715
        %v3717 = vrot.slane %v3617, 2
        %v3718 = vrot.slane %v3620, 2
        %v3719 = vsel %vm889, %v3717, %v3718
        %v3720 = vrot.slane %v3621, 2
        %v3721 = vrot.slane %v3624, 2
        %v3722 = vsel %vm889, %v3720, %v3721
        %v3723 = vrot.slane %v3622, 2
        %v3724 = vrot.slane %v3625, 2
        %v3725 = vsel %vm889, %v3723, %v3724
        %v3726 = vrot.slane %v3623, 2
        %v3727 = vrot.slane %v3626, 2
        %v3728 = vsel %vm889, %v3726, %v3727
        %v3729 = vrot.slane %v3627, 2
        %v3730 = vrot.slane %v3630, 2
        %v3731 = vsel %vm889, %v3729, %v3730
        %v3732 = vrot.slane %v3628, 2
        %v3733 = vrot.slane %v3631, 2
        %v3734 = vsel %vm889, %v3732, %v3733
        %v3735 = vrot.slane %v3629, 2
        %v3736 = vrot.slane %v3632, 2
        %v3737 = vsel %vm889, %v3735, %v3736
        %v3759 = vadd.f32 %v3519, %v3677
        %v3760 = vadd.f32 %v3520, %v3680
        %v3761 = vadd.f32 %v3521, %v3683
        %v3762 = vadd.f32 %v3522, %v3686
        %v3763 = vadd.f32 %v3523, %v3689
        %v3764 = vadd.f32 %v3524, %v3692
        %v3765 = vadd.f32 %v3525, %v3695
        %v3766 = vadd.f32 %v3526, %v3698
        %v3767 = vadd.f32 %v3527, %v3701
        %v3768 = vadd.f32 %v3528, %v3704
        %v3769 = vadd.f32 %v3529, %v3707
        %v3770 = vadd.f32 %v3530, %v3710
        %v3771 = vadd.f32 %v3531, %v3713
        %v3772 = vadd.f32 %v3532, %v3716
        %v3773 = vadd.f32 %v3533, %v3719
        %v3774 = vadd.f32 %v3534, %v3722
        %v3775 = vadd.f32 %v3535, %v3725
        %v3776 = vadd.f32 %v3536, %v3728
        %v3777 = vadd.f32 %v3537, %v3731
        %v3778 = vadd.f32 %v3538, %v3734
        %v3779 = vadd.f32 %v3539, %v3737
        %v3780 = vld [vmem:[%s3332] sm:$0xf8]
        %v3781 = vld [vmem:[%s3332 + $0x8] sm:$0xf8]
        %v3782 = vld [vmem:[%s3332 + $0x10] sm:$0xf8]
        %v3783 = vld [vmem:[%s3332 + $0x18] sm:$0x3]
        %v3784 = vld [vmem:[%s3332 + $0x20] sm:$0x3]
        %v3785 = vld [vmem:[%s3332 + $0x28] sm:$0x3]
        %v3786 = vld [vmem:[%s3332 + $0x30] sm:$0xf8]
        %v3787 = vld [vmem:[%s3332 + $0x38] sm:$0xf8]
        %v3788 = vld [vmem:[%s3332 + $0x40] sm:$0xf8]
        %v3789 = vld [vmem:[%s3332 + $0x48] sm:$0x3]
        %v3790 = vld [vmem:[%s3332 + $0x50] sm:$0x3]
        %v3791 = vld [vmem:[%s3332 + $0x58] sm:$0x3]
        %v3792 = vld [vmem:[%s3332 + $0x60] sm:$0xf8]
        %v3793 = vld [vmem:[%s3332 + $0x68] sm:$0xf8]
        %v3794 = vld [vmem:[%s3332 + $0x70] sm:$0xf8]
        %v3795 = vld [vmem:[%s3332 + $0x78] sm:$0x3]
        %v3796 = vld [vmem:[%s3332 + $0x80] sm:$0x3]
        %v3797 = vld [vmem:[%s3332 + $0x88] sm:$0x3]
        %v3798 = vld [vmem:[%s3332 + $0x90] sm:$0xf8]
        %v3799 = vld [vmem:[%s3332 + $0x98] sm:$0xf8]
        %v3800 = vld [vmem:[%s3332 + $0xa0] sm:$0xf8]
        %v3801 = vld [vmem:[%s3332 + $0xa8] sm:$0x3]
        %v3802 = vld [vmem:[%s3332 + $0xb0] sm:$0x3]
        %v3803 = vld [vmem:[%s3332 + $0xb8] sm:$0x3]
        %v3804 = vld [vmem:[%s3332 + $0xc0] sm:$0xf8]
        %v3805 = vld [vmem:[%s3332 + $0xc8] sm:$0xf8]
        %v3806 = vld [vmem:[%s3332 + $0xd0] sm:$0xf8]
        %v3807 = vld [vmem:[%s3332 + $0xd8] sm:$0x3]
        %v3808 = vld [vmem:[%s3332 + $0xe0] sm:$0x3]
        %v3809 = vld [vmem:[%s3332 + $0xe8] sm:$0x3]
        %v3810 = vld [vmem:[%s3332 + $0xf0] sm:$0xf8]
        %v3811 = vld [vmem:[%s3332 + $0xf8] sm:$0xf8]
        %v3812 = vld [vmem:[%s3332 + $0x100] sm:$0xf8]
        %v3813 = vld [vmem:[%s3332 + $0x108] sm:$0x3]
        %v3814 = vld [vmem:[%s3332 + $0x110] sm:$0x3]
        %v3815 = vld [vmem:[%s3332 + $0x118] sm:$0x3]
        %v3816 = vld [vmem:[%s3332 + $0x120] sm:$0xf8]
        %v3817 = vld [vmem:[%s3332 + $0x128] sm:$0xf8]
        %v3818 = vld [vmem:[%s3332 + $0x130] sm:$0xf8]
        %v3819 = vld [vmem:[%s3332 + $0x138] sm:$0x3]
        %v3820 = vld [vmem:[%s3332 + $0x140] sm:$0x3]
        %v3821 = vld [vmem:[%s3332 + $0x148] sm:$0x3]
        %s3822 = scalar_lea.vmem %s308, 50 [#allocation4]
        %v3823 = vld [vmem:[%s3822] ss:$8 sm:$0x7]
        %v3825 = vperm.slane %v3823, 0
        %v3826 = vperm.slane %v3823, 1
        %v3827 = vperm.slane %v3823, 2
        %v3831 = vmul.f32 %v3780, %v3825
        %v3832 = vmul.f32 %v3781, %v3826
        %v3833 = vmul.f32 %v3782, %v3827
        %v3834 = vmul.f32 %v3783, %v3825
        %v3835 = vmul.f32 %v3784, %v3826
        %v3836 = vmul.f32 %v3785, %v3827
        %v3837 = vmul.f32 %v3786, %v3825
        %v3838 = vmul.f32 %v3787, %v3826
        %v3839 = vmul.f32 %v3788, %v3827
        %v3840 = vmul.f32 %v3789, %v3825
        %v3841 = vmul.f32 %v3790, %v3826
        %v3842 = vmul.f32 %v3791, %v3827
        %v3843 = vmul.f32 %v3792, %v3825
        %v3844 = vmul.f32 %v3793, %v3826
        %v3845 = vmul.f32 %v3794, %v3827
        %v3846 = vmul.f32 %v3795, %v3825
        %v3847 = vmul.f32 %v3796, %v3826
        %v3848 = vmul.f32 %v3797, %v3827
        %v3849 = vmul.f32 %v3798, %v3825
        %v3850 = vmul.f32 %v3799, %v3826
        %v3851 = vmul.f32 %v3800, %v3827
        %v3852 = vmul.f32 %v3801, %v3825
        %v3853 = vmul.f32 %v3802, %v3826
        %v3854 = vmul.f32 %v3803, %v3827
        %v3855 = vmul.f32 %v3804, %v3825
        %v3856 = vmul.f32 %v3805, %v3826
        %v3857 = vmul.f32 %v3806, %v3827
        %v3858 = vmul.f32 %v3807, %v3825
        %v3859 = vmul.f32 %v3808, %v3826
        %v3860 = vmul.f32 %v3809, %v3827
        %v3861 = vmul.f32 %v3810, %v3825
        %v3862 = vmul.f32 %v3811, %v3826
        %v3863 = vmul.f32 %v3812, %v3827
        %v3864 = vmul.f32 %v3813, %v3825
        %v3865 = vmul.f32 %v3814, %v3826
        %v3866 = vmul.f32 %v3815, %v3827
        %v3867 = vmul.f32 %v3816, %v3825
        %v3868 = vmul.f32 %v3817, %v3826
        %v3869 = vmul.f32 %v3818, %v3827
        %v3870 = vmul.f32 %v3819, %v3825
        %v3871 = vmul.f32 %v3820, %v3826
        %v3872 = vmul.f32 %v3821, %v3827
        %v3915 = vrot.slane %v3831, 3
        %v3916 = vrot.slane %v3834, 3
        %v3917 = vsel %vm1130, %v3915, %v3916
        %v3918 = vrot.slane %v3832, 3
        %v3919 = vrot.slane %v3835, 3
        %v3920 = vsel %vm1130, %v3918, %v3919
        %v3921 = vrot.slane %v3833, 3
        %v3922 = vrot.slane %v3836, 3
        %v3923 = vsel %vm1130, %v3921, %v3922
        %v3924 = vrot.slane %v3837, 3
        %v3925 = vrot.slane %v3840, 3
        %v3926 = vsel %vm1130, %v3924, %v3925
        %v3927 = vrot.slane %v3838, 3
        %v3928 = vrot.slane %v3841, 3
        %v3929 = vsel %vm1130, %v3927, %v3928
        %v3930 = vrot.slane %v3839, 3
        %v3931 = vrot.slane %v3842, 3
        %v3932 = vsel %vm1130, %v3930, %v3931
        %v3933 = vrot.slane %v3843, 3
        %v3934 = vrot.slane %v3846, 3
        %v3935 = vsel %vm1130, %v3933, %v3934
        %v3936 = vrot.slane %v3844, 3
        %v3937 = vrot.slane %v3847, 3
        %v3938 = vsel %vm1130, %v3936, %v3937
        %v3939 = vrot.slane %v3845, 3
        %v3940 = vrot.slane %v3848, 3
        %v3941 = vsel %vm1130, %v3939, %v3940
        %v3942 = vrot.slane %v3849, 3
        %v3943 = vrot.slane %v3852, 3
        %v3944 = vsel %vm1130, %v3942, %v3943
        %v3945 = vrot.slane %v3850, 3
        %v3946 = vrot.slane %v3853, 3
        %v3947 = vsel %vm1130, %v3945, %v3946
        %v3948 = vrot.slane %v3851, 3
        %v3949 = vrot.slane %v3854, 3
        %v3950 = vsel %vm1130, %v3948, %v3949
        %v3951 = vrot.slane %v3855, 3
        %v3952 = vrot.slane %v3858, 3
        %v3953 = vsel %vm1130, %v3951, %v3952
        %v3954 = vrot.slane %v3856, 3
        %v3955 = vrot.slane %v3859, 3
        %v3956 = vsel %vm1130, %v3954, %v3955
        %v3957 = vrot.slane %v3857, 3
        %v3958 = vrot.slane %v3860, 3
        %v3959 = vsel %vm1130, %v3957, %v3958
        %v3960 = vrot.slane %v3861, 3
        %v3961 = vrot.slane %v3864, 3
        %v3962 = vsel %vm1130, %v3960, %v3961
        %v3963 = vrot.slane %v3862, 3
        %v3964 = vrot.slane %v3865, 3
        %v3965 = vsel %vm1130, %v3963, %v3964
        %v3966 = vrot.slane %v3863, 3
        %v3967 = vrot.slane %v3866, 3
        %v3968 = vsel %vm1130, %v3966, %v3967
        %v3969 = vrot.slane %v3867, 3
        %v3970 = vrot.slane %v3870, 3
        %v3971 = vsel %vm1130, %v3969, %v3970
        %v3972 = vrot.slane %v3868, 3
        %v3973 = vrot.slane %v3871, 3
        %v3974 = vsel %vm1130, %v3972, %v3973
        %v3975 = vrot.slane %v3869, 3
        %v3976 = vrot.slane %v3872, 3
        %v3977 = vsel %vm1130, %v3975, %v3976
        %v3999 = vadd.f32 %v3759, %v3917
        %v4000 = vadd.f32 %v3760, %v3920
        %v4001 = vadd.f32 %v3761, %v3923
        %v4002 = vadd.f32 %v3762, %v3926
        %v4003 = vadd.f32 %v3763, %v3929
        %v4004 = vadd.f32 %v3764, %v3932
        %v4005 = vadd.f32 %v3765, %v3935
        %v4006 = vadd.f32 %v3766, %v3938
        %v4007 = vadd.f32 %v3767, %v3941
        %v4008 = vadd.f32 %v3768, %v3944
        %v4009 = vadd.f32 %v3769, %v3947
        %v4010 = vadd.f32 %v3770, %v3950
        %v4011 = vadd.f32 %v3771, %v3953
        %v4012 = vadd.f32 %v3772, %v3956
        %v4013 = vadd.f32 %v3773, %v3959
        %v4014 = vadd.f32 %v3774, %v3962
        %v4015 = vadd.f32 %v3775, %v3965
        %v4016 = vadd.f32 %v3776, %v3968
        %v4017 = vadd.f32 %v3777, %v3971
        %v4018 = vadd.f32 %v3778, %v3974
        %v4019 = vadd.f32 %v3779, %v3977
        %v4020 = vld [vmem:[%s3332] sm:$0xf0]
        %v4021 = vld [vmem:[%s3332 + $0x8] sm:$0xf0]
        %v4022 = vld [vmem:[%s3332 + $0x10] sm:$0xf0]
        %v4023 = vld [vmem:[%s3332 + $0x18] sm:$0x7]
        %v4024 = vld [vmem:[%s3332 + $0x20] sm:$0x7]
        %v4025 = vld [vmem:[%s3332 + $0x28] sm:$0x7]
        %v4026 = vld [vmem:[%s3332 + $0x30] sm:$0xf0]
        %v4027 = vld [vmem:[%s3332 + $0x38] sm:$0xf0]
        %v4028 = vld [vmem:[%s3332 + $0x40] sm:$0xf0]
        %v4029 = vld [vmem:[%s3332 + $0x48] sm:$0x7]
        %v4030 = vld [vmem:[%s3332 + $0x50] sm:$0x7]
        %v4031 = vld [vmem:[%s3332 + $0x58] sm:$0x7]
        %v4032 = vld [vmem:[%s3332 + $0x60] sm:$0xf0]
        %v4033 = vld [vmem:[%s3332 + $0x68] sm:$0xf0]
        %v4034 = vld [vmem:[%s3332 + $0x70] sm:$0xf0]
        %v4035 = vld [vmem:[%s3332 + $0x78] sm:$0x7]
        %v4036 = vld [vmem:[%s3332 + $0x80] sm:$0x7]
        %v4037 = vld [vmem:[%s3332 + $0x88] sm:$0x7]
        %v4038 = vld [vmem:[%s3332 + $0x90] sm:$0xf0]
        %v4039 = vld [vmem:[%s3332 + $0x98] sm:$0xf0]
        %v4040 = vld [vmem:[%s3332 + $0xa0] sm:$0xf0]
        %v4041 = vld [vmem:[%s3332 + $0xa8] sm:$0x7]
        %v4042 = vld [vmem:[%s3332 + $0xb0] sm:$0x7]
        %v4043 = vld [vmem:[%s3332 + $0xb8] sm:$0x7]
        %v4044 = vld [vmem:[%s3332 + $0xc0] sm:$0xf0]
        %v4045 = vld [vmem:[%s3332 + $0xc8] sm:$0xf0]
        %v4046 = vld [vmem:[%s3332 + $0xd0] sm:$0xf0]
        %v4047 = vld [vmem:[%s3332 + $0xd8] sm:$0x7]
        %v4048 = vld [vmem:[%s3332 + $0xe0] sm:$0x7]
        %v4049 = vld [vmem:[%s3332 + $0xe8] sm:$0x7]
        %v4050 = vld [vmem:[%s3332 + $0xf0] sm:$0xf0]
        %v4051 = vld [vmem:[%s3332 + $0xf8] sm:$0xf0]
        %v4052 = vld [vmem:[%s3332 + $0x100] sm:$0xf0]
        %v4053 = vld [vmem:[%s3332 + $0x108] sm:$0x7]
        %v4054 = vld [vmem:[%s3332 + $0x110] sm:$0x7]
        %v4055 = vld [vmem:[%s3332 + $0x118] sm:$0x7]
        %v4056 = vld [vmem:[%s3332 + $0x120] sm:$0xf0]
        %v4057 = vld [vmem:[%s3332 + $0x128] sm:$0xf0]
        %v4058 = vld [vmem:[%s3332 + $0x130] sm:$0xf0]
        %v4059 = vld [vmem:[%s3332 + $0x138] sm:$0x7]
        %v4060 = vld [vmem:[%s3332 + $0x140] sm:$0x7]
        %v4061 = vld [vmem:[%s3332 + $0x148] sm:$0x7]
        %s4062 = scalar_lea.vmem %s308, 51 [#allocation4]
        %v4063 = vld [vmem:[%s4062] ss:$8 sm:$0x7]
        %v4065 = vperm.slane %v4063, 0
        %v4066 = vperm.slane %v4063, 1
        %v4067 = vperm.slane %v4063, 2
        %v4071 = vmul.f32 %v4020, %v4065
        %v4072 = vmul.f32 %v4021, %v4066
        %v4073 = vmul.f32 %v4022, %v4067
        %v4074 = vmul.f32 %v4023, %v4065
        %v4075 = vmul.f32 %v4024, %v4066
        %v4076 = vmul.f32 %v4025, %v4067
        %v4077 = vmul.f32 %v4026, %v4065
        %v4078 = vmul.f32 %v4027, %v4066
        %v4079 = vmul.f32 %v4028, %v4067
        %v4080 = vmul.f32 %v4029, %v4065
        %v4081 = vmul.f32 %v4030, %v4066
        %v4082 = vmul.f32 %v4031, %v4067
        %v4083 = vmul.f32 %v4032, %v4065
        %v4084 = vmul.f32 %v4033, %v4066
        %v4085 = vmul.f32 %v4034, %v4067
        %v4086 = vmul.f32 %v4035, %v4065
        %v4087 = vmul.f32 %v4036, %v4066
        %v4088 = vmul.f32 %v4037, %v4067
        %v4089 = vmul.f32 %v4038, %v4065
        %v4090 = vmul.f32 %v4039, %v4066
        %v4091 = vmul.f32 %v4040, %v4067
        %v4092 = vmul.f32 %v4041, %v4065
        %v4093 = vmul.f32 %v4042, %v4066
        %v4094 = vmul.f32 %v4043, %v4067
        %v4095 = vmul.f32 %v4044, %v4065
        %v4096 = vmul.f32 %v4045, %v4066
        %v4097 = vmul.f32 %v4046, %v4067
        %v4098 = vmul.f32 %v4047, %v4065
        %v4099 = vmul.f32 %v4048, %v4066
        %v4100 = vmul.f32 %v4049, %v4067
        %v4101 = vmul.f32 %v4050, %v4065
        %v4102 = vmul.f32 %v4051, %v4066
        %v4103 = vmul.f32 %v4052, %v4067
        %v4104 = vmul.f32 %v4053, %v4065
        %v4105 = vmul.f32 %v4054, %v4066
        %v4106 = vmul.f32 %v4055, %v4067
        %v4107 = vmul.f32 %v4056, %v4065
        %v4108 = vmul.f32 %v4057, %v4066
        %v4109 = vmul.f32 %v4058, %v4067
        %v4110 = vmul.f32 %v4059, %v4065
        %v4111 = vmul.f32 %v4060, %v4066
        %v4112 = vmul.f32 %v4061, %v4067
        %v4155 = vrot.slane %v4071, 4
        %v4156 = vrot.slane %v4074, 4
        %v4157 = vsel %vm1371, %v4155, %v4156
        %v4158 = vrot.slane %v4072, 4
        %v4159 = vrot.slane %v4075, 4
        %v4160 = vsel %vm1371, %v4158, %v4159
        %v4161 = vrot.slane %v4073, 4
        %v4162 = vrot.slane %v4076, 4
        %v4163 = vsel %vm1371, %v4161, %v4162
        %v4164 = vrot.slane %v4077, 4
        %v4165 = vrot.slane %v4080, 4
        %v4166 = vsel %vm1371, %v4164, %v4165
        %v4167 = vrot.slane %v4078, 4
        %v4168 = vrot.slane %v4081, 4
        %v4169 = vsel %vm1371, %v4167, %v4168
        %v4170 = vrot.slane %v4079, 4
        %v4171 = vrot.slane %v4082, 4
        %v4172 = vsel %vm1371, %v4170, %v4171
        %v4173 = vrot.slane %v4083, 4
        %v4174 = vrot.slane %v4086, 4
        %v4175 = vsel %vm1371, %v4173, %v4174
        %v4176 = vrot.slane %v4084, 4
        %v4177 = vrot.slane %v4087, 4
        %v4178 = vsel %vm1371, %v4176, %v4177
        %v4179 = vrot.slane %v4085, 4
        %v4180 = vrot.slane %v4088, 4
        %v4181 = vsel %vm1371, %v4179, %v4180
        %v4182 = vrot.slane %v4089, 4
        %v4183 = vrot.slane %v4092, 4
        %v4184 = vsel %vm1371, %v4182, %v4183
        %v4185 = vrot.slane %v4090, 4
        %v4186 = vrot.slane %v4093, 4
        %v4187 = vsel %vm1371, %v4185, %v4186
        %v4188 = vrot.slane %v4091, 4
        %v4189 = vrot.slane %v4094, 4
        %v4190 = vsel %vm1371, %v4188, %v4189
        %v4191 = vrot.slane %v4095, 4
        %v4192 = vrot.slane %v4098, 4
        %v4193 = vsel %vm1371, %v4191, %v4192
        %v4194 = vrot.slane %v4096, 4
        %v4195 = vrot.slane %v4099, 4
        %v4196 = vsel %vm1371, %v4194, %v4195
        %v4197 = vrot.slane %v4097, 4
        %v4198 = vrot.slane %v4100, 4
        %v4199 = vsel %vm1371, %v4197, %v4198
        %v4200 = vrot.slane %v4101, 4
        %v4201 = vrot.slane %v4104, 4
        %v4202 = vsel %vm1371, %v4200, %v4201
        %v4203 = vrot.slane %v4102, 4
        %v4204 = vrot.slane %v4105, 4
        %v4205 = vsel %vm1371, %v4203, %v4204
        %v4206 = vrot.slane %v4103, 4
        %v4207 = vrot.slane %v4106, 4
        %v4208 = vsel %vm1371, %v4206, %v4207
        %v4209 = vrot.slane %v4107, 4
        %v4210 = vrot.slane %v4110, 4
        %v4211 = vsel %vm1371, %v4209, %v4210
        %v4212 = vrot.slane %v4108, 4
        %v4213 = vrot.slane %v4111, 4
        %v4214 = vsel %vm1371, %v4212, %v4213
        %v4215 = vrot.slane %v4109, 4
        %v4216 = vrot.slane %v4112, 4
        %v4217 = vsel %vm1371, %v4215, %v4216
        %v4239 = vadd.f32 %v3999, %v4157
        %v4240 = vadd.f32 %v4000, %v4160
        %v4241 = vadd.f32 %v4001, %v4163
        %v4242 = vadd.f32 %v4002, %v4166
        %v4243 = vadd.f32 %v4003, %v4169
        %v4244 = vadd.f32 %v4004, %v4172
        %v4245 = vadd.f32 %v4005, %v4175
        %v4246 = vadd.f32 %v4006, %v4178
        %v4247 = vadd.f32 %v4007, %v4181
        %v4248 = vadd.f32 %v4008, %v4184
        %v4249 = vadd.f32 %v4009, %v4187
        %v4250 = vadd.f32 %v4010, %v4190
        %v4251 = vadd.f32 %v4011, %v4193
        %v4252 = vadd.f32 %v4012, %v4196
        %v4253 = vadd.f32 %v4013, %v4199
        %v4254 = vadd.f32 %v4014, %v4202
        %v4255 = vadd.f32 %v4015, %v4205
        %v4256 = vadd.f32 %v4016, %v4208
        %v4257 = vadd.f32 %v4017, %v4211
        %v4258 = vadd.f32 %v4018, %v4214
        %v4259 = vadd.f32 %v4019, %v4217
        %s4260 = scalar_lea.vmem [#allocation2], 192
        %v4261 = vld [vmem:[%s4260] sm:$0x7f]
        %v4262 = vld [vmem:[%s4260 + $0x8] sm:$0x7f]
        %v4263 = vld [vmem:[%s4260 + $0x10] sm:$0x7f]
        %v4264 = vld [vmem:[%s4260 + $0x30] sm:$0x7f]
        %v4265 = vld [vmem:[%s4260 + $0x38] sm:$0x7f]
        %v4266 = vld [vmem:[%s4260 + $0x40] sm:$0x7f]
        %v4267 = vld [vmem:[%s4260 + $0x60] sm:$0x7f]
        %v4268 = vld [vmem:[%s4260 + $0x68] sm:$0x7f]
        %v4269 = vld [vmem:[%s4260 + $0x70] sm:$0x7f]
        %v4270 = vld [vmem:[%s4260 + $0x90] sm:$0x7f]
        %v4271 = vld [vmem:[%s4260 + $0x98] sm:$0x7f]
        %v4272 = vld [vmem:[%s4260 + $0xa0] sm:$0x7f]
        %v4273 = vld [vmem:[%s4260 + $0xc0] sm:$0x7f]
        %v4274 = vld [vmem:[%s4260 + $0xc8] sm:$0x7f]
        %v4275 = vld [vmem:[%s4260 + $0xd0] sm:$0x7f]
        %v4276 = vld [vmem:[%s4260 + $0xf0] sm:$0x7f]
        %v4277 = vld [vmem:[%s4260 + $0xf8] sm:$0x7f]
        %v4278 = vld [vmem:[%s4260 + $0x100] sm:$0x7f]
        %v4279 = vld [vmem:[%s4260 + $0x120] sm:$0x7f]
        %v4280 = vld [vmem:[%s4260 + $0x128] sm:$0x7f]
        %v4281 = vld [vmem:[%s4260 + $0x130] sm:$0x7f]
        %s4282 = scalar_lea.vmem %s308, 52 [#allocation4]
        %v4283 = vld [vmem:[%s4282] ss:$8 sm:$0x7]
        %v4285 = vperm.slane %v4283, 0
        %v4286 = vperm.slane %v4283, 1
        %v4287 = vperm.slane %v4283, 2
        %v4291 = vmul.f32 %v4261, %v4285
        %v4292 = vmul.f32 %v4262, %v4286
        %v4293 = vmul.f32 %v4263, %v4287
        %v4294 = vmul.f32 %v4264, %v4285
        %v4295 = vmul.f32 %v4265, %v4286
        %v4296 = vmul.f32 %v4266, %v4287
        %v4297 = vmul.f32 %v4267, %v4285
        %v4298 = vmul.f32 %v4268, %v4286
        %v4299 = vmul.f32 %v4269, %v4287
        %v4300 = vmul.f32 %v4270, %v4285
        %v4301 = vmul.f32 %v4271, %v4286
        %v4302 = vmul.f32 %v4272, %v4287
        %v4303 = vmul.f32 %v4273, %v4285
        %v4304 = vmul.f32 %v4274, %v4286
        %v4305 = vmul.f32 %v4275, %v4287
        %v4306 = vmul.f32 %v4276, %v4285
        %v4307 = vmul.f32 %v4277, %v4286
        %v4308 = vmul.f32 %v4278, %v4287
        %v4309 = vmul.f32 %v4279, %v4285
        %v4310 = vmul.f32 %v4280, %v4286
        %v4311 = vmul.f32 %v4281, %v4287
        %v4312 = vadd.f32 %v4239, %v4291
        %v4313 = vadd.f32 %v4240, %v4292
        %v4314 = vadd.f32 %v4241, %v4293
        %v4315 = vadd.f32 %v4242, %v4294
        %v4316 = vadd.f32 %v4243, %v4295
        %v4317 = vadd.f32 %v4244, %v4296
        %v4318 = vadd.f32 %v4245, %v4297
        %v4319 = vadd.f32 %v4246, %v4298
        %v4320 = vadd.f32 %v4247, %v4299
        %v4321 = vadd.f32 %v4248, %v4300
        %v4322 = vadd.f32 %v4249, %v4301
        %v4323 = vadd.f32 %v4250, %v4302
        %v4324 = vadd.f32 %v4251, %v4303
        %v4325 = vadd.f32 %v4252, %v4304
        %v4326 = vadd.f32 %v4253, %v4305
        %v4327 = vadd.f32 %v4254, %v4306
        %v4328 = vadd.f32 %v4255, %v4307
        %v4329 = vadd.f32 %v4256, %v4308
        %v4330 = vadd.f32 %v4257, %v4309
        %v4331 = vadd.f32 %v4258, %v4310
        %v4332 = vadd.f32 %v4259, %v4311
        %v4333 = vld [vmem:[%s4260] sm:$0xfe]
        %v4334 = vld [vmem:[%s4260 + $0x8] sm:$0xfe]
        %v4335 = vld [vmem:[%s4260 + $0x10] sm:$0xfe]
        %v4336 = vld [vmem:[%s4260 + $0x30] sm:$0xfe]
        %v4337 = vld [vmem:[%s4260 + $0x38] sm:$0xfe]
        %v4338 = vld [vmem:[%s4260 + $0x40] sm:$0xfe]
        %v4339 = vld [vmem:[%s4260 + $0x60] sm:$0xfe]
        %v4340 = vld [vmem:[%s4260 + $0x68] sm:$0xfe]
        %v4341 = vld [vmem:[%s4260 + $0x70] sm:$0xfe]
        %v4342 = vld [vmem:[%s4260 + $0x90] sm:$0xfe]
        %v4343 = vld [vmem:[%s4260 + $0x98] sm:$0xfe]
        %v4344 = vld [vmem:[%s4260 + $0xa0] sm:$0xfe]
        %v4345 = vld [vmem:[%s4260 + $0xc0] sm:$0xfe]
        %v4346 = vld [vmem:[%s4260 + $0xc8] sm:$0xfe]
        %v4347 = vld [vmem:[%s4260 + $0xd0] sm:$0xfe]
        %v4348 = vld [vmem:[%s4260 + $0xf0] sm:$0xfe]
        %v4349 = vld [vmem:[%s4260 + $0xf8] sm:$0xfe]
        %v4350 = vld [vmem:[%s4260 + $0x100] sm:$0xfe]
        %v4351 = vld [vmem:[%s4260 + $0x120] sm:$0xfe]
        %v4352 = vld [vmem:[%s4260 + $0x128] sm:$0xfe]
        %v4353 = vld [vmem:[%s4260 + $0x130] sm:$0xfe]
        %s4354 = scalar_lea.vmem %s308, 53 [#allocation4]
        %v4355 = vld [vmem:[%s4354] ss:$8 sm:$0x7]
        %v4357 = vperm.slane %v4355, 0
        %v4358 = vperm.slane %v4355, 1
        %v4359 = vperm.slane %v4355, 2
        %v4363 = vmul.f32 %v4333, %v4357
        %v4364 = vmul.f32 %v4334, %v4358
        %v4365 = vmul.f32 %v4335, %v4359
        %v4366 = vmul.f32 %v4336, %v4357
        %v4367 = vmul.f32 %v4337, %v4358
        %v4368 = vmul.f32 %v4338, %v4359
        %v4369 = vmul.f32 %v4339, %v4357
        %v4370 = vmul.f32 %v4340, %v4358
        %v4371 = vmul.f32 %v4341, %v4359
        %v4372 = vmul.f32 %v4342, %v4357
        %v4373 = vmul.f32 %v4343, %v4358
        %v4374 = vmul.f32 %v4344, %v4359
        %v4375 = vmul.f32 %v4345, %v4357
        %v4376 = vmul.f32 %v4346, %v4358
        %v4377 = vmul.f32 %v4347, %v4359
        %v4378 = vmul.f32 %v4348, %v4357
        %v4379 = vmul.f32 %v4349, %v4358
        %v4380 = vmul.f32 %v4350, %v4359
        %v4381 = vmul.f32 %v4351, %v4357
        %v4382 = vmul.f32 %v4352, %v4358
        %v4383 = vmul.f32 %v4353, %v4359
        %v4405 = vrot.slane %v4363, 1
        %v4406 = vrot.slane %v4364, 1
        %v4407 = vrot.slane %v4365, 1
        %v4408 = vrot.slane %v4366, 1
        %v4409 = vrot.slane %v4367, 1
        %v4410 = vrot.slane %v4368, 1
        %v4411 = vrot.slane %v4369, 1
        %v4412 = vrot.slane %v4370, 1
        %v4413 = vrot.slane %v4371, 1
        %v4414 = vrot.slane %v4372, 1
        %v4415 = vrot.slane %v4373, 1
        %v4416 = vrot.slane %v4374, 1
        %v4417 = vrot.slane %v4375, 1
        %v4418 = vrot.slane %v4376, 1
        %v4419 = vrot.slane %v4377, 1
        %v4420 = vrot.slane %v4378, 1
        %v4421 = vrot.slane %v4379, 1
        %v4422 = vrot.slane %v4380, 1
        %v4423 = vrot.slane %v4381, 1
        %v4424 = vrot.slane %v4382, 1
        %v4425 = vrot.slane %v4383, 1
        %v4447 = vadd.f32 %v4312, %v4405
        %v4448 = vadd.f32 %v4313, %v4406
        %v4449 = vadd.f32 %v4314, %v4407
        %v4450 = vadd.f32 %v4315, %v4408
        %v4451 = vadd.f32 %v4316, %v4409
        %v4452 = vadd.f32 %v4317, %v4410
        %v4453 = vadd.f32 %v4318, %v4411
        %v4454 = vadd.f32 %v4319, %v4412
        %v4455 = vadd.f32 %v4320, %v4413
        %v4456 = vadd.f32 %v4321, %v4414
        %v4457 = vadd.f32 %v4322, %v4415
        %v4458 = vadd.f32 %v4323, %v4416
        %v4459 = vadd.f32 %v4324, %v4417
        %v4460 = vadd.f32 %v4325, %v4418
        %v4461 = vadd.f32 %v4326, %v4419
        %v4462 = vadd.f32 %v4327, %v4420
        %v4463 = vadd.f32 %v4328, %v4421
        %v4464 = vadd.f32 %v4329, %v4422
        %v4465 = vadd.f32 %v4330, %v4423
        %v4466 = vadd.f32 %v4331, %v4424
        %v4467 = vadd.f32 %v4332, %v4425
        %v4468 = vld [vmem:[%s4260] sm:$0xfc]
        %v4469 = vld [vmem:[%s4260 + $0x8] sm:$0xfc]
        %v4470 = vld [vmem:[%s4260 + $0x10] sm:$0xfc]
        %v4471 = vld [vmem:[%s4260 + $0x18] sm:$0x1]
        %v4472 = vld [vmem:[%s4260 + $0x20] sm:$0x1]
        %v4473 = vld [vmem:[%s4260 + $0x28] sm:$0x1]
        %v4474 = vld [vmem:[%s4260 + $0x30] sm:$0xfc]
        %v4475 = vld [vmem:[%s4260 + $0x38] sm:$0xfc]
        %v4476 = vld [vmem:[%s4260 + $0x40] sm:$0xfc]
        %v4477 = vld [vmem:[%s4260 + $0x48] sm:$0x1]
        %v4478 = vld [vmem:[%s4260 + $0x50] sm:$0x1]
        %v4479 = vld [vmem:[%s4260 + $0x58] sm:$0x1]
        %v4480 = vld [vmem:[%s4260 + $0x60] sm:$0xfc]
        %v4481 = vld [vmem:[%s4260 + $0x68] sm:$0xfc]
        %v4482 = vld [vmem:[%s4260 + $0x70] sm:$0xfc]
        %v4483 = vld [vmem:[%s4260 + $0x78] sm:$0x1]
        %v4484 = vld [vmem:[%s4260 + $0x80] sm:$0x1]
        %v4485 = vld [vmem:[%s4260 + $0x88] sm:$0x1]
        %v4486 = vld [vmem:[%s4260 + $0x90] sm:$0xfc]
        %v4487 = vld [vmem:[%s4260 + $0x98] sm:$0xfc]
        %v4488 = vld [vmem:[%s4260 + $0xa0] sm:$0xfc]
        %v4489 = vld [vmem:[%s4260 + $0xa8] sm:$0x1]
        %v4490 = vld [vmem:[%s4260 + $0xb0] sm:$0x1]
        %v4491 = vld [vmem:[%s4260 + $0xb8] sm:$0x1]
        %v4492 = vld [vmem:[%s4260 + $0xc0] sm:$0xfc]
        %v4493 = vld [vmem:[%s4260 + $0xc8] sm:$0xfc]
        %v4494 = vld [vmem:[%s4260 + $0xd0] sm:$0xfc]
        %v4495 = vld [vmem:[%s4260 + $0xd8] sm:$0x1]
        %v4496 = vld [vmem:[%s4260 + $0xe0] sm:$0x1]
        %v4497 = vld [vmem:[%s4260 + $0xe8] sm:$0x1]
        %v4498 = vld [vmem:[%s4260 + $0xf0] sm:$0xfc]
        %v4499 = vld [vmem:[%s4260 + $0xf8] sm:$0xfc]
        %v4500 = vld [vmem:[%s4260 + $0x100] sm:$0xfc]
        %v4501 = vld [vmem:[%s4260 + $0x108] sm:$0x1]
        %v4502 = vld [vmem:[%s4260 + $0x110] sm:$0x1]
        %v4503 = vld [vmem:[%s4260 + $0x118] sm:$0x1]
        %v4504 = vld [vmem:[%s4260 + $0x120] sm:$0xfc]
        %v4505 = vld [vmem:[%s4260 + $0x128] sm:$0xfc]
        %v4506 = vld [vmem:[%s4260 + $0x130] sm:$0xfc]
        %v4507 = vld [vmem:[%s4260 + $0x138] sm:$0x1]
        %v4508 = vld [vmem:[%s4260 + $0x140] sm:$0x1]
        %v4509 = vld [vmem:[%s4260 + $0x148] sm:$0x1]
        %s4510 = scalar_lea.vmem %s308, 54 [#allocation4]
        %v4511 = vld [vmem:[%s4510] ss:$8 sm:$0x7]
        %v4513 = vperm.slane %v4511, 0
        %v4514 = vperm.slane %v4511, 1
        %v4515 = vperm.slane %v4511, 2
        %v4519 = vmul.f32 %v4468, %v4513
        %v4520 = vmul.f32 %v4469, %v4514
        %v4521 = vmul.f32 %v4470, %v4515
        %v4522 = vmul.f32 %v4471, %v4513
        %v4523 = vmul.f32 %v4472, %v4514
        %v4524 = vmul.f32 %v4473, %v4515
        %v4525 = vmul.f32 %v4474, %v4513
        %v4526 = vmul.f32 %v4475, %v4514
        %v4527 = vmul.f32 %v4476, %v4515
        %v4528 = vmul.f32 %v4477, %v4513
        %v4529 = vmul.f32 %v4478, %v4514
        %v4530 = vmul.f32 %v4479, %v4515
        %v4531 = vmul.f32 %v4480, %v4513
        %v4532 = vmul.f32 %v4481, %v4514
        %v4533 = vmul.f32 %v4482, %v4515
        %v4534 = vmul.f32 %v4483, %v4513
        %v4535 = vmul.f32 %v4484, %v4514
        %v4536 = vmul.f32 %v4485, %v4515
        %v4537 = vmul.f32 %v4486, %v4513
        %v4538 = vmul.f32 %v4487, %v4514
        %v4539 = vmul.f32 %v4488, %v4515
        %v4540 = vmul.f32 %v4489, %v4513
        %v4541 = vmul.f32 %v4490, %v4514
        %v4542 = vmul.f32 %v4491, %v4515
        %v4543 = vmul.f32 %v4492, %v4513
        %v4544 = vmul.f32 %v4493, %v4514
        %v4545 = vmul.f32 %v4494, %v4515
        %v4546 = vmul.f32 %v4495, %v4513
        %v4547 = vmul.f32 %v4496, %v4514
        %v4548 = vmul.f32 %v4497, %v4515
        %v4549 = vmul.f32 %v4498, %v4513
        %v4550 = vmul.f32 %v4499, %v4514
        %v4551 = vmul.f32 %v4500, %v4515
        %v4552 = vmul.f32 %v4501, %v4513
        %v4553 = vmul.f32 %v4502, %v4514
        %v4554 = vmul.f32 %v4503, %v4515
        %v4555 = vmul.f32 %v4504, %v4513
        %v4556 = vmul.f32 %v4505, %v4514
        %v4557 = vmul.f32 %v4506, %v4515
        %v4558 = vmul.f32 %v4507, %v4513
        %v4559 = vmul.f32 %v4508, %v4514
        %v4560 = vmul.f32 %v4509, %v4515
        %v4603 = vrot.slane %v4519, 2
        %v4604 = vrot.slane %v4522, 2
        %v4605 = vsel %vm889, %v4603, %v4604
        %v4606 = vrot.slane %v4520, 2
        %v4607 = vrot.slane %v4523, 2
        %v4608 = vsel %vm889, %v4606, %v4607
        %v4609 = vrot.slane %v4521, 2
        %v4610 = vrot.slane %v4524, 2
        %v4611 = vsel %vm889, %v4609, %v4610
        %v4612 = vrot.slane %v4525, 2
        %v4613 = vrot.slane %v4528, 2
        %v4614 = vsel %vm889, %v4612, %v4613
        %v4615 = vrot.slane %v4526, 2
        %v4616 = vrot.slane %v4529, 2
        %v4617 = vsel %vm889, %v4615, %v4616
        %v4618 = vrot.slane %v4527, 2
        %v4619 = vrot.slane %v4530, 2
        %v4620 = vsel %vm889, %v4618, %v4619
        %v4621 = vrot.slane %v4531, 2
        %v4622 = vrot.slane %v4534, 2
        %v4623 = vsel %vm889, %v4621, %v4622
        %v4624 = vrot.slane %v4532, 2
        %v4625 = vrot.slane %v4535, 2
        %v4626 = vsel %vm889, %v4624, %v4625
        %v4627 = vrot.slane %v4533, 2
        %v4628 = vrot.slane %v4536, 2
        %v4629 = vsel %vm889, %v4627, %v4628
        %v4630 = vrot.slane %v4537, 2
        %v4631 = vrot.slane %v4540, 2
        %v4632 = vsel %vm889, %v4630, %v4631
        %v4633 = vrot.slane %v4538, 2
        %v4634 = vrot.slane %v4541, 2
        %v4635 = vsel %vm889, %v4633, %v4634
        %v4636 = vrot.slane %v4539, 2
        %v4637 = vrot.slane %v4542, 2
        %v4638 = vsel %vm889, %v4636, %v4637
        %v4639 = vrot.slane %v4543, 2
        %v4640 = vrot.slane %v4546, 2
        %v4641 = vsel %vm889, %v4639, %v4640
        %v4642 = vrot.slane %v4544, 2
        %v4643 = vrot.slane %v4547, 2
        %v4644 = vsel %vm889, %v4642, %v4643
        %v4645 = vrot.slane %v4545, 2
        %v4646 = vrot.slane %v4548, 2
        %v4647 = vsel %vm889, %v4645, %v4646
        %v4648 = vrot.slane %v4549, 2
        %v4649 = vrot.slane %v4552, 2
        %v4650 = vsel %vm889, %v4648, %v4649
        %v4651 = vrot.slane %v4550, 2
        %v4652 = vrot.slane %v4553, 2
        %v4653 = vsel %vm889, %v4651, %v4652
        %v4654 = vrot.slane %v4551, 2
        %v4655 = vrot.slane %v4554, 2
        %v4656 = vsel %vm889, %v4654, %v4655
        %v4657 = vrot.slane %v4555, 2
        %v4658 = vrot.slane %v4558, 2
        %v4659 = vsel %vm889, %v4657, %v4658
        %v4660 = vrot.slane %v4556, 2
        %v4661 = vrot.slane %v4559, 2
        %v4662 = vsel %vm889, %v4660, %v4661
        %v4663 = vrot.slane %v4557, 2
        %v4664 = vrot.slane %v4560, 2
        %v4665 = vsel %vm889, %v4663, %v4664
        %v4687 = vadd.f32 %v4447, %v4605
        %v4688 = vadd.f32 %v4448, %v4608
        %v4689 = vadd.f32 %v4449, %v4611
        %v4690 = vadd.f32 %v4450, %v4614
        %v4691 = vadd.f32 %v4451, %v4617
        %v4692 = vadd.f32 %v4452, %v4620
        %v4693 = vadd.f32 %v4453, %v4623
        %v4694 = vadd.f32 %v4454, %v4626
        %v4695 = vadd.f32 %v4455, %v4629
        %v4696 = vadd.f32 %v4456, %v4632
        %v4697 = vadd.f32 %v4457, %v4635
        %v4698 = vadd.f32 %v4458, %v4638
        %v4699 = vadd.f32 %v4459, %v4641
        %v4700 = vadd.f32 %v4460, %v4644
        %v4701 = vadd.f32 %v4461, %v4647
        %v4702 = vadd.f32 %v4462, %v4650
        %v4703 = vadd.f32 %v4463, %v4653
        %v4704 = vadd.f32 %v4464, %v4656
        %v4705 = vadd.f32 %v4465, %v4659
        %v4706 = vadd.f32 %v4466, %v4662
        %v4707 = vadd.f32 %v4467, %v4665
        %v4708 = vld [vmem:[%s4260] sm:$0xf8]
        %v4709 = vld [vmem:[%s4260 + $0x8] sm:$0xf8]
        %v4710 = vld [vmem:[%s4260 + $0x10] sm:$0xf8]
        %v4711 = vld [vmem:[%s4260 + $0x18] sm:$0x3]
        %v4712 = vld [vmem:[%s4260 + $0x20] sm:$0x3]
        %v4713 = vld [vmem:[%s4260 + $0x28] sm:$0x3]
        %v4714 = vld [vmem:[%s4260 + $0x30] sm:$0xf8]
        %v4715 = vld [vmem:[%s4260 + $0x38] sm:$0xf8]
        %v4716 = vld [vmem:[%s4260 + $0x40] sm:$0xf8]
        %v4717 = vld [vmem:[%s4260 + $0x48] sm:$0x3]
        %v4718 = vld [vmem:[%s4260 + $0x50] sm:$0x3]
        %v4719 = vld [vmem:[%s4260 + $0x58] sm:$0x3]
        %v4720 = vld [vmem:[%s4260 + $0x60] sm:$0xf8]
        %v4721 = vld [vmem:[%s4260 + $0x68] sm:$0xf8]
        %v4722 = vld [vmem:[%s4260 + $0x70] sm:$0xf8]
        %v4723 = vld [vmem:[%s4260 + $0x78] sm:$0x3]
        %v4724 = vld [vmem:[%s4260 + $0x80] sm:$0x3]
        %v4725 = vld [vmem:[%s4260 + $0x88] sm:$0x3]
        %v4726 = vld [vmem:[%s4260 + $0x90] sm:$0xf8]
        %v4727 = vld [vmem:[%s4260 + $0x98] sm:$0xf8]
        %v4728 = vld [vmem:[%s4260 + $0xa0] sm:$0xf8]
        %v4729 = vld [vmem:[%s4260 + $0xa8] sm:$0x3]
        %v4730 = vld [vmem:[%s4260 + $0xb0] sm:$0x3]
        %v4731 = vld [vmem:[%s4260 + $0xb8] sm:$0x3]
        %v4732 = vld [vmem:[%s4260 + $0xc0] sm:$0xf8]
        %v4733 = vld [vmem:[%s4260 + $0xc8] sm:$0xf8]
        %v4734 = vld [vmem:[%s4260 + $0xd0] sm:$0xf8]
        %v4735 = vld [vmem:[%s4260 + $0xd8] sm:$0x3]
        %v4736 = vld [vmem:[%s4260 + $0xe0] sm:$0x3]
        %v4737 = vld [vmem:[%s4260 + $0xe8] sm:$0x3]
        %v4738 = vld [vmem:[%s4260 + $0xf0] sm:$0xf8]
        %v4739 = vld [vmem:[%s4260 + $0xf8] sm:$0xf8]
        %v4740 = vld [vmem:[%s4260 + $0x100] sm:$0xf8]
        %v4741 = vld [vmem:[%s4260 + $0x108] sm:$0x3]
        %v4742 = vld [vmem:[%s4260 + $0x110] sm:$0x3]
        %v4743 = vld [vmem:[%s4260 + $0x118] sm:$0x3]
        %v4744 = vld [vmem:[%s4260 + $0x120] sm:$0xf8]
        %v4745 = vld [vmem:[%s4260 + $0x128] sm:$0xf8]
        %v4746 = vld [vmem:[%s4260 + $0x130] sm:$0xf8]
        %v4747 = vld [vmem:[%s4260 + $0x138] sm:$0x3]
        %v4748 = vld [vmem:[%s4260 + $0x140] sm:$0x3]
        %v4749 = vld [vmem:[%s4260 + $0x148] sm:$0x3]
        %s4750 = scalar_lea.vmem %s308, 55 [#allocation4]
        %v4751 = vld [vmem:[%s4750] ss:$8 sm:$0x7]
        %v4753 = vperm.slane %v4751, 0
        %v4754 = vperm.slane %v4751, 1
        %v4755 = vperm.slane %v4751, 2
        %v4759 = vmul.f32 %v4708, %v4753
        %v4760 = vmul.f32 %v4709, %v4754
        %v4761 = vmul.f32 %v4710, %v4755
        %v4762 = vmul.f32 %v4711, %v4753
        %v4763 = vmul.f32 %v4712, %v4754
        %v4764 = vmul.f32 %v4713, %v4755
        %v4765 = vmul.f32 %v4714, %v4753
        %v4766 = vmul.f32 %v4715, %v4754
        %v4767 = vmul.f32 %v4716, %v4755
        %v4768 = vmul.f32 %v4717, %v4753
        %v4769 = vmul.f32 %v4718, %v4754
        %v4770 = vmul.f32 %v4719, %v4755
        %v4771 = vmul.f32 %v4720, %v4753
        %v4772 = vmul.f32 %v4721, %v4754
        %v4773 = vmul.f32 %v4722, %v4755
        %v4774 = vmul.f32 %v4723, %v4753
        %v4775 = vmul.f32 %v4724, %v4754
        %v4776 = vmul.f32 %v4725, %v4755
        %v4777 = vmul.f32 %v4726, %v4753
        %v4778 = vmul.f32 %v4727, %v4754
        %v4779 = vmul.f32 %v4728, %v4755
        %v4780 = vmul.f32 %v4729, %v4753
        %v4781 = vmul.f32 %v4730, %v4754
        %v4782 = vmul.f32 %v4731, %v4755
        %v4783 = vmul.f32 %v4732, %v4753
        %v4784 = vmul.f32 %v4733, %v4754
        %v4785 = vmul.f32 %v4734, %v4755
        %v4786 = vmul.f32 %v4735, %v4753
        %v4787 = vmul.f32 %v4736, %v4754
        %v4788 = vmul.f32 %v4737, %v4755
        %v4789 = vmul.f32 %v4738, %v4753
        %v4790 = vmul.f32 %v4739, %v4754
        %v4791 = vmul.f32 %v4740, %v4755
        %v4792 = vmul.f32 %v4741, %v4753
        %v4793 = vmul.f32 %v4742, %v4754
        %v4794 = vmul.f32 %v4743, %v4755
        %v4795 = vmul.f32 %v4744, %v4753
        %v4796 = vmul.f32 %v4745, %v4754
        %v4797 = vmul.f32 %v4746, %v4755
        %v4798 = vmul.f32 %v4747, %v4753
        %v4799 = vmul.f32 %v4748, %v4754
        %v4800 = vmul.f32 %v4749, %v4755
        %v4843 = vrot.slane %v4759, 3
        %v4844 = vrot.slane %v4762, 3
        %v4845 = vsel %vm1130, %v4843, %v4844
        %v4846 = vrot.slane %v4760, 3
        %v4847 = vrot.slane %v4763, 3
        %v4848 = vsel %vm1130, %v4846, %v4847
        %v4849 = vrot.slane %v4761, 3
        %v4850 = vrot.slane %v4764, 3
        %v4851 = vsel %vm1130, %v4849, %v4850
        %v4852 = vrot.slane %v4765, 3
        %v4853 = vrot.slane %v4768, 3
        %v4854 = vsel %vm1130, %v4852, %v4853
        %v4855 = vrot.slane %v4766, 3
        %v4856 = vrot.slane %v4769, 3
        %v4857 = vsel %vm1130, %v4855, %v4856
        %v4858 = vrot.slane %v4767, 3
        %v4859 = vrot.slane %v4770, 3
        %v4860 = vsel %vm1130, %v4858, %v4859
        %v4861 = vrot.slane %v4771, 3
        %v4862 = vrot.slane %v4774, 3
        %v4863 = vsel %vm1130, %v4861, %v4862
        %v4864 = vrot.slane %v4772, 3
        %v4865 = vrot.slane %v4775, 3
        %v4866 = vsel %vm1130, %v4864, %v4865
        %v4867 = vrot.slane %v4773, 3
        %v4868 = vrot.slane %v4776, 3
        %v4869 = vsel %vm1130, %v4867, %v4868
        %v4870 = vrot.slane %v4777, 3
        %v4871 = vrot.slane %v4780, 3
        %v4872 = vsel %vm1130, %v4870, %v4871
        %v4873 = vrot.slane %v4778, 3
        %v4874 = vrot.slane %v4781, 3
        %v4875 = vsel %vm1130, %v4873, %v4874
        %v4876 = vrot.slane %v4779, 3
        %v4877 = vrot.slane %v4782, 3
        %v4878 = vsel %vm1130, %v4876, %v4877
        %v4879 = vrot.slane %v4783, 3
        %v4880 = vrot.slane %v4786, 3
        %v4881 = vsel %vm1130, %v4879, %v4880
        %v4882 = vrot.slane %v4784, 3
        %v4883 = vrot.slane %v4787, 3
        %v4884 = vsel %vm1130, %v4882, %v4883
        %v4885 = vrot.slane %v4785, 3
        %v4886 = vrot.slane %v4788, 3
        %v4887 = vsel %vm1130, %v4885, %v4886
        %v4888 = vrot.slane %v4789, 3
        %v4889 = vrot.slane %v4792, 3
        %v4890 = vsel %vm1130, %v4888, %v4889
        %v4891 = vrot.slane %v4790, 3
        %v4892 = vrot.slane %v4793, 3
        %v4893 = vsel %vm1130, %v4891, %v4892
        %v4894 = vrot.slane %v4791, 3
        %v4895 = vrot.slane %v4794, 3
        %v4896 = vsel %vm1130, %v4894, %v4895
        %v4897 = vrot.slane %v4795, 3
        %v4898 = vrot.slane %v4798, 3
        %v4899 = vsel %vm1130, %v4897, %v4898
        %v4900 = vrot.slane %v4796, 3
        %v4901 = vrot.slane %v4799, 3
        %v4902 = vsel %vm1130, %v4900, %v4901
        %v4903 = vrot.slane %v4797, 3
        %v4904 = vrot.slane %v4800, 3
        %v4905 = vsel %vm1130, %v4903, %v4904
        %v4927 = vadd.f32 %v4687, %v4845
        %v4928 = vadd.f32 %v4688, %v4848
        %v4929 = vadd.f32 %v4689, %v4851
        %v4930 = vadd.f32 %v4690, %v4854
        %v4931 = vadd.f32 %v4691, %v4857
        %v4932 = vadd.f32 %v4692, %v4860
        %v4933 = vadd.f32 %v4693, %v4863
        %v4934 = vadd.f32 %v4694, %v4866
        %v4935 = vadd.f32 %v4695, %v4869
        %v4936 = vadd.f32 %v4696, %v4872
        %v4937 = vadd.f32 %v4697, %v4875
        %v4938 = vadd.f32 %v4698, %v4878
        %v4939 = vadd.f32 %v4699, %v4881
        %v4940 = vadd.f32 %v4700, %v4884
        %v4941 = vadd.f32 %v4701, %v4887
        %v4942 = vadd.f32 %v4702, %v4890
        %v4943 = vadd.f32 %v4703, %v4893
        %v4944 = vadd.f32 %v4704, %v4896
        %v4945 = vadd.f32 %v4705, %v4899
        %v4946 = vadd.f32 %v4706, %v4902
        %v4947 = vadd.f32 %v4707, %v4905
        %v4948 = vld [vmem:[%s4260] sm:$0xf0]
        %v4949 = vld [vmem:[%s4260 + $0x8] sm:$0xf0]
        %v4950 = vld [vmem:[%s4260 + $0x10] sm:$0xf0]
        %v4951 = vld [vmem:[%s4260 + $0x18] sm:$0x7]
        %v4952 = vld [vmem:[%s4260 + $0x20] sm:$0x7]
        %v4953 = vld [vmem:[%s4260 + $0x28] sm:$0x7]
        %v4954 = vld [vmem:[%s4260 + $0x30] sm:$0xf0]
        %v4955 = vld [vmem:[%s4260 + $0x38] sm:$0xf0]
        %v4956 = vld [vmem:[%s4260 + $0x40] sm:$0xf0]
        %v4957 = vld [vmem:[%s4260 + $0x48] sm:$0x7]
        %v4958 = vld [vmem:[%s4260 + $0x50] sm:$0x7]
        %v4959 = vld [vmem:[%s4260 + $0x58] sm:$0x7]
        %v4960 = vld [vmem:[%s4260 + $0x60] sm:$0xf0]
        %v4961 = vld [vmem:[%s4260 + $0x68] sm:$0xf0]
        %v4962 = vld [vmem:[%s4260 + $0x70] sm:$0xf0]
        %v4963 = vld [vmem:[%s4260 + $0x78] sm:$0x7]
        %v4964 = vld [vmem:[%s4260 + $0x80] sm:$0x7]
        %v4965 = vld [vmem:[%s4260 + $0x88] sm:$0x7]
        %v4966 = vld [vmem:[%s4260 + $0x90] sm:$0xf0]
        %v4967 = vld [vmem:[%s4260 + $0x98] sm:$0xf0]
        %v4968 = vld [vmem:[%s4260 + $0xa0] sm:$0xf0]
        %v4969 = vld [vmem:[%s4260 + $0xa8] sm:$0x7]
        %v4970 = vld [vmem:[%s4260 + $0xb0] sm:$0x7]
        %v4971 = vld [vmem:[%s4260 + $0xb8] sm:$0x7]
        %v4972 = vld [vmem:[%s4260 + $0xc0] sm:$0xf0]
        %v4973 = vld [vmem:[%s4260 + $0xc8] sm:$0xf0]
        %v4974 = vld [vmem:[%s4260 + $0xd0] sm:$0xf0]
        %v4975 = vld [vmem:[%s4260 + $0xd8] sm:$0x7]
        %v4976 = vld [vmem:[%s4260 + $0xe0] sm:$0x7]
        %v4977 = vld [vmem:[%s4260 + $0xe8] sm:$0x7]
        %v4978 = vld [vmem:[%s4260 + $0xf0] sm:$0xf0]
        %v4979 = vld [vmem:[%s4260 + $0xf8] sm:$0xf0]
        %v4980 = vld [vmem:[%s4260 + $0x100] sm:$0xf0]
        %v4981 = vld [vmem:[%s4260 + $0x108] sm:$0x7]
        %v4982 = vld [vmem:[%s4260 + $0x110] sm:$0x7]
        %v4983 = vld [vmem:[%s4260 + $0x118] sm:$0x7]
        %v4984 = vld [vmem:[%s4260 + $0x120] sm:$0xf0]
        %v4985 = vld [vmem:[%s4260 + $0x128] sm:$0xf0]
        %v4986 = vld [vmem:[%s4260 + $0x130] sm:$0xf0]
        %v4987 = vld [vmem:[%s4260 + $0x138] sm:$0x7]
        %v4988 = vld [vmem:[%s4260 + $0x140] sm:$0x7]
        %v4989 = vld [vmem:[%s4260 + $0x148] sm:$0x7]
        %s4990 = scalar_lea.vmem %s308, 72 [#allocation4]
        %v4991 = vld [vmem:[%s4990] ss:$8 sm:$0x7]
        %v4993 = vperm.slane %v4991, 0
        %v4994 = vperm.slane %v4991, 1
        %v4995 = vperm.slane %v4991, 2
        %v4999 = vmul.f32 %v4948, %v4993
        %v5000 = vmul.f32 %v4949, %v4994
        %v5001 = vmul.f32 %v4950, %v4995
        %v5002 = vmul.f32 %v4951, %v4993
        %v5003 = vmul.f32 %v4952, %v4994
        %v5004 = vmul.f32 %v4953, %v4995
        %v5005 = vmul.f32 %v4954, %v4993
        %v5006 = vmul.f32 %v4955, %v4994
        %v5007 = vmul.f32 %v4956, %v4995
        %v5008 = vmul.f32 %v4957, %v4993
        %v5009 = vmul.f32 %v4958, %v4994
        %v5010 = vmul.f32 %v4959, %v4995
        %v5011 = vmul.f32 %v4960, %v4993
        %v5012 = vmul.f32 %v4961, %v4994
        %v5013 = vmul.f32 %v4962, %v4995
        %v5014 = vmul.f32 %v4963, %v4993
        %v5015 = vmul.f32 %v4964, %v4994
        %v5016 = vmul.f32 %v4965, %v4995
        %v5017 = vmul.f32 %v4966, %v4993
        %v5018 = vmul.f32 %v4967, %v4994
        %v5019 = vmul.f32 %v4968, %v4995
        %v5020 = vmul.f32 %v4969, %v4993
        %v5021 = vmul.f32 %v4970, %v4994
        %v5022 = vmul.f32 %v4971, %v4995
        %v5023 = vmul.f32 %v4972, %v4993
        %v5024 = vmul.f32 %v4973, %v4994
        %v5025 = vmul.f32 %v4974, %v4995
        %v5026 = vmul.f32 %v4975, %v4993
        %v5027 = vmul.f32 %v4976, %v4994
        %v5028 = vmul.f32 %v4977, %v4995
        %v5029 = vmul.f32 %v4978, %v4993
        %v5030 = vmul.f32 %v4979, %v4994
        %v5031 = vmul.f32 %v4980, %v4995
        %v5032 = vmul.f32 %v4981, %v4993
        %v5033 = vmul.f32 %v4982, %v4994
        %v5034 = vmul.f32 %v4983, %v4995
        %v5035 = vmul.f32 %v4984, %v4993
        %v5036 = vmul.f32 %v4985, %v4994
        %v5037 = vmul.f32 %v4986, %v4995
        %v5038 = vmul.f32 %v4987, %v4993
        %v5039 = vmul.f32 %v4988, %v4994
        %v5040 = vmul.f32 %v4989, %v4995
        %v5083 = vrot.slane %v4999, 4
        %v5084 = vrot.slane %v5002, 4
        %v5085 = vsel %vm1371, %v5083, %v5084
        %v5086 = vrot.slane %v5000, 4
        %v5087 = vrot.slane %v5003, 4
        %v5088 = vsel %vm1371, %v5086, %v5087
        %v5089 = vrot.slane %v5001, 4
        %v5090 = vrot.slane %v5004, 4
        %v5091 = vsel %vm1371, %v5089, %v5090
        %v5092 = vrot.slane %v5005, 4
        %v5093 = vrot.slane %v5008, 4
        %v5094 = vsel %vm1371, %v5092, %v5093
        %v5095 = vrot.slane %v5006, 4
        %v5096 = vrot.slane %v5009, 4
        %v5097 = vsel %vm1371, %v5095, %v5096
        %v5098 = vrot.slane %v5007, 4
        %v5099 = vrot.slane %v5010, 4
        %v5100 = vsel %vm1371, %v5098, %v5099
        %v5101 = vrot.slane %v5011, 4
        %v5102 = vrot.slane %v5014, 4
        %v5103 = vsel %vm1371, %v5101, %v5102
        %v5104 = vrot.slane %v5012, 4
        %v5105 = vrot.slane %v5015, 4
        %v5106 = vsel %vm1371, %v5104, %v5105
        %v5107 = vrot.slane %v5013, 4
        %v5108 = vrot.slane %v5016, 4
        %v5109 = vsel %vm1371, %v5107, %v5108
        %v5110 = vrot.slane %v5017, 4
        %v5111 = vrot.slane %v5020, 4
        %v5112 = vsel %vm1371, %v5110, %v5111
        %v5113 = vrot.slane %v5018, 4
        %v5114 = vrot.slane %v5021, 4
        %v5115 = vsel %vm1371, %v5113, %v5114
        %v5116 = vrot.slane %v5019, 4
        %v5117 = vrot.slane %v5022, 4
        %v5118 = vsel %vm1371, %v5116, %v5117
        %v5119 = vrot.slane %v5023, 4
        %v5120 = vrot.slane %v5026, 4
        %v5121 = vsel %vm1371, %v5119, %v5120
        %v5122 = vrot.slane %v5024, 4
        %v5123 = vrot.slane %v5027, 4
        %v5124 = vsel %vm1371, %v5122, %v5123
        %v5125 = vrot.slane %v5025, 4
        %v5126 = vrot.slane %v5028, 4
        %v5127 = vsel %vm1371, %v5125, %v5126
        %v5128 = vrot.slane %v5029, 4
        %v5129 = vrot.slane %v5032, 4
        %v5130 = vsel %vm1371, %v5128, %v5129
        %v5131 = vrot.slane %v5030, 4
        %v5132 = vrot.slane %v5033, 4
        %v5133 = vsel %vm1371, %v5131, %v5132
        %v5134 = vrot.slane %v5031, 4
        %v5135 = vrot.slane %v5034, 4
        %v5136 = vsel %vm1371, %v5134, %v5135
        %v5137 = vrot.slane %v5035, 4
        %v5138 = vrot.slane %v5038, 4
        %v5139 = vsel %vm1371, %v5137, %v5138
        %v5140 = vrot.slane %v5036, 4
        %v5141 = vrot.slane %v5039, 4
        %v5142 = vsel %vm1371, %v5140, %v5141
        %v5143 = vrot.slane %v5037, 4
        %v5144 = vrot.slane %v5040, 4
        %v5145 = vsel %vm1371, %v5143, %v5144
        %v5167 = vadd.f32 %v4927, %v5085
        %v5168 = vadd.f32 %v4928, %v5088
        %v5169 = vadd.f32 %v4929, %v5091
        %v5170 = vadd.f32 %v4930, %v5094
        %v5171 = vadd.f32 %v4931, %v5097
        %v5172 = vadd.f32 %v4932, %v5100
        %v5173 = vadd.f32 %v4933, %v5103
        %v5174 = vadd.f32 %v4934, %v5106
        %v5175 = vadd.f32 %v4935, %v5109
        %v5176 = vadd.f32 %v4936, %v5112
        %v5177 = vadd.f32 %v4937, %v5115
        %v5178 = vadd.f32 %v4938, %v5118
        %v5179 = vadd.f32 %v4939, %v5121
        %v5180 = vadd.f32 %v4940, %v5124
        %v5181 = vadd.f32 %v4941, %v5127
        %v5182 = vadd.f32 %v4942, %v5130
        %v5183 = vadd.f32 %v4943, %v5133
        %v5184 = vadd.f32 %v4944, %v5136
        %v5185 = vadd.f32 %v4945, %v5139
        %v5186 = vadd.f32 %v4946, %v5142
        %v5187 = vadd.f32 %v4947, %v5145
        %vm5188 = vcmask 1046528
        %v5189 = vsel %vm5188, %v5167, 0.0
        %v5190 = vsel %vm5188, %v5170, 0.0
        %v5191 = vadd.f32 %v5189, %v5190
        %v5192 = vsel %vm5188, %v5173, 0.0
        %v5193 = vadd.f32 %v5191, %v5192
        %v5194 = vsel %vm5188, %v5176, 0.0
        %v5195 = vadd.f32 %v5193, %v5194
        %v5196 = vsel %vm5188, %v5179, 0.0
        %v5197 = vadd.f32 %v5195, %v5196
        %v5198 = vsel %vm5188, %v5182, 0.0
        %v5199 = vadd.f32 %v5197, %v5198
        %v5200 = vsel %vm5188, %v5185, 0.0
        %v5201 = vadd.f32 %v5199, %v5200
        %v5202 = vrot.slane %v5201, 4
        %v5203 = vadd.f32 %v5201, %v5202
        %v5204 = vrot.slane %v5203, 2
        %v5205 = vadd.f32 %v5203, %v5204
        %v5206 = vrot.slane %v5205, 1
        %v5207 = vadd.f32 %v5205, %v5206
        %v5208 = vsel %vm5188, %v5168, 0.0
        %v5209 = vsel %vm5188, %v5171, 0.0
        %v5210 = vadd.f32 %v5208, %v5209
        %v5211 = vsel %vm5188, %v5174, 0.0
        %v5212 = vadd.f32 %v5210, %v5211
        %v5213 = vsel %vm5188, %v5177, 0.0
        %v5214 = vadd.f32 %v5212, %v5213
        %v5215 = vsel %vm5188, %v5180, 0.0
        %v5216 = vadd.f32 %v5214, %v5215
        %v5217 = vsel %vm5188, %v5183, 0.0
        %v5218 = vadd.f32 %v5216, %v5217
        %v5219 = vsel %vm5188, %v5186, 0.0
        %v5220 = vadd.f32 %v5218, %v5219
        %v5221 = vrot.slane %v5220, 4
        %v5222 = vadd.f32 %v5220, %v5221
        %v5223 = vrot.slane %v5222, 2
        %v5224 = vadd.f32 %v5222, %v5223
        %v5225 = vrot.slane %v5224, 1
        %v5226 = vadd.f32 %v5224, %v5225
        %v5227 = vsel %vm5188, %v5169, 0.0
        %v5228 = vsel %vm5188, %v5172, 0.0
        %v5229 = vadd.f32 %v5227, %v5228
        %v5230 = vsel %vm5188, %v5175, 0.0
        %v5231 = vadd.f32 %v5229, %v5230
        %v5232 = vsel %vm5188, %v5178, 0.0
        %v5233 = vadd.f32 %v5231, %v5232
        %v5234 = vsel %vm5188, %v5181, 0.0
        %v5235 = vadd.f32 %v5233, %v5234
        %v5236 = vsel %vm5188, %v5184, 0.0
        %v5237 = vadd.f32 %v5235, %v5236
        %v5238 = vsel %vm5188, %v5187, 0.0
        %v5239 = vadd.f32 %v5237, %v5238
        %v5240 = vrot.slane %v5239, 4
        %v5241 = vadd.f32 %v5239, %v5240
        %v5242 = vrot.slane %v5241, 2
        %v5243 = vadd.f32 %v5241, %v5242
        %v5244 = vrot.slane %v5243, 1
        %v5245 = vadd.f32 %v5243, %v5244
        %v5246 = vmul.f32 %v5167, %v5167
        %v5247 = vmul.f32 %v5168, %v5168
        %v5248 = vmul.f32 %v5169, %v5169
        %v5249 = vmul.f32 %v5170, %v5170
        %v5250 = vmul.f32 %v5171, %v5171
        %v5251 = vmul.f32 %v5172, %v5172
        %v5252 = vmul.f32 %v5173, %v5173
        %v5253 = vmul.f32 %v5174, %v5174
        %v5254 = vmul.f32 %v5175, %v5175
        %v5255 = vmul.f32 %v5176, %v5176
        %v5256 = vmul.f32 %v5177, %v5177
        %v5257 = vmul.f32 %v5178, %v5178
        %v5258 = vmul.f32 %v5179, %v5179
        %v5259 = vmul.f32 %v5180, %v5180
        %v5260 = vmul.f32 %v5181, %v5181
        %v5261 = vmul.f32 %v5182, %v5182
        %v5262 = vmul.f32 %v5183, %v5183
        %v5263 = vmul.f32 %v5184, %v5184
        %v5264 = vmul.f32 %v5185, %v5185
        %v5265 = vmul.f32 %v5186, %v5186
        %v5266 = vmul.f32 %v5187, %v5187
        %v5267 = vsel %vm5188, %v5246, 0.0
        %v5268 = vsel %vm5188, %v5249, 0.0
        %v5269 = vadd.f32 %v5267, %v5268
        %v5270 = vsel %vm5188, %v5252, 0.0
        %v5271 = vadd.f32 %v5269, %v5270
        %v5272 = vsel %vm5188, %v5255, 0.0
        %v5273 = vadd.f32 %v5271, %v5272
        %v5274 = vsel %vm5188, %v5258, 0.0
        %v5275 = vadd.f32 %v5273, %v5274
        %v5276 = vsel %vm5188, %v5261, 0.0
        %v5277 = vadd.f32 %v5275, %v5276
        %v5278 = vsel %vm5188, %v5264, 0.0
        %v5279 = vadd.f32 %v5277, %v5278
        %v5280 = vrot.slane %v5279, 4
        %v5281 = vadd.f32 %v5279, %v5280
        %v5282 = vrot.slane %v5281, 2
        %v5283 = vadd.f32 %v5281, %v5282
        %v5284 = vrot.slane %v5283, 1
        %v5285 = vadd.f32 %v5283, %v5284
        %v5286 = vsel %vm5188, %v5247, 0.0
        %v5287 = vsel %vm5188, %v5250, 0.0
        %v5288 = vadd.f32 %v5286, %v5287
        %v5289 = vsel %vm5188, %v5253, 0.0
        %v5290 = vadd.f32 %v5288, %v5289
        %v5291 = vsel %vm5188, %v5256, 0.0
        %v5292 = vadd.f32 %v5290, %v5291
        %v5293 = vsel %vm5188, %v5259, 0.0
        %v5294 = vadd.f32 %v5292, %v5293
        %v5295 = vsel %vm5188, %v5262, 0.0
        %v5296 = vadd.f32 %v5294, %v5295
        %v5297 = vsel %vm5188, %v5265, 0.0
        %v5298 = vadd.f32 %v5296, %v5297
        %v5299 = vrot.slane %v5298, 4
        %v5300 = vadd.f32 %v5298, %v5299
        %v5301 = vrot.slane %v5300, 2
        %v5302 = vadd.f32 %v5300, %v5301
        %v5303 = vrot.slane %v5302, 1
        %v5304 = vadd.f32 %v5302, %v5303
        %v5305 = vsel %vm5188, %v5248, 0.0
        %v5306 = vsel %vm5188, %v5251, 0.0
        %v5307 = vadd.f32 %v5305, %v5306
        %v5308 = vsel %vm5188, %v5254, 0.0
        %v5309 = vadd.f32 %v5307, %v5308
        %v5310 = vsel %vm5188, %v5257, 0.0
        %v5311 = vadd.f32 %v5309, %v5310
        %v5312 = vsel %vm5188, %v5260, 0.0
        %v5313 = vadd.f32 %v5311, %v5312
        %v5314 = vsel %vm5188, %v5263, 0.0
        %v5315 = vadd.f32 %v5313, %v5314
        %v5316 = vsel %vm5188, %v5266, 0.0
        %v5317 = vadd.f32 %v5315, %v5316
        %v5318 = vrot.slane %v5317, 4
        %v5319 = vadd.f32 %v5317, %v5318
        %v5320 = vrot.slane %v5319, 2
        %v5321 = vadd.f32 %v5319, %v5320
        %v5322 = vrot.slane %v5321, 1
        %v5323 = vadd.f32 %v5321, %v5322
        %v5324 = vmul.f32 %v5207, 0.020408163
        %v5325 = vmul.f32 %v5226, 0.020408163
        %v5326 = vmul.f32 %v5245, 0.020408163
        %v5327 = vmul.f32 %v5285, 0.020408163
        %v5328 = vmul.f32 %v5304, 0.020408163
        %v5329 = vmul.f32 %v5323, 0.020408163
        %v5330 = vmul.f32 %v5324, %v5324
        %v5331 = vmul.f32 %v5325, %v5325
        %v5332 = vmul.f32 %v5326, %v5326
        %v5333 = vsub.f32 %v5327, %v5330
        %v5334 = vsub.f32 %v5328, %v5331
        %v5335 = vsub.f32 %v5329, %v5332
        %v5336 = vld [vmem:[%s347] sm:$0x7]
        %v5337 = vadd.f32 %v5333, 0.001
        %v5338 = vadd.f32 %v5334, 0.001
        %v5339 = vadd.f32 %v5335, 0.001
        %v5340 = vrsqrt.pop %v5337
        %v5341 = vmul.f32 %v5340, %v5337
        %v5342 = vmul.f32 %v5341, %v5340
        %v5343 = vmul.f32 0.5, %v5342
        %v5344 = vsub.f32 1.5, %v5343
        %v5345 = vmul.f32 %v5340, %v5344
        %vm5346 = vweird.f32 %v5337
        %vm5347 = vweird.f32 %v5340
        %vm5348 = vmor %vm5346, %vm5347
        %v5349 = vsel %vm5348, %v5340, %v5345
        %v5350 = vrsqrt.pop %v5338
        %v5351 = vmul.f32 %v5350, %v5338
        %v5352 = vmul.f32 %v5351, %v5350
        %v5353 = vmul.f32 0.5, %v5352
        %v5354 = vsub.f32 1.5, %v5353
        %v5355 = vmul.f32 %v5350, %v5354
        %vm5356 = vweird.f32 %v5338
        %vm5357 = vweird.f32 %v5350
        %vm5358 = vmor %vm5356, %vm5357
        %v5359 = vsel %vm5358, %v5350, %v5355
        %v5360 = vrsqrt.pop %v5339
        %v5361 = vmul.f32 %v5360, %v5339
        %v5362 = vmul.f32 %v5361, %v5360
        %v5363 = vmul.f32 0.5, %v5362
        %v5364 = vsub.f32 1.5, %v5363
        %v5365 = vmul.f32 %v5360, %v5364
        %vm5366 = vweird.f32 %v5339
        %vm5367 = vweird.f32 %v5360
        %vm5368 = vmor %vm5366, %vm5367
        %v5369 = vsel %vm5368, %v5360, %v5365
        %v5373 = vrot.slane %v5359, 7
        %v5374 = vrot.slane %v5369, 6
        %vm5375 = vcmask 1040384
        %v5376 = vsel %vm5375, %v5349, %v5373
        %vm5377 = vcmask 1041408
        %v5378 = vsel %vm5377, %v5376, %v5374
        %v5380 = vmul.f32 %v5336, %v5378
        %v5381 = vld [vmem:[%s352] sm:$0x7]
        %v5383 = vperm.slane %v5380, 0
        %v5384 = vperm.slane %v5380, 1
        %v5385 = vperm.slane %v5380, 2
        %v5389 = vmul.f32 %v5324, %v5383
        %v5390 = vmul.f32 %v5325, %v5384
        %v5391 = vmul.f32 %v5326, %v5385
        %v5395 = vrot.slane %v5390, 7
        %v5396 = vrot.slane %v5391, 6
        %v5397 = vsel %vm5375, %v5389, %v5395
        %v5398 = vsel %vm5377, %v5397, %v5396
        %v5400 = vsub.f32 %v5381, %v5398
        %v5401 = vmul.f32 %v5167, %v5383
        %v5402 = vmul.f32 %v5168, %v5384
        %v5403 = vmul.f32 %v5169, %v5385
        %v5404 = vmul.f32 %v5170, %v5383
        %v5405 = vmul.f32 %v5171, %v5384
        %v5406 = vmul.f32 %v5172, %v5385
        %v5407 = vmul.f32 %v5173, %v5383
        %v5408 = vmul.f32 %v5174, %v5384
        %v5409 = vmul.f32 %v5175, %v5385
        %v5410 = vmul.f32 %v5176, %v5383
        %v5411 = vmul.f32 %v5177, %v5384
        %v5412 = vmul.f32 %v5178, %v5385
        %v5413 = vmul.f32 %v5179, %v5383
        %v5414 = vmul.f32 %v5180, %v5384
        %v5415 = vmul.f32 %v5181, %v5385
        %v5416 = vmul.f32 %v5182, %v5383
        %v5417 = vmul.f32 %v5183, %v5384
        %v5418 = vmul.f32 %v5184, %v5385
        %v5419 = vmul.f32 %v5185, %v5383
        %v5420 = vmul.f32 %v5186, %v5384
        %v5421 = vmul.f32 %v5187, %v5385
        %v5423 = vperm.slane %v5400, 0
        %v5424 = vperm.slane %v5400, 1
        %v5425 = vperm.slane %v5400, 2
        %v5429 = vadd.f32 %v5401, %v5423
        %v5430 = vadd.f32 %v5402, %v5424
        %v5431 = vadd.f32 %v5403, %v5425
        %v5432 = vadd.f32 %v5404, %v5423
        %v5433 = vadd.f32 %v5405, %v5424
        %v5434 = vadd.f32 %v5406, %v5425
        %v5435 = vadd.f32 %v5407, %v5423
        %v5436 = vadd.f32 %v5408, %v5424
        %v5437 = vadd.f32 %v5409, %v5425
        %v5438 = vadd.f32 %v5410, %v5423
        %v5439 = vadd.f32 %v5411, %v5424
        %v5440 = vadd.f32 %v5412, %v5425
        %v5441 = vadd.f32 %v5413, %v5423
        %v5442 = vadd.f32 %v5414, %v5424
        %v5443 = vadd.f32 %v5415, %v5425
        %v5444 = vadd.f32 %v5416, %v5423
        %v5445 = vadd.f32 %v5417, %v5424
        %v5446 = vadd.f32 %v5418, %v5425
        %v5447 = vadd.f32 %v5419, %v5423
        %v5448 = vadd.f32 %v5420, %v5424
        %v5449 = vadd.f32 %v5421, %v5425
        %5450 = vst [vmem:[%s341] sm:$0x7f] %v5429
        %5451 = vst [vmem:[%s341 + $0x8] sm:$0x7f] %v5430
        %5452 = vst [vmem:[%s341 + $0x10] sm:$0x7f] %v5431
        %5453 = vst [vmem:[%s341 + $0x18] sm:$0x7f] %v5432
        %5454 = vst [vmem:[%s341 + $0x20] sm:$0x7f] %v5433
        %5455 = vst [vmem:[%s341 + $0x28] sm:$0x7f] %v5434
        %5456 = vst [vmem:[%s341 + $0x30] sm:$0x7f] %v5435
        %5457 = vst [vmem:[%s341 + $0x38] sm:$0x7f] %v5436
        %5458 = vst [vmem:[%s341 + $0x40] sm:$0x7f] %v5437
        %5459 = vst [vmem:[%s341 + $0x48] sm:$0x7f] %v5438
        %5460 = vst [vmem:[%s341 + $0x50] sm:$0x7f] %v5439
        %5461 = vst [vmem:[%s341 + $0x58] sm:$0x7f] %v5440
        %5462 = vst [vmem:[%s341 + $0x60] sm:$0x7f] %v5441
        %5463 = vst [vmem:[%s341 + $0x68] sm:$0x7f] %v5442
        %5464 = vst [vmem:[%s341 + $0x70] sm:$0x7f] %v5443
        %5465 = vst [vmem:[%s341 + $0x78] sm:$0x7f] %v5444
        %5466 = vst [vmem:[%s341 + $0x80] sm:$0x7f] %v5445
        %5467 = vst [vmem:[%s341 + $0x88] sm:$0x7f] %v5446
        %5468 = vst [vmem:[%s341 + $0x90] sm:$0x7f] %v5447
        %5469 = vst [vmem:[%s341 + $0x98] sm:$0x7f] %v5448
        %5470 = vst [vmem:[%s341 + $0xa0] sm:$0x7f] %v5449
        %s5471 = sand.u32 %s127, 1
        %s5472 = sand.u32 %s127, 1
        %s5473 = smul.addr %s5472, 168
        %s5474 = scalar_lea.vmem [#allocation5], %s5473
        // Predicated region
        $region83: #{dwconv_bn.1} parent=73 // pred_check
          %p5475 = pneg %p137
        $region84: #{dwconv_bn.1} parent=73 // pred_check_branch
          %5477 = sbr.rel (%p5475) target = $region86
        $region85: #{dwconv_bn.1} parent=73 // pred_region
          %s5478 = smul.u32 3, %s15
          %s5479 = smul.addr %s5478, 8
          %s5480 = scalar_lea.vmem %s4, %s5479
          // Predicated region
          $region87: #{dwconv_bn.1} parent=85 // pred_check
            _
          $region88: #{dwconv_bn.1} parent=85 // pred_check_branch
            %5482 = sbr.rel (0) target = $region90
          $region89: #{dwconv_bn.1} parent=85 // pred_region
            // Predicated region
            $region91: #{dwconv_bn.1} parent=89 // pred_check
              _
            $region92: #{dwconv_bn.1} parent=89 // pred_check_branch
              %5484 = sbr.rel (0) target = $region94
            $region93: #{dwconv_bn.1} parent=89 // pred_region
              loop: start=0, step=1, limit=1
              $region95: #{dwconv_bn.1} parent=93 // loop_pre_header
                _
              $region96: #{dwconv_bn.1} parent=93 // loop_header
                %s5486 = sphi 0, %s5490
                %p5487 = scmp.ge.s32.totalorder %s5486, 1
                %s5491 = sphi %s5474, %s5474
                %s5492 = sphi %s5480, %s5480
              $region97: #{dwconv_bn.1} parent=93 // loop_header_branch
                %5489 = sbr.rel (%p5487) target = $region101
              $region98: #{dwconv_bn.1} parent=93 // loop_body
                %v5493 = vld [vmem:[%s5491] sm:$0xff]
                %5494 = vst [vmem:[%s5492] sm:$0xff] %v5493
                %v5495 = vld [vmem:[%s5491 + $0x8] sm:$0xff]
                %5496 = vst [vmem:[%s5492 + $0x8] sm:$0xff] %v5495
                %v5497 = vld [vmem:[%s5491 + $0x10] sm:$0xff]
                %5498 = vst [vmem:[%s5492 + $0x10] sm:$0xff] %v5497
                %v5499 = vld [vmem:[%s5491 + $0x18] sm:$0xff]
                %5500 = vst [vmem:[%s5492 + $0x90] sm:$0xff] %v5499
                %v5501 = vld [vmem:[%s5491 + $0x20] sm:$0xff]
                %5502 = vst [vmem:[%s5492 + $0x98] sm:$0xff] %v5501
                %v5503 = vld [vmem:[%s5491 + $0x28] sm:$0xff]
                %5504 = vst [vmem:[%s5492 + $0xa0] sm:$0xff] %v5503
                %v5505 = vld [vmem:[%s5491 + $0x30] sm:$0xff]
                %5506 = vst [vmem:[%s5492 + $0x120] sm:$0xff] %v5505
                %v5507 = vld [vmem:[%s5491 + $0x38] sm:$0xff]
                %5508 = vst [vmem:[%s5492 + $0x128] sm:$0xff] %v5507
                %v5509 = vld [vmem:[%s5491 + $0x40] sm:$0xff]
                %5510 = vst [vmem:[%s5492 + $0x130] sm:$0xff] %v5509
                %v5511 = vld [vmem:[%s5491 + $0x48] sm:$0xff]
                %5512 = vst [vmem:[%s5492 + $0x1b0] sm:$0xff] %v5511
                %v5513 = vld [vmem:[%s5491 + $0x50] sm:$0xff]
                %5514 = vst [vmem:[%s5492 + $0x1b8] sm:$0xff] %v5513
                %v5515 = vld [vmem:[%s5491 + $0x58] sm:$0xff]
                %5516 = vst [vmem:[%s5492 + $0x1c0] sm:$0xff] %v5515
                %v5517 = vld [vmem:[%s5491 + $0x60] sm:$0xff]
                %5518 = vst [vmem:[%s5492 + $0x240] sm:$0xff] %v5517
                %v5519 = vld [vmem:[%s5491 + $0x68] sm:$0xff]
                %5520 = vst [vmem:[%s5492 + $0x248] sm:$0xff] %v5519
                %v5521 = vld [vmem:[%s5491 + $0x70] sm:$0xff]
                %5522 = vst [vmem:[%s5492 + $0x250] sm:$0xff] %v5521
                %v5523 = vld [vmem:[%s5491 + $0x78] sm:$0xff]
                %5524 = vst [vmem:[%s5492 + $0x2d0] sm:$0xff] %v5523
                %v5525 = vld [vmem:[%s5491 + $0x80] sm:$0xff]
                %5526 = vst [vmem:[%s5492 + $0x2d8] sm:$0xff] %v5525
                %v5527 = vld [vmem:[%s5491 + $0x88] sm:$0xff]
                %5528 = vst [vmem:[%s5492 + $0x2e0] sm:$0xff] %v5527
                %v5529 = vld [vmem:[%s5491 + $0x90] sm:$0xff]
                %5530 = vst [vmem:[%s5492 + $0x360] sm:$0xff] %v5529
                %v5531 = vld [vmem:[%s5491 + $0x98] sm:$0xff]
                %5532 = vst [vmem:[%s5492 + $0x368] sm:$0xff] %v5531
                %v5533 = vld [vmem:[%s5491 + $0xa0] sm:$0xff]
                %5534 = vst [vmem:[%s5492 + $0x370] sm:$0xff] %v5533
              $region99: #{dwconv_bn.1} parent=93 // loop_footer
                %s5490 = sadd.s32 1, %s5486
              $region100: #{dwconv_bn.1} parent=93 // loop_footer_branch
                %5485 = sbr.rel target = $region96
              $region101: #{dwconv_bn.1} parent=93 // loop_exit
                _
            $region94: #{dwconv_bn.1} parent=89 // pred_fallthru
              _
            // Predicated region
            $region102: #{dwconv_bn.1} parent=89 // pred_check
              _
            $region103: #{dwconv_bn.1} parent=89 // pred_check_branch
              %5536 = sbr.rel target = $region105
            $region104: #{dwconv_bn.1} parent=89 // pred_region
              _
            $region105: #{dwconv_bn.1} parent=89 // pred_fallthru
              _
          $region90: #{dwconv_bn.1} parent=85 // pred_fallthru
            _
          %5537 = vnop
        $region86: #{dwconv_bn.1} parent=73 // pred_fallthru
          _
      $region74: #{dwconv_bn.1} parent=5 // pred_fallthru
        _
      %p5538 = scmp.le.s32.totalorder 2, %s10
      // Predicated region
      $region106: #{dwconv_bn.1} parent=5 // pred_check
        %p5539 = pneg %p5538
      $region107: #{dwconv_bn.1} parent=5 // pred_check_branch
        %5541 = sbr.rel (%p5539) target = $region109
      $region108: #{dwconv_bn.1} parent=5 // pred_region
        %s5542 = ssub.s32 %s10, 2
        // Predicated region
        $region110: #{dwconv_bn.1} parent=108 // pred_check
          %p5543 = pneg %p143
        $region111: #{dwconv_bn.1} parent=108 // pred_check_branch
          %5545 = sbr.rel (%p5543) target = $region113
        $region112: #{dwconv_bn.1} parent=108 // pred_region
          %s5546 = sand.u32 %s128, 1
          %s5547 = sand.u32 %s128, 1
          %s5548 = smul.addr %s5547, 168
          %s5549 = scalar_lea.vmem [#allocation5], %s5548
        $region113: #{dwconv_bn.1} parent=108 // pred_fallthru
          _
      $region109: #{dwconv_bn.1} parent=5 // pred_fallthru
        _
    $region6: #{dwconv_bn.1} parent=1 // loop_footer
      %s14 = sadd.s32 1, %s10
    $region7: #{dwconv_bn.1} parent=1 // loop_footer_branch
      %9 = sbr.rel target = $region3
    $region8: #{dwconv_bn.1} parent=1 // loop_exit
      _

</llo_original>
